<compile_context>
chip_gen: v7x
topology: tpu7x:2x2x1
jax: 0.10.0
libtpu: 0.0.40
codegen_flags: <defaults>
</compile_context>

<pallas_src>
import jax
import jax.numpy as jnp
from jax import lax
from jax.experimental import pallas as pl
from jax.experimental.pallas import tpu as pltpu


# ----------------------------- in-kernel helpers -----------------------------
def _conv3x3_im2col(xp, w_mat, b_row, h, w, cin):
    """3x3 'same' conv + ReLU on one padded plane.

    xp:    (h+2, w+2, cin) zero-padded NHWC plane (a VMEM value)
    w_mat: (9*cin, cout)   weights, rows ordered (ky, kx, cin)
    b_row: (1, cout)
    returns (h*w, cout), rows in (row, col) order.
    """
    cols = []
    for ky in range(3):
        for kx in range(3):
            cols.append(xp[ky:ky + h, kx:kx + w, :].reshape(h * w, cin))
    patches = jnp.concatenate(cols, axis=1)                      # (h*w, 9*cin)
    acc = jnp.dot(patches, w_mat, preferred_element_type=jnp.float32) + b_row
    return jnp.maximum(acc, 0.0)                                 # fused ReLU


def _maxpool2x2(y, h, w, c):
    """2x2/stride-2 max-pool. y: (h*w, c) rows in (row, col) order -> (h//2, w//2, c)."""
    # pool along width (pairs are adjacent rows of the (h*w, c) matrix)
    y = y.reshape((h * w) // 2, 2, c)
    y = jnp.maximum(y[:, 0, :], y[:, 1, :])                      # (h*(w//2), c)
    # pool along height (pairs are rows w//2 apart)
    y = y.reshape(h // 2, 2, w // 2, c)
    y = jnp.maximum(y[:, 0], y[:, 1])                            # (h//2, w//2, c)
    return y


# ------------------------------ fused forward kernel -------------------------
def fused_forward_kernel(x_ref, w1_ref, b1_ref, w2_ref, b2_ref, wc_ref, bc_ref,
                         o_ref, pad1_ref, pad2_ref):
    # x_ref   : (1, H, W, Cin)        one image, NHWC
    # w1_ref  : (9*Cin, C1)           b1_ref: (1, C1)
    # w2_ref  : (9*C1, C2)            b2_ref: (1, C2)
    # wc_ref  : (H2*W2*C2, NCLS)      classifier weight in (h, w, c) flatten order
    # bc_ref  : (1, NCLS)
    # o_ref   : (1, 1, NCLS)
    # pad1_ref: (H+2, W+2, Cin)       VMEM scratch (zero-padded conv1 input)
    # pad2_ref: (H1+2, W1+2, C1)      VMEM scratch (zero-padded conv2 input)
    _, H, W, Cin = x_ref.shape
    C1 = b1_ref.shape[1]
    C2 = b2_ref.shape[1]
    NCLS = o_ref.shape[2]
    H1, W1 = H // 2, W // 2
    H2, W2 = H1 // 2, W1 // 2

    # ---- conv1 (3x3, pad=1) + ReLU: pad in VMEM, single im2col matmul ----
    pad1_ref[...] = jnp.zeros(pad1_ref.shape, pad1_ref.dtype)
    pad1_ref[1:H + 1, 1:W + 1, :] = x_ref[0]
    y1 = _conv3x3_im2col(pad1_ref[...], w1_ref[...], b1_ref[...], H, W, Cin)   # (H*W, C1)

    # ---- maxpool 2x2 (in VMEM) ----
    p1 = _maxpool2x2(y1, H, W, C1)                                             # (H1, W1, C1)

    # ---- conv2 (3x3, pad=1) + ReLU ----
    pad2_ref[...] = jnp.zeros(pad2_ref.shape, pad2_ref.dtype)
    pad2_ref[1:H1 + 1, 1:W1 + 1, :] = p1
    y2 = _conv3x3_im2col(pad2_ref[...], w2_ref[...], b2_ref[...], H1, W1, C1)  # (H1*W1, C2)

    # ---- maxpool 2x2 ----
    p2 = _maxpool2x2(y2, H1, W1, C2).reshape(H2 * W2, C2)                      # (H2*W2, C2)

    # ---- flatten (NHWC order) via lane-concat + classifier matmul (epilogue) ----
    feat = jnp.concatenate([p2[i:i + 1, :] for i in range(H2 * W2)], axis=1)   # (1, FEAT)
    logits = jnp.dot(feat, wc_ref[...], preferred_element_type=jnp.float32) + bc_ref[...]
    o_ref[...] = logits.reshape(1, 1, NCLS).astype(o_ref.dtype)


# --------------------------------- wrapper -----------------------------------
@jax.jit
def custom_model_forward(x_nchw, params):
    w1, b1 = params["w1_mat"], params["b1_row"]
    w2, b2 = params["w2_mat"], params["b2_row"]
    wc, bc = params["wc_mat"], params["bc_row"]

    N, Cin, H, W = x_nchw.shape
    C1 = w1.shape[1]
    NCLS = wc.shape[1]
    H1, W1 = H // 2, W // 2

    # Only layout op outside the kernel: tiny NCHW -> NHWC transpose of the input.
    x = jnp.transpose(x_nchw, (0, 2, 3, 1))

    out = pl.pallas_call(
        fused_forward_kernel,
        out_shape=jax.ShapeDtypeStruct((N, 1, NCLS), x.dtype),
        grid=(N,),
        in_specs=[
            pl.BlockSpec((1, H, W, Cin), lambda n: (n, 0, 0, 0)),
            pl.BlockSpec(w1.shape, lambda n: (0, 0)),
            pl.BlockSpec(b1.shape, lambda n: (0, 0)),
            pl.BlockSpec(w2.shape, lambda n: (0, 0)),
            pl.BlockSpec(b2.shape, lambda n: (0, 0)),
            pl.BlockSpec(wc.shape, lambda n: (0, 0)),
            pl.BlockSpec(bc.shape, lambda n: (0, 0)),
        ],
        out_specs=pl.BlockSpec((1, 1, NCLS), lambda n: (n, 0, 0)),
        scratch_shapes=[
            pltpu.VMEM((H + 2, W + 2, Cin), jnp.float32),
            pltpu.VMEM((H1 + 2, W1 + 2, C1), jnp.float32),
        ],
        compiler_params=pltpu.CompilerParams(dimension_semantics=("parallel",)),
    )(x, w1, b1, w2, b2, wc, bc)
    return out.reshape(N, NCLS)


def prepare_params(w1, b1, w2, b2, wc, bc, H, W):
    """One-time host-side repack of PyTorch-shaped params into kernel layouts."""
    C1, Cin = w1.shape[0], w1.shape[1]
    C2 = w2.shape[0]
    NCLS = wc.shape[0]
    H2, W2 = H // 4, W // 4
    # OIHW -> HWIO -> (9*Cin, Cout); row order (ky, kx, cin) matches the im2col concat.
    w1_mat = jnp.transpose(w1, (2, 3, 1, 0)).reshape(9 * Cin, C1)
    w2_mat = jnp.transpose(w2, (2, 3, 1, 0)).reshape(9 * C1, C2)
    # PyTorch flatten order is (C, H, W); the kernel flattens in (H, W, C) order,
    # so permute the classifier weight columns once here instead of transposing
    # the activation every call.
    wc_mat = (wc.reshape(NCLS, C2, H2, W2)
                .transpose(2, 3, 1, 0)
                .reshape(H2 * W2 * C2, NCLS))
    return {
        "w1_mat": w1_mat, "b1_row": b1.reshape(1, -1),
        "w2_mat": w2_mat, "b2_row": b2.reshape(1, -1),
        "wc_mat": wc_mat, "bc_row": bc.reshape(1, -1),
    }


# -------------------------- pure-JAX reference model -------------------------
def reference_forward(x, w1, b1, w2, b2, wc, bc):
    def conv(y, w, b):
        dn = lax.conv_dimension_numbers(y.shape, w.shape, ("NCHW", "OIHW", "NCHW"))
        y = lax.conv_general_dilated(y, w, (1, 1), [(1, 1), (1, 1)],
                                     dimension_numbers=dn)
        return jax.nn.relu(y + b[None, :, None, None])

    def pool(y):
        return lax.reduce_window(y, -jnp.inf, lax.max,
                                 (1, 1, 2, 2), (1, 1, 2, 2), "VALID")

    y = pool(conv(x, w1, b1))
    y = pool(conv(y, w2, b2))
    y = y.reshape(y.shape[0], -1)
    return y @ wc.T + bc


if __name__ == "__main__":
    N, Cin, H, W = 2, 3, 16, 16
    C1, C2, NCLS = 8, 16, 10
    FEAT = C2 * (H // 4) * (W // 4)                    # 16 * 4 * 4 = 256

    key = jax.random.PRNGKey(0)
    kx, k1, k2, k3, k4, k5, k6 = jax.random.split(key, 7)

    x = jax.random.normal(kx, (N, Cin, H, W), jnp.float32)

    # PyTorch-shaped parameters (OIHW convs, (out, in) linear), deterministic init.
    w1 = jax.random.normal(k1, (C1, Cin, 3, 3), jnp.float32) * 0.1
    b1 = jax.random.normal(k2, (C1,), jnp.float32) * 0.1
    w2 = jax.random.normal(k3, (C2, C1, 3, 3), jnp.float32) * 0.1
    b2 = jax.random.normal(k4, (C2,), jnp.float32) * 0.1
    wc = jax.random.normal(k5, (NCLS, FEAT), jnp.float32) * 0.1
    bc = jax.random.normal(k6, (NCLS,), jnp.float32) * 0.1

    params = prepare_params(w1, b1, w2, b2, wc, bc, H, W)

    out = custom_model_forward(x, params)
    out = jax.block_until_ready(out)
    assert out.shape == (N, NCLS), out.shape

    ref = reference_forward(x, w1, b1, w2, b2, wc, bc)
    assert jnp.allclose(out, ref, rtol=2e-2, atol=2e-2), (
        float(jnp.max(jnp.abs(out - ref))))

    print("KERNEL_OK")
</pallas_src>

<mosaic_0001>
module attributes {stable_mosaic.version = 11 : i64} {
  func.func @fused_forward_kernel(%arg0: i32, %arg1: memref<1x16x16x3xf32, #tpu.memory_space<vmem>>, %arg2: memref<27x8xf32, #tpu.memory_space<vmem>>, %arg3: memref<1x8xf32, #tpu.memory_space<vmem>>, %arg4: memref<72x16xf32, #tpu.memory_space<vmem>>, %arg5: memref<1x16xf32, #tpu.memory_space<vmem>>, %arg6: memref<256x10xf32, #tpu.memory_space<vmem>>, %arg7: memref<1x10xf32, #tpu.memory_space<vmem>>, %arg8: memref<1x1x10xf32, #tpu.memory_space<vmem>>, %arg9: memref<18x18x3xf32, #tpu.memory_space<vmem>>, %arg10: memref<10x10x8xf32, #tpu.memory_space<vmem>>) attributes {dimension_semantics = [#tpu.dimension_semantics<parallel>], iteration_bounds = array<i64: 2>, scalar_prefetch = 0 : i64, scratch_operands = 2 : i64, tpu.core_type = #tpu.core_type<tc>, window_params = [{transform_indices = @transform_0, window_bounds = array<i64: 1, 16, 16, 3>}, {pipeline_mode = #tpu.pipeline_mode<synchronous>, transform_indices = @transform_1, window_bounds = array<i64: 27, 8>}, {pipeline_mode = #tpu.pipeline_mode<synchronous>, transform_indices = @transform_2, window_bounds = array<i64: 1, 8>}, {pipeline_mode = #tpu.pipeline_mode<synchronous>, transform_indices = @transform_3, window_bounds = array<i64: 72, 16>}, {pipeline_mode = #tpu.pipeline_mode<synchronous>, transform_indices = @transform_4, window_bounds = array<i64: 1, 16>}, {pipeline_mode = #tpu.pipeline_mode<synchronous>, transform_indices = @transform_5, window_bounds = array<i64: 256, 10>}, {pipeline_mode = #tpu.pipeline_mode<synchronous>, transform_indices = @transform_6, window_bounds = array<i64: 1, 10>}, {transform_indices = @transform_7, window_bounds = array<i64: 1, 1, 10>}]} {
    %cst = arith.constant 0.000000e+00 : f32
    %0 = vector.broadcast %cst : f32 to vector<18x18x3xf32>
    %c0 = arith.constant 0 : index
    %c0_0 = arith.constant 0 : index
    %c0_1 = arith.constant 0 : index
    %1 = vector.load %arg9[%c0, %c0_0, %c0_1] : memref<18x18x3xf32, #tpu.memory_space<vmem>>, vector<18x18x3xf32>
    tpu.vector_store %arg9[%c0, %c0_0, %c0_1], %0 {strides = array<i32>} : memref<18x18x3xf32, #tpu.memory_space<vmem>>, vector<18x18x3xf32>,
    %c0_2 = arith.constant 0 : index
    %c0_3 = arith.constant 0 : index
    %c0_4 = arith.constant 0 : index
    %c0_5 = arith.constant 0 : index
    %2 = vector.load %arg1[%c0_2, %c0_3, %c0_4, %c0_5] : memref<1x16x16x3xf32, #tpu.memory_space<vmem>>, vector<1x16x16x3xf32>
    %3 = vector.shape_cast %2 : vector<1x16x16x3xf32> to vector<16x16x3xf32>
    %c1 = arith.constant 1 : index
    %c1_6 = arith.constant 1 : index
    %c0_7 = arith.constant 0 : index
    %4 = vector.load %arg9[%c1, %c1_6, %c0_7] : memref<18x18x3xf32, #tpu.memory_space<vmem>>, vector<16x16x3xf32>
    tpu.vector_store %arg9[%c1, %c1_6, %c0_7], %3 {strides = array<i32>} : memref<18x18x3xf32, #tpu.memory_space<vmem>>, vector<16x16x3xf32>,
    %c0_8 = arith.constant 0 : index
    %c0_9 = arith.constant 0 : index
    %c0_10 = arith.constant 0 : index
    %5 = vector.load %arg9[%c0_8, %c0_9, %c0_10] : memref<18x18x3xf32, #tpu.memory_space<vmem>>, vector<18x18x3xf32>
    %c0_11 = arith.constant 0 : index
    %c0_12 = arith.constant 0 : index
    %6 = vector.load %arg2[%c0_11, %c0_12] : memref<27x8xf32, #tpu.memory_space<vmem>>, vector<27x8xf32>
    %c0_13 = arith.constant 0 : index
    %c0_14 = arith.constant 0 : index
    %7 = vector.load %arg3[%c0_13, %c0_14] : memref<1x8xf32, #tpu.memory_space<vmem>>, vector<1x8xf32>
    %8 = vector.extract_strided_slice %5 {offsets = [0, 0, 0], sizes = [16, 16, 3], strides = [1, 1, 1]} : vector<18x18x3xf32> to vector<16x16x3xf32>
    %9 = vector.shape_cast %8 : vector<16x16x3xf32> to vector<256x3xf32>
    %10 = vector.extract_strided_slice %5 {offsets = [0, 1, 0], sizes = [16, 16, 3], strides = [1, 1, 1]} : vector<18x18x3xf32> to vector<16x16x3xf32>
    %11 = vector.shape_cast %10 : vector<16x16x3xf32> to vector<256x3xf32>
    %12 = vector.extract_strided_slice %5 {offsets = [0, 2, 0], sizes = [16, 16, 3], strides = [1, 1, 1]} : vector<18x18x3xf32> to vector<16x16x3xf32>
    %13 = vector.shape_cast %12 : vector<16x16x3xf32> to vector<256x3xf32>
    %14 = vector.extract_strided_slice %5 {offsets = [1, 0, 0], sizes = [16, 16, 3], strides = [1, 1, 1]} : vector<18x18x3xf32> to vector<16x16x3xf32>
    %15 = vector.shape_cast %14 : vector<16x16x3xf32> to vector<256x3xf32>
    %16 = vector.extract_strided_slice %5 {offsets = [1, 1, 0], sizes = [16, 16, 3], strides = [1, 1, 1]} : vector<18x18x3xf32> to vector<16x16x3xf32>
    %17 = vector.shape_cast %16 : vector<16x16x3xf32> to vector<256x3xf32>
    %18 = vector.extract_strided_slice %5 {offsets = [1, 2, 0], sizes = [16, 16, 3], strides = [1, 1, 1]} : vector<18x18x3xf32> to vector<16x16x3xf32>
    %19 = vector.shape_cast %18 : vector<16x16x3xf32> to vector<256x3xf32>
    %20 = vector.extract_strided_slice %5 {offsets = [2, 0, 0], sizes = [16, 16, 3], strides = [1, 1, 1]} : vector<18x18x3xf32> to vector<16x16x3xf32>
    %21 = vector.shape_cast %20 : vector<16x16x3xf32> to vector<256x3xf32>
    %22 = vector.extract_strided_slice %5 {offsets = [2, 1, 0], sizes = [16, 16, 3], strides = [1, 1, 1]} : vector<18x18x3xf32> to vector<16x16x3xf32>
    %23 = vector.shape_cast %22 : vector<16x16x3xf32> to vector<256x3xf32>
    %24 = vector.extract_strided_slice %5 {offsets = [2, 2, 0], sizes = [16, 16, 3], strides = [1, 1, 1]} : vector<18x18x3xf32> to vector<16x16x3xf32>
    %25 = vector.shape_cast %24 : vector<16x16x3xf32> to vector<256x3xf32>
    %26 = tpu.concatenate %9, %11, %13, %15, %17, %19, %21, %23, %25 in 1 : vector<256x3xf32>, vector<256x3xf32>, vector<256x3xf32>, vector<256x3xf32>, vector<256x3xf32>, vector<256x3xf32>, vector<256x3xf32>, vector<256x3xf32>, vector<256x3xf32> -> vector<256x27xf32>
    %cst_15 = arith.constant dense<0.000000e+00> : vector<256x8xf32>
    %27 = tpu.matmul %26, %6, %cst_15 {dimension_numbers = #tpu.dot_dimension_numbers<[1], [0], [0], [1], [0, 0, 1, 1], [], []>} : vector<256x27xf32>, vector<27x8xf32>, vector<256x8xf32> -> vector<256x8xf32>
    %28 = vector.broadcast %7 : vector<1x8xf32> to vector<256x8xf32>
    %29 = arith.addf %27, %28 : vector<256x8xf32>
    %cst_16 = arith.constant 0.000000e+00 : f32
    %30 = vector.broadcast %cst_16 : f32 to vector<256x8xf32>
    %31 = arith.maximumf %29, %30 : vector<256x8xf32>
    %32 = vector.shape_cast %31 : vector<256x8xf32> to vector<128x2x8xf32>
    %33 = vector.extract_strided_slice %32 {offsets = [0, 0, 0], sizes = [128, 1, 8], strides = [1, 1, 1]} : vector<128x2x8xf32> to vector<128x1x8xf32>
    %34 = vector.shape_cast %33 : vector<128x1x8xf32> to vector<128x8xf32>
    %35 = vector.extract_strided_slice %32 {offsets = [0, 1, 0], sizes = [128, 1, 8], strides = [1, 1, 1]} : vector<128x2x8xf32> to vector<128x1x8xf32>
    %36 = vector.shape_cast %35 : vector<128x1x8xf32> to vector<128x8xf32>
    %37 = arith.maximumf %34, %36 : vector<128x8xf32>
    %38 = vector.shape_cast %37 : vector<128x8xf32> to vector<8x2x8x8xf32>
    %39 = vector.extract_strided_slice %38 {offsets = [0, 0, 0, 0], sizes = [8, 1, 8, 8], strides = [1, 1, 1, 1]} : vector<8x2x8x8xf32> to vector<8x1x8x8xf32>
    %40 = vector.shape_cast %39 : vector<8x1x8x8xf32> to vector<8x8x8xf32>
    %41 = vector.extract_strided_slice %38 {offsets = [0, 1, 0, 0], sizes = [8, 1, 8, 8], strides = [1, 1, 1, 1]} : vector<8x2x8x8xf32> to vector<8x1x8x8xf32>
    %42 = vector.shape_cast %41 : vector<8x1x8x8xf32> to vector<8x8x8xf32>
    %43 = arith.maximumf %40, %42 : vector<8x8x8xf32>
    %cst_17 = arith.constant 0.000000e+00 : f32
    %44 = vector.broadcast %cst_17 : f32 to vector<10x10x8xf32>
    %c0_18 = arith.constant 0 : index
    %c0_19 = arith.constant 0 : index
    %c0_20 = arith.constant 0 : index
    %45 = vector.load %arg10[%c0_18, %c0_19, %c0_20] : memref<10x10x8xf32, #tpu.memory_space<vmem>>, vector<10x10x8xf32>
    tpu.vector_store %arg10[%c0_18, %c0_19, %c0_20], %44 {strides = array<i32>} : memref<10x10x8xf32, #tpu.memory_space<vmem>>, vector<10x10x8xf32>,
    %c1_21 = arith.constant 1 : index
    %c1_22 = arith.constant 1 : index
    %c0_23 = arith.constant 0 : index
    %46 = vector.load %arg10[%c1_21, %c1_22, %c0_23] : memref<10x10x8xf32, #tpu.memory_space<vmem>>, vector<8x8x8xf32>
    tpu.vector_store %arg10[%c1_21, %c1_22, %c0_23], %43 {strides = array<i32>} : memref<10x10x8xf32, #tpu.memory_space<vmem>>, vector<8x8x8xf32>,
    %c0_24 = arith.constant 0 : index
    %c0_25 = arith.constant 0 : index
    %c0_26 = arith.constant 0 : index
    %47 = vector.load %arg10[%c0_24, %c0_25, %c0_26] : memref<10x10x8xf32, #tpu.memory_space<vmem>>, vector<10x10x8xf32>
    %c0_27 = arith.constant 0 : index
    %c0_28 = arith.constant 0 : index
    %48 = vector.load %arg4[%c0_27, %c0_28] : memref<72x16xf32, #tpu.memory_space<vmem>>, vector<72x16xf32>
    %c0_29 = arith.constant 0 : index
    %c0_30 = arith.constant 0 : index
    %49 = vector.load %arg5[%c0_29, %c0_30] : memref<1x16xf32, #tpu.memory_space<vmem>>, vector<1x16xf32>
    %50 = vector.extract_strided_slice %47 {offsets = [0, 0, 0], sizes = [8, 8, 8], strides = [1, 1, 1]} : vector<10x10x8xf32> to vector<8x8x8xf32>
    %51 = vector.shape_cast %50 : vector<8x8x8xf32> to vector<64x8xf32>
    %52 = vector.extract_strided_slice %47 {offsets = [0, 1, 0], sizes = [8, 8, 8], strides = [1, 1, 1]} : vector<10x10x8xf32> to vector<8x8x8xf32>
    %53 = vector.shape_cast %52 : vector<8x8x8xf32> to vector<64x8xf32>
    %54 = vector.extract_strided_slice %47 {offsets = [0, 2, 0], sizes = [8, 8, 8], strides = [1, 1, 1]} : vector<10x10x8xf32> to vector<8x8x8xf32>
    %55 = vector.shape_cast %54 : vector<8x8x8xf32> to vector<64x8xf32>
    %56 = vector.extract_strided_slice %47 {offsets = [1, 0, 0], sizes = [8, 8, 8], strides = [1, 1, 1]} : vector<10x10x8xf32> to vector<8x8x8xf32>
    %57 = vector.shape_cast %56 : vector<8x8x8xf32> to vector<64x8xf32>
    %58 = vector.extract_strided_slice %47 {offsets = [1, 1, 0], sizes = [8, 8, 8], strides = [1, 1, 1]} : vector<10x10x8xf32> to vector<8x8x8xf32>
    %59 = vector.shape_cast %58 : vector<8x8x8xf32> to vector<64x8xf32>
    %60 = vector.extract_strided_slice %47 {offsets = [1, 2, 0], sizes = [8, 8, 8], strides = [1, 1, 1]} : vector<10x10x8xf32> to vector<8x8x8xf32>
    %61 = vector.shape_cast %60 : vector<8x8x8xf32> to vector<64x8xf32>
    %62 = vector.extract_strided_slice %47 {offsets = [2, 0, 0], sizes = [8, 8, 8], strides = [1, 1, 1]} : vector<10x10x8xf32> to vector<8x8x8xf32>
    %63 = vector.shape_cast %62 : vector<8x8x8xf32> to vector<64x8xf32>
    %64 = vector.extract_strided_slice %47 {offsets = [2, 1, 0], sizes = [8, 8, 8], strides = [1, 1, 1]} : vector<10x10x8xf32> to vector<8x8x8xf32>
    %65 = vector.shape_cast %64 : vector<8x8x8xf32> to vector<64x8xf32>
    %66 = vector.extract_strided_slice %47 {offsets = [2, 2, 0], sizes = [8, 8, 8], strides = [1, 1, 1]} : vector<10x10x8xf32> to vector<8x8x8xf32>
    %67 = vector.shape_cast %66 : vector<8x8x8xf32> to vector<64x8xf32>
    %68 = tpu.concatenate %51, %53, %55, %57, %59, %61, %63, %65, %67 in 1 : vector<64x8xf32>, vector<64x8xf32>, vector<64x8xf32>, vector<64x8xf32>, vector<64x8xf32>, vector<64x8xf32>, vector<64x8xf32>, vector<64x8xf32>, vector<64x8xf32> -> vector<64x72xf32>
    %cst_31 = arith.constant dense<0.000000e+00> : vector<64x16xf32>
    %69 = tpu.matmul %68, %48, %cst_31 {dimension_numbers = #tpu.dot_dimension_numbers<[1], [0], [0], [1], [0, 0, 1, 1], [], []>} : vector<64x72xf32>, vector<72x16xf32>, vector<64x16xf32> -> vector<64x16xf32>
    %70 = vector.broadcast %49 : vector<1x16xf32> to vector<64x16xf32>
    %71 = arith.addf %69, %70 : vector<64x16xf32>
    %cst_32 = arith.constant 0.000000e+00 : f32
    %72 = vector.broadcast %cst_32 : f32 to vector<64x16xf32>
    %73 = arith.maximumf %71, %72 : vector<64x16xf32>
    %74 = vector.shape_cast %73 : vector<64x16xf32> to vector<32x2x16xf32>
    %75 = vector.extract_strided_slice %74 {offsets = [0, 0, 0], sizes = [32, 1, 16], strides = [1, 1, 1]} : vector<32x2x16xf32> to vector<32x1x16xf32>
    %76 = vector.shape_cast %75 : vector<32x1x16xf32> to vector<32x16xf32>
    %77 = vector.extract_strided_slice %74 {offsets = [0, 1, 0], sizes = [32, 1, 16], strides = [1, 1, 1]} : vector<32x2x16xf32> to vector<32x1x16xf32>
    %78 = vector.shape_cast %77 : vector<32x1x16xf32> to vector<32x16xf32>
    %79 = arith.maximumf %76, %78 : vector<32x16xf32>
    %80 = vector.shape_cast %79 : vector<32x16xf32> to vector<4x2x4x16xf32>
    %81 = vector.extract_strided_slice %80 {offsets = [0, 0, 0, 0], sizes = [4, 1, 4, 16], strides = [1, 1, 1, 1]} : vector<4x2x4x16xf32> to vector<4x1x4x16xf32>
    %82 = vector.shape_cast %81 : vector<4x1x4x16xf32> to vector<4x4x16xf32>
    %83 = vector.extract_strided_slice %80 {offsets = [0, 1, 0, 0], sizes = [4, 1, 4, 16], strides = [1, 1, 1, 1]} : vector<4x2x4x16xf32> to vector<4x1x4x16xf32>
    %84 = vector.shape_cast %83 : vector<4x1x4x16xf32> to vector<4x4x16xf32>
    %85 = arith.maximumf %82, %84 : vector<4x4x16xf32>
    %86 = vector.shape_cast %85 : vector<4x4x16xf32> to vector<16x16xf32>
    %87 = vector.extract_strided_slice %86 {offsets = [0, 0], sizes = [1, 16], strides = [1, 1]} : vector<16x16xf32> to vector<1x16xf32>
    %88 = vector.extract_strided_slice %86 {offsets = [1, 0], sizes = [1, 16], strides = [1, 1]} : vector<16x16xf32> to vector<1x16xf32>
    %89 = vector.extract_strided_slice %86 {offsets = [2, 0], sizes = [1, 16], strides = [1, 1]} : vector<16x16xf32> to vector<1x16xf32>
    %90 = vector.extract_strided_slice %86 {offsets = [3, 0], sizes = [1, 16], strides = [1, 1]} : vector<16x16xf32> to vector<1x16xf32>
    %91 = vector.extract_strided_slice %86 {offsets = [4, 0], sizes = [1, 16], strides = [1, 1]} : vector<16x16xf32> to vector<1x16xf32>
    %92 = vector.extract_strided_slice %86 {offsets = [5, 0], sizes = [1, 16], strides = [1, 1]} : vector<16x16xf32> to vector<1x16xf32>
    %93 = vector.extract_strided_slice %86 {offsets = [6, 0], sizes = [1, 16], strides = [1, 1]} : vector<16x16xf32> to vector<1x16xf32>
    %94 = vector.extract_strided_slice %86 {offsets = [7, 0], sizes = [1, 16], strides = [1, 1]} : vector<16x16xf32> to vector<1x16xf32>
    %95 = vector.extract_strided_slice %86 {offsets = [8, 0], sizes = [1, 16], strides = [1, 1]} : vector<16x16xf32> to vector<1x16xf32>
    %96 = vector.extract_strided_slice %86 {offsets = [9, 0], sizes = [1, 16], strides = [1, 1]} : vector<16x16xf32> to vector<1x16xf32>
    %97 = vector.extract_strided_slice %86 {offsets = [10, 0], sizes = [1, 16], strides = [1, 1]} : vector<16x16xf32> to vector<1x16xf32>
    %98 = vector.extract_strided_slice %86 {offsets = [11, 0], sizes = [1, 16], strides = [1, 1]} : vector<16x16xf32> to vector<1x16xf32>
    %99 = vector.extract_strided_slice %86 {offsets = [12, 0], sizes = [1, 16], strides = [1, 1]} : vector<16x16xf32> to vector<1x16xf32>
    %100 = vector.extract_strided_slice %86 {offsets = [13, 0], sizes = [1, 16], strides = [1, 1]} : vector<16x16xf32> to vector<1x16xf32>
    %101 = vector.extract_strided_slice %86 {offsets = [14, 0], sizes = [1, 16], strides = [1, 1]} : vector<16x16xf32> to vector<1x16xf32>
    %102 = vector.extract_strided_slice %86 {offsets = [15, 0], sizes = [1, 16], strides = [1, 1]} : vector<16x16xf32> to vector<1x16xf32>
    %103 = tpu.concatenate %87, %88, %89, %90, %91, %92, %93, %94, %95, %96, %97, %98, %99, %100, %101, %102 in 1 : vector<1x16xf32>, vector<1x16xf32>, vector<1x16xf32>, vector<1x16xf32>, vector<1x16xf32>, vector<1x16xf32>, vector<1x16xf32>, vector<1x16xf32>, vector<1x16xf32>, vector<1x16xf32>, vector<1x16xf32>, vector<1x16xf32>, vector<1x16xf32>, vector<1x16xf32>, vector<1x16xf32>, vector<1x16xf32> -> vector<1x256xf32>
    %c0_33 = arith.constant 0 : index
    %c0_34 = arith.constant 0 : index
    %104 = vector.load %arg6[%c0_33, %c0_34] : memref<256x10xf32, #tpu.memory_space<vmem>>, vector<256x10xf32>
    %cst_35 = arith.constant dense<0.000000e+00> : vector<1x10xf32>
    %105 = tpu.matmul %103, %104, %cst_35 {dimension_numbers = #tpu.dot_dimension_numbers<[1], [0], [0], [1], [0, 0, 1, 1], [], []>} : vector<1x256xf32>, vector<256x10xf32>, vector<1x10xf32> -> vector<1x10xf32>
    %c0_36 = arith.constant 0 : index
    %c0_37 = arith.constant 0 : index
    %106 = vector.load %arg7[%c0_36, %c0_37] : memref<1x10xf32, #tpu.memory_space<vmem>>, vector<1x10xf32>
    %107 = arith.addf %105, %106 : vector<1x10xf32>
    %108 = vector.shape_cast %107 : vector<1x10xf32> to vector<1x1x10xf32>
    %c0_38 = arith.constant 0 : index
    %c0_39 = arith.constant 0 : index
    %c0_40 = arith.constant 0 : index
    %109 = vector.load %arg8[%c0_38, %c0_39, %c0_40] : memref<1x1x10xf32, #tpu.memory_space<vmem>>, vector<1x1x10xf32>
    tpu.vector_store %arg8[%c0_38, %c0_39, %c0_40], %108 {strides = array<i32>} : memref<1x1x10xf32, #tpu.memory_space<vmem>>, vector<1x1x10xf32>,
    return
  }
  func.func @transform_0(%arg0: i32) -> (i32, i32, i32, i32) {
    %c0_i32 = arith.constant 0 : i32
    %c0_i32_0 = arith.constant 0 : i32
    %c0_i32_1 = arith.constant 0 : i32
    %c0_i32_2 = arith.constant 0 : i32
    return %arg0, %c0_i32, %c0_i32_0, %c0_i32_1 : i32, i32, i32, i32
  }
  func.func @transform_1(%arg0: i32) -> (i32, i32) {
    %c0_i32 = arith.constant 0 : i32
    %c0_i32_0 = arith.constant 0 : i32
    %c0_i32_1 = arith.constant 0 : i32
    return %c0_i32, %c0_i32_0 : i32, i32
  }
  func.func @transform_2(%arg0: i32) -> (i32, i32) {
    %c0_i32 = arith.constant 0 : i32
    %c0_i32_0 = arith.constant 0 : i32
    %c0_i32_1 = arith.constant 0 : i32
    return %c0_i32, %c0_i32_0 : i32, i32
  }
  func.func @transform_3(%arg0: i32) -> (i32, i32) {
    %c0_i32 = arith.constant 0 : i32
    %c0_i32_0 = arith.constant 0 : i32
    %c0_i32_1 = arith.constant 0 : i32
    return %c0_i32, %c0_i32_0 : i32, i32
  }
  func.func @transform_4(%arg0: i32) -> (i32, i32) {
    %c0_i32 = arith.constant 0 : i32
    %c0_i32_0 = arith.constant 0 : i32
    %c0_i32_1 = arith.constant 0 : i32
    return %c0_i32, %c0_i32_0 : i32, i32
  }
  func.func @transform_5(%arg0: i32) -> (i32, i32) {
    %c0_i32 = arith.constant 0 : i32
    %c0_i32_0 = arith.constant 0 : i32
    %c0_i32_1 = arith.constant 0 : i32
    return %c0_i32, %c0_i32_0 : i32, i32
  }
  func.func @transform_6(%arg0: i32) -> (i32, i32) {
    %c0_i32 = arith.constant 0 : i32
    %c0_i32_0 = arith.constant 0 : i32
    %c0_i32_1 = arith.constant 0 : i32
    return %c0_i32, %c0_i32_0 : i32, i32
  }
  func.func @transform_7(%arg0: i32) -> (i32, i32, i32) {
    %c0_i32 = arith.constant 0 : i32
    %c0_i32_0 = arith.constant 0 : i32
    %c0_i32_1 = arith.constant 0 : i32
    return %arg0, %c0_i32, %c0_i32_0 : i32, i32, i32
  }
}

</mosaic_0001>

<llo_original>
// kernel: custom_model_forward.1
$region0: #{custom_model_forward.1}
  #allocation0 [shape = 'u32[]', space=smem, size = 0x4, offset = 0x4, fixed_abs, tag = 'smem constant byte address 0x4 - core index']
  #allocation1 [shape = 'u32[144,128]{1,0:T(1,128)}', space=vmem, size = 0x12000, scoped, tag = 'internal scratch']
  #allocation2 [shape = 'f32[18,18,3]{2,1,0:T(8,128)}', space=vmem, size = 0x36000, scoped, tag = 'scratch operand']
  #allocation3 [shape = 'f32[10,10,8]{2,1,0:T(8,128)}', space=vmem, size = 0x14000, scoped, tag = 'scratch operand']
  %s0 = inlined_call_operand.vmem [shape: f32[2,16,16,3], index: 0, kind: input, shape index: {}]
  %s1 = inlined_call_operand.vmem [shape: f32[27,8], index: 1, kind: input, shape index: {}]
  %s2 = inlined_call_operand.vmem [shape: f32[1,8], index: 2, kind: input, shape index: {}]
  %s3 = inlined_call_operand.vmem [shape: f32[72,16], index: 3, kind: input, shape index: {}]
  %s4 = inlined_call_operand.vmem [shape: f32[1,16], index: 4, kind: input, shape index: {}]
  %s5 = inlined_call_operand.vmem [shape: f32[256,10], index: 5, kind: input, shape index: {}]
  %s6 = inlined_call_operand.vmem [shape: f32[1,10], index: 6, kind: input, shape index: {}]
  %s7 = inlined_call_operand.hbm [shape: f32[2,1,10], index: 7, kind: output, shape index: {}]
  %s8 = sld [smem:[#allocation0]]
  $region61: #{custom_model_forward.1} parent=0
    _
  %s10 = ssub.s32 1, %s8
  %s11 = scalar_select 0, %s10, %s8
  $region1: #{custom_model_forward.1} parent=0
    #allocation4 [shape = 'u8[1024]{0}', space=vmem, size = 0x400, scoped, tag = 'output window, operand 0']
    #allocation5 [shape = 's32[2]{0}', space=sflag, size = 0x8, scoped, tag = 'scoped memory for custom_model_forward.1']
    %12 = vsyncpa [#allocation5], 0
    %s13 = scalar_lea.sflag [#allocation5], 1
    %14 = vsyncpa %s13, 0
    loop: start=0, step=1, limit=4
    $region2: #{custom_model_forward.1} parent=1 // loop_pre_header
      _
    $region3: #{custom_model_forward.1} parent=1 // loop_header
      %s16 = sphi 0, %s20
      %p17 = scmp.ge.s32.totalorder %s16, 4
      %s26 = sphi 0, %s28
      %s29 = sphi 0, %s26
      %s30 = sphi 0, %s29
      %s46 = sphi 0, %s30
      %s50 = sphi 0, %s50
      %s52 = sphi 0, %s50
      %s53 = sphi 0, %s52
      %s67 = sphi 0, %s53
      %s71 = sphi 0, %s71
      %s73 = sphi 0, %s71
      %s74 = sphi 0, %s73
      %s88 = sphi 0, %s74
      %s92 = sphi 0, %s92
      %s94 = sphi 0, %s92
      %s95 = sphi 0, %s94
      %s109 = sphi 0, %s95
      %s113 = sphi 0, %s113
      %s115 = sphi 0, %s113
      %s116 = sphi 0, %s115
      %s130 = sphi 0, %s116
      %s134 = sphi 0, %s134
      %s136 = sphi 0, %s134
      %s137 = sphi 0, %s136
      %s151 = sphi 0, %s137
      %s155 = sphi 0, %s155
      %s157 = sphi 0, %s155
      %s158 = sphi 0, %s157
      %s172 = sphi 0, %s158
      %s178 = sphi 0, %s180
      %s181 = sphi 0, %s178
      %s182 = sphi 0, %s181
      %s198 = sphi 0, %s182
    $region4: #{custom_model_forward.1} parent=1 // loop_header_branch
      %19 = sbr.rel (%p17) target = $region8
    $region5: #{custom_model_forward.1} parent=1 // loop_body
      %s21 = ssub.s32 %s16, 1
      %s22 = ssub.s32 %s16, 2
      %s23 = sadd.s32 %s16, 1
      %s24 = ssub.s32 %s16, %s23
      %p25 = scmp.eq.s32.totalorder %s24, 0
      %s27 = sadd.s32 %s26, 1
      %s28 = scalar_select %p25, %s26, %s27
      %p31 = pneg %p25
      %p32 = scmp.eq.s32.totalorder %s16, 1
      %p33 = por %p31, %p32
      %p34 = scmp.ne.s32.totalorder %s26, %s29
      %p35 = scmp.eq.s32.totalorder %s16, 0
      %p36 = por %p34, %p35
      %p37 = scmp.ne.s32.totalorder %s26, %s29
      %p38 = scmp.eq.s32.totalorder %s21, 1
      %p39 = por %p37, %p38
      %p40 = scmp.ne.s32.totalorder %s29, %s30
      %p41 = scmp.eq.s32.totalorder %s21, 0
      %p42 = por %p40, %p41
      %p43 = scmp.ne.s32.totalorder %s29, %s30
      %p44 = scmp.eq.s32.totalorder %s22, 1
      %p45 = por %p43, %p44
      %p47 = scmp.ne.s32.totalorder %s30, %s46
      %p48 = scmp.eq.s32.totalorder %s22, 0
      %p49 = por %p47, %p48
      %s51 = sadd.s32 %s50, 1
      %p54 = scmp.eq.s32.totalorder %s16, 1
      %p55 = scmp.ne.s32.totalorder %s50, %s52
      %p56 = scmp.eq.s32.totalorder %s16, 0
      %p57 = por %p55, %p56
      %p58 = scmp.ne.s32.totalorder %s50, %s52
      %p59 = scmp.eq.s32.totalorder %s21, 1
      %p60 = por %p58, %p59
      %p61 = scmp.ne.s32.totalorder %s52, %s53
      %p62 = scmp.eq.s32.totalorder %s21, 0
      %p63 = por %p61, %p62
      %p64 = scmp.ne.s32.totalorder %s52, %s53
      %p65 = scmp.eq.s32.totalorder %s22, 1
      %p66 = por %p64, %p65
      %p68 = scmp.ne.s32.totalorder %s53, %s67
      %p69 = scmp.eq.s32.totalorder %s22, 0
      %p70 = por %p68, %p69
      %s72 = sadd.s32 %s71, 1
      %p75 = scmp.eq.s32.totalorder %s16, 1
      %p76 = scmp.ne.s32.totalorder %s71, %s73
      %p77 = scmp.eq.s32.totalorder %s16, 0
      %p78 = por %p76, %p77
      %p79 = scmp.ne.s32.totalorder %s71, %s73
      %p80 = scmp.eq.s32.totalorder %s21, 1
      %p81 = por %p79, %p80
      %p82 = scmp.ne.s32.totalorder %s73, %s74
      %p83 = scmp.eq.s32.totalorder %s21, 0
      %p84 = por %p82, %p83
      %p85 = scmp.ne.s32.totalorder %s73, %s74
      %p86 = scmp.eq.s32.totalorder %s22, 1
      %p87 = por %p85, %p86
      %p89 = scmp.ne.s32.totalorder %s74, %s88
      %p90 = scmp.eq.s32.totalorder %s22, 0
      %p91 = por %p89, %p90
      %s93 = sadd.s32 %s92, 1
      %p96 = scmp.eq.s32.totalorder %s16, 1
      %p97 = scmp.ne.s32.totalorder %s92, %s94
      %p98 = scmp.eq.s32.totalorder %s16, 0
      %p99 = por %p97, %p98
      %p100 = scmp.ne.s32.totalorder %s92, %s94
      %p101 = scmp.eq.s32.totalorder %s21, 1
      %p102 = por %p100, %p101
      %p103 = scmp.ne.s32.totalorder %s94, %s95
      %p104 = scmp.eq.s32.totalorder %s21, 0
      %p105 = por %p103, %p104
      %p106 = scmp.ne.s32.totalorder %s94, %s95
      %p107 = scmp.eq.s32.totalorder %s22, 1
      %p108 = por %p106, %p107
      %p110 = scmp.ne.s32.totalorder %s95, %s109
      %p111 = scmp.eq.s32.totalorder %s22, 0
      %p112 = por %p110, %p111
      %s114 = sadd.s32 %s113, 1
      %p117 = scmp.eq.s32.totalorder %s16, 1
      %p118 = scmp.ne.s32.totalorder %s113, %s115
      %p119 = scmp.eq.s32.totalorder %s16, 0
      %p120 = por %p118, %p119
      %p121 = scmp.ne.s32.totalorder %s113, %s115
      %p122 = scmp.eq.s32.totalorder %s21, 1
      %p123 = por %p121, %p122
      %p124 = scmp.ne.s32.totalorder %s115, %s116
      %p125 = scmp.eq.s32.totalorder %s21, 0
      %p126 = por %p124, %p125
      %p127 = scmp.ne.s32.totalorder %s115, %s116
      %p128 = scmp.eq.s32.totalorder %s22, 1
      %p129 = por %p127, %p128
      %p131 = scmp.ne.s32.totalorder %s116, %s130
      %p132 = scmp.eq.s32.totalorder %s22, 0
      %p133 = por %p131, %p132
      %s135 = sadd.s32 %s134, 1
      %p138 = scmp.eq.s32.totalorder %s16, 1
      %p139 = scmp.ne.s32.totalorder %s134, %s136
      %p140 = scmp.eq.s32.totalorder %s16, 0
      %p141 = por %p139, %p140
      %p142 = scmp.ne.s32.totalorder %s134, %s136
      %p143 = scmp.eq.s32.totalorder %s21, 1
      %p144 = por %p142, %p143
      %p145 = scmp.ne.s32.totalorder %s136, %s137
      %p146 = scmp.eq.s32.totalorder %s21, 0
      %p147 = por %p145, %p146
      %p148 = scmp.ne.s32.totalorder %s136, %s137
      %p149 = scmp.eq.s32.totalorder %s22, 1
      %p150 = por %p148, %p149
      %p152 = scmp.ne.s32.totalorder %s137, %s151
      %p153 = scmp.eq.s32.totalorder %s22, 0
      %p154 = por %p152, %p153
      %s156 = sadd.s32 %s155, 1
      %p159 = scmp.eq.s32.totalorder %s16, 1
      %p160 = scmp.ne.s32.totalorder %s155, %s157
      %p161 = scmp.eq.s32.totalorder %s16, 0
      %p162 = por %p160, %p161
      %p163 = scmp.ne.s32.totalorder %s155, %s157
      %p164 = scmp.eq.s32.totalorder %s21, 1
      %p165 = por %p163, %p164
      %p166 = scmp.ne.s32.totalorder %s157, %s158
      %p167 = scmp.eq.s32.totalorder %s21, 0
      %p168 = por %p166, %p167
      %p169 = scmp.ne.s32.totalorder %s157, %s158
      %p170 = scmp.eq.s32.totalorder %s22, 1
      %p171 = por %p169, %p170
      %p173 = scmp.ne.s32.totalorder %s158, %s172
      %p174 = scmp.eq.s32.totalorder %s22, 0
      %p175 = por %p173, %p174
      %s176 = ssub.s32 %s16, %s23
      %p177 = scmp.eq.s32.totalorder %s176, 0
      %s179 = sadd.s32 %s178, 1
      %s180 = scalar_select %p177, %s178, %s179
      %p183 = pneg %p177
      %p184 = scmp.eq.s32.totalorder %s16, 1
      %p185 = por %p183, %p184
      %p186 = scmp.ne.s32.totalorder %s178, %s181
      %p187 = scmp.eq.s32.totalorder %s16, 0
      %p188 = por %p186, %p187
      %p189 = scmp.ne.s32.totalorder %s178, %s181
      %p190 = scmp.eq.s32.totalorder %s21, 1
      %p191 = por %p189, %p190
      %p192 = scmp.ne.s32.totalorder %s181, %s182
      %p193 = scmp.eq.s32.totalorder %s21, 0
      %p194 = por %p192, %p193
      %p195 = scmp.ne.s32.totalorder %s181, %s182
      %p196 = scmp.eq.s32.totalorder %s22, 1
      %p197 = por %p195, %p196
      %p199 = scmp.ne.s32.totalorder %s182, %s198
      %p200 = scmp.eq.s32.totalorder %s22, 0
      %p201 = por %p199, %p200
      %p202 = scmp.le.s32.totalorder 1, %s16
      %p203 = scmp.lt.s32.totalorder %s16, 3
      %p204 = pnand %p202, %p203
      %p205 = pneg %p204
      // Predicated region
      $region9: #{custom_model_forward.1} parent=5 // pred_check
        _
      $region10: #{custom_model_forward.1} parent=5 // pred_check_branch
        %207 = sbr.rel (%p204) target = $region12
      $region11: #{custom_model_forward.1} parent=5 // pred_region
        %s208 = ssub.s32 %s16, 1
        // Predicated region
        $region13: #{custom_model_forward.1} parent=11 // pred_check
          %p209 = pneg %p63
        $region14: #{custom_model_forward.1} parent=11 // pred_check_branch
          %211 = sbr.rel (%p209) target = $region16
        $region15: #{custom_model_forward.1} parent=11 // pred_region
          _
        $region16: #{custom_model_forward.1} parent=11 // pred_fallthru
          _
        // Predicated region
        $region17: #{custom_model_forward.1} parent=11 // pred_check
          %p212 = pneg %p84
        $region18: #{custom_model_forward.1} parent=11 // pred_check_branch
          %214 = sbr.rel (%p212) target = $region20
        $region19: #{custom_model_forward.1} parent=11 // pred_region
          _
        $region20: #{custom_model_forward.1} parent=11 // pred_fallthru
          _
        // Predicated region
        $region21: #{custom_model_forward.1} parent=11 // pred_check
          %p215 = pneg %p105
        $region22: #{custom_model_forward.1} parent=11 // pred_check_branch
          %217 = sbr.rel (%p215) target = $region24
        $region23: #{custom_model_forward.1} parent=11 // pred_region
          _
        $region24: #{custom_model_forward.1} parent=11 // pred_fallthru
          _
        // Predicated region
        $region25: #{custom_model_forward.1} parent=11 // pred_check
          %p218 = pneg %p126
        $region26: #{custom_model_forward.1} parent=11 // pred_check_branch
          %220 = sbr.rel (%p218) target = $region28
        $region27: #{custom_model_forward.1} parent=11 // pred_region
          _
        $region28: #{custom_model_forward.1} parent=11 // pred_fallthru
          _
        // Predicated region
        $region29: #{custom_model_forward.1} parent=11 // pred_check
          %p221 = pneg %p147
        $region30: #{custom_model_forward.1} parent=11 // pred_check_branch
          %223 = sbr.rel (%p221) target = $region32
        $region31: #{custom_model_forward.1} parent=11 // pred_region
          _
        $region32: #{custom_model_forward.1} parent=11 // pred_fallthru
          _
        // Predicated region
        $region33: #{custom_model_forward.1} parent=11 // pred_check
          %p224 = pneg %p168
        $region34: #{custom_model_forward.1} parent=11 // pred_check_branch
          %226 = sbr.rel (%p224) target = $region36
        $region35: #{custom_model_forward.1} parent=11 // pred_region
          _
        $region36: #{custom_model_forward.1} parent=11 // pred_fallthru
          _
      $region12: #{custom_model_forward.1} parent=5 // pred_fallthru
        _
      %p227 = scmp.lt.s32.totalorder %s16, 2
      // Predicated region
      $region37: #{custom_model_forward.1} parent=5 // pred_check
        %p228 = pneg %p227
      $region38: #{custom_model_forward.1} parent=5 // pred_check_branch
        %230 = sbr.rel (%p228) target = $region40
      $region39: #{custom_model_forward.1} parent=5 // pred_region
        // Predicated region
        $region41: #{custom_model_forward.1} parent=39 // pred_check
          %p231 = pneg %p36
        $region42: #{custom_model_forward.1} parent=39 // pred_check_branch
          %233 = sbr.rel (%p231) target = $region44
        $region43: #{custom_model_forward.1} parent=39 // pred_region
          %p234 = scmp.lt.s32.totalorder %s16, 1
          %s235 = scalar_select %p234, %s16, 1
          %s236 = smul.addr %s235, 32
          %s237 = smul.addr %s236, 8
          %s238 = scalar_lea.vmem %s0, %s237
        $region44: #{custom_model_forward.1} parent=39 // pred_fallthru
          _
      $region40: #{custom_model_forward.1} parent=5 // pred_fallthru
        _
      %p239 = scmp.le.s32.totalorder 1, %s16
      %p240 = scmp.lt.s32.totalorder %s16, 3
      %p241 = pnand %p239, %p240
      %p242 = pneg %p241
      // Predicated region
      $region45: #{custom_model_forward.1} parent=5 // pred_check
        _
      $region46: #{custom_model_forward.1} parent=5 // pred_check_branch
        %244 = sbr.rel (%p241) target = $region48
      $region47: #{custom_model_forward.1} parent=5 // pred_region
        %s245 = ssub.s32 %s16, 1
        %p246 = scmp.lt.s32.totalorder %s21, 1
        %s247 = scalar_select %p246, %s21, 1
        %s248 = smul.addr %s247, 32
        %s249 = smul.addr %s248, 8
        %s250 = scalar_lea.vmem %s0, %s249
        %p251 = pneg %p42
        %p252 = pneg %p39
        %p253 = pneg %p63
        %p254 = pneg %p60
        %p255 = pneg %p84
        %p256 = pneg %p81
        %p257 = pneg %p105
        %p258 = pneg %p102
        %p259 = pneg %p126
        %p260 = pneg %p123
        %p261 = pneg %p147
        %p262 = pneg %p144
        %p263 = pneg %p168
        %p264 = pneg %p165
        %p265 = pneg %p194
        %p266 = pneg %p191
        %s267 = sand.u32 %s181, 1
        %s268 = scalar_lea.sflag [#allocation5], %s267
        %s269 = sand.u32 %s181, 1
        %s270 = scalar_lea.vmem [#allocation4], %s269
        %p271 = scmp.lt.s32.totalorder %s21, 1
        %s272 = scalar_select %p271, %s21, 1
        %s273 = smul.addr %s272, 32
        %s274 = smul.addr %s273, 8
        %s275 = scalar_lea.vmem %s0, %s274
        %vm276 = vcmask 23552
        %277 = vst.msk [vmem:[#allocation2] sm:$0xff] %vm276, 0.0
        %278 = vst.msk [vmem:[#allocation2 + $0x8] sm:$0xff] %vm276, 0.0
        %vm279 = vcmask 17408
        %280 = vst.msk [vmem:[#allocation2 + $0x10] sm:$0x3] %vm279, 0.0
        %281 = vst.msk [vmem:[#allocation2 + $0x18] sm:$0xff] %vm276, 0.0
        %282 = vst.msk [vmem:[#allocation2 + $0x20] sm:$0xff] %vm276, 0.0
        %283 = vst.msk [vmem:[#allocation2 + $0x28] sm:$0x3] %vm279, 0.0
        %284 = vst.msk [vmem:[#allocation2 + $0x30] sm:$0xff] %vm276, 0.0
        %285 = vst.msk [vmem:[#allocation2 + $0x38] sm:$0xff] %vm276, 0.0
        %286 = vst.msk [vmem:[#allocation2 + $0x40] sm:$0x3] %vm279, 0.0
        %287 = vst.msk [vmem:[#allocation2 + $0x48] sm:$0xff] %vm276, 0.0
        %288 = vst.msk [vmem:[#allocation2 + $0x50] sm:$0xff] %vm276, 0.0
        %289 = vst.msk [vmem:[#allocation2 + $0x58] sm:$0x3] %vm279, 0.0
        %290 = vst.msk [vmem:[#allocation2 + $0x60] sm:$0xff] %vm276, 0.0
        %291 = vst.msk [vmem:[#allocation2 + $0x68] sm:$0xff] %vm276, 0.0
        %292 = vst.msk [vmem:[#allocation2 + $0x70] sm:$0x3] %vm279, 0.0
        %293 = vst.msk [vmem:[#allocation2 + $0x78] sm:$0xff] %vm276, 0.0
        %294 = vst.msk [vmem:[#allocation2 + $0x80] sm:$0xff] %vm276, 0.0
        %295 = vst.msk [vmem:[#allocation2 + $0x88] sm:$0x3] %vm279, 0.0
        %296 = vst.msk [vmem:[#allocation2 + $0x90] sm:$0xff] %vm276, 0.0
        %297 = vst.msk [vmem:[#allocation2 + $0x98] sm:$0xff] %vm276, 0.0
        %298 = vst.msk [vmem:[#allocation2 + $0xa0] sm:$0x3] %vm279, 0.0
        %299 = vst.msk [vmem:[#allocation2 + $0xa8] sm:$0xff] %vm276, 0.0
        %300 = vst.msk [vmem:[#allocation2 + $0xb0] sm:$0xff] %vm276, 0.0
        %301 = vst.msk [vmem:[#allocation2 + $0xb8] sm:$0x3] %vm279, 0.0
        %302 = vst.msk [vmem:[#allocation2 + $0xc0] sm:$0xff] %vm276, 0.0
        %303 = vst.msk [vmem:[#allocation2 + $0xc8] sm:$0xff] %vm276, 0.0
        %304 = vst.msk [vmem:[#allocation2 + $0xd0] sm:$0x3] %vm279, 0.0
        %305 = vst.msk [vmem:[#allocation2 + $0xd8] sm:$0xff] %vm276, 0.0
        %306 = vst.msk [vmem:[#allocation2 + $0xe0] sm:$0xff] %vm276, 0.0
        %307 = vst.msk [vmem:[#allocation2 + $0xe8] sm:$0x3] %vm279, 0.0
        %308 = vst.msk [vmem:[#allocation2 + $0xf0] sm:$0xff] %vm276, 0.0
        %309 = vst.msk [vmem:[#allocation2 + $0xf8] sm:$0xff] %vm276, 0.0
        %310 = vst.msk [vmem:[#allocation2 + $0x100] sm:$0x3] %vm279, 0.0
        %311 = vst.msk [vmem:[#allocation2 + $0x108] sm:$0xff] %vm276, 0.0
        %312 = vst.msk [vmem:[#allocation2 + $0x110] sm:$0xff] %vm276, 0.0
        %313 = vst.msk [vmem:[#allocation2 + $0x118] sm:$0x3] %vm279, 0.0
        %314 = vst.msk [vmem:[#allocation2 + $0x120] sm:$0xff] %vm276, 0.0
        %315 = vst.msk [vmem:[#allocation2 + $0x128] sm:$0xff] %vm276, 0.0
        %316 = vst.msk [vmem:[#allocation2 + $0x130] sm:$0x3] %vm279, 0.0
        %317 = vst.msk [vmem:[#allocation2 + $0x138] sm:$0xff] %vm276, 0.0
        %318 = vst.msk [vmem:[#allocation2 + $0x140] sm:$0xff] %vm276, 0.0
        %319 = vst.msk [vmem:[#allocation2 + $0x148] sm:$0x3] %vm279, 0.0
        %320 = vst.msk [vmem:[#allocation2 + $0x150] sm:$0xff] %vm276, 0.0
        %321 = vst.msk [vmem:[#allocation2 + $0x158] sm:$0xff] %vm276, 0.0
        %322 = vst.msk [vmem:[#allocation2 + $0x160] sm:$0x3] %vm279, 0.0
        %323 = vst.msk [vmem:[#allocation2 + $0x168] sm:$0xff] %vm276, 0.0
        %324 = vst.msk [vmem:[#allocation2 + $0x170] sm:$0xff] %vm276, 0.0
        %325 = vst.msk [vmem:[#allocation2 + $0x178] sm:$0x3] %vm279, 0.0
        %326 = vst.msk [vmem:[#allocation2 + $0x180] sm:$0xff] %vm276, 0.0
        %327 = vst.msk [vmem:[#allocation2 + $0x188] sm:$0xff] %vm276, 0.0
        %328 = vst.msk [vmem:[#allocation2 + $0x190] sm:$0x3] %vm279, 0.0
        %329 = vst.msk [vmem:[#allocation2 + $0x198] sm:$0xff] %vm276, 0.0
        %330 = vst.msk [vmem:[#allocation2 + $0x1a0] sm:$0xff] %vm276, 0.0
        %331 = vst.msk [vmem:[#allocation2 + $0x1a8] sm:$0x3] %vm279, 0.0
        %v332 = vld [vmem:[%s275] sm:$0xff]
        %v333 = vld [vmem:[%s275 + $0x8] sm:$0xff]
        %v334 = vld [vmem:[%s275 + $0x10] sm:$0xff]
        %v335 = vld [vmem:[%s275 + $0x18] sm:$0xff]
        %v336 = vld [vmem:[%s275 + $0x20] sm:$0xff]
        %v337 = vld [vmem:[%s275 + $0x28] sm:$0xff]
        %v338 = vld [vmem:[%s275 + $0x30] sm:$0xff]
        %v339 = vld [vmem:[%s275 + $0x38] sm:$0xff]
        %v340 = vld [vmem:[%s275 + $0x40] sm:$0xff]
        %v341 = vld [vmem:[%s275 + $0x48] sm:$0xff]
        %v342 = vld [vmem:[%s275 + $0x50] sm:$0xff]
        %v343 = vld [vmem:[%s275 + $0x58] sm:$0xff]
        %v344 = vld [vmem:[%s275 + $0x60] sm:$0xff]
        %v345 = vld [vmem:[%s275 + $0x68] sm:$0xff]
        %v346 = vld [vmem:[%s275 + $0x70] sm:$0xff]
        %v347 = vld [vmem:[%s275 + $0x78] sm:$0xff]
        %v348 = vld [vmem:[%s275 + $0x80] sm:$0xff]
        %v349 = vld [vmem:[%s275 + $0x88] sm:$0xff]
        %v350 = vld [vmem:[%s275 + $0x90] sm:$0xff]
        %v351 = vld [vmem:[%s275 + $0x98] sm:$0xff]
        %v352 = vld [vmem:[%s275 + $0xa0] sm:$0xff]
        %v353 = vld [vmem:[%s275 + $0xa8] sm:$0xff]
        %v354 = vld [vmem:[%s275 + $0xb0] sm:$0xff]
        %v355 = vld [vmem:[%s275 + $0xb8] sm:$0xff]
        %v356 = vld [vmem:[%s275 + $0xc0] sm:$0xff]
        %v357 = vld [vmem:[%s275 + $0xc8] sm:$0xff]
        %v358 = vld [vmem:[%s275 + $0xd0] sm:$0xff]
        %v359 = vld [vmem:[%s275 + $0xd8] sm:$0xff]
        %v360 = vld [vmem:[%s275 + $0xe0] sm:$0xff]
        %v361 = vld [vmem:[%s275 + $0xe8] sm:$0xff]
        %v362 = vld [vmem:[%s275 + $0xf0] sm:$0xff]
        %v363 = vld [vmem:[%s275 + $0xf8] sm:$0xff]
        %s364 = scalar_lea.vmem [#allocation2], 24
        %365 = vst.msk [vmem:[%s364 + $0x1] sm:$0xff] %vm276, %v332
        %366 = vst.msk [vmem:[%s364 + $0x9] sm:$0xff] %vm276, %v333
        %367 = vst.msk [vmem:[%s364 + $0x19] sm:$0xff] %vm276, %v334
        %368 = vst.msk [vmem:[%s364 + $0x21] sm:$0xff] %vm276, %v335
        %369 = vst.msk [vmem:[%s364 + $0x31] sm:$0xff] %vm276, %v336
        %370 = vst.msk [vmem:[%s364 + $0x39] sm:$0xff] %vm276, %v337
        %371 = vst.msk [vmem:[%s364 + $0x49] sm:$0xff] %vm276, %v338
        %372 = vst.msk [vmem:[%s364 + $0x51] sm:$0xff] %vm276, %v339
        %373 = vst.msk [vmem:[%s364 + $0x61] sm:$0xff] %vm276, %v340
        %374 = vst.msk [vmem:[%s364 + $0x69] sm:$0xff] %vm276, %v341
        %375 = vst.msk [vmem:[%s364 + $0x79] sm:$0xff] %vm276, %v342
        %376 = vst.msk [vmem:[%s364 + $0x81] sm:$0xff] %vm276, %v343
        %377 = vst.msk [vmem:[%s364 + $0x91] sm:$0xff] %vm276, %v344
        %378 = vst.msk [vmem:[%s364 + $0x99] sm:$0xff] %vm276, %v345
        %379 = vst.msk [vmem:[%s364 + $0xa9] sm:$0xff] %vm276, %v346
        %380 = vst.msk [vmem:[%s364 + $0xb1] sm:$0xff] %vm276, %v347
        %381 = vst.msk [vmem:[%s364 + $0xc1] sm:$0xff] %vm276, %v348
        %382 = vst.msk [vmem:[%s364 + $0xc9] sm:$0xff] %vm276, %v349
        %383 = vst.msk [vmem:[%s364 + $0xd9] sm:$0xff] %vm276, %v350
        %384 = vst.msk [vmem:[%s364 + $0xe1] sm:$0xff] %vm276, %v351
        %385 = vst.msk [vmem:[%s364 + $0xf1] sm:$0xff] %vm276, %v352
        %386 = vst.msk [vmem:[%s364 + $0xf9] sm:$0xff] %vm276, %v353
        %387 = vst.msk [vmem:[%s364 + $0x109] sm:$0xff] %vm276, %v354
        %388 = vst.msk [vmem:[%s364 + $0x111] sm:$0xff] %vm276, %v355
        %389 = vst.msk [vmem:[%s364 + $0x121] sm:$0xff] %vm276, %v356
        %390 = vst.msk [vmem:[%s364 + $0x129] sm:$0xff] %vm276, %v357
        %391 = vst.msk [vmem:[%s364 + $0x139] sm:$0xff] %vm276, %v358
        %392 = vst.msk [vmem:[%s364 + $0x141] sm:$0xff] %vm276, %v359
        %393 = vst.msk [vmem:[%s364 + $0x151] sm:$0xff] %vm276, %v360
        %394 = vst.msk [vmem:[%s364 + $0x159] sm:$0xff] %vm276, %v361
        %395 = vst.msk [vmem:[%s364 + $0x169] sm:$0xff] %vm276, %v362
        %396 = vst.msk [vmem:[%s364 + $0x171] sm:$0xff] %vm276, %v363
        %v397 = vld [vmem:[#allocation2] sm:$0xff]
        %v398 = vld [vmem:[#allocation2 + $0x8] sm:$0xff]
        %v399 = vld [vmem:[#allocation2 + $0x10] sm:$0x3]
        %v400 = vld [vmem:[#allocation2 + $0x18] sm:$0xff]
        %v401 = vld [vmem:[#allocation2 + $0x20] sm:$0xff]
        %v402 = vld [vmem:[#allocation2 + $0x28] sm:$0x3]
        %v403 = vld [vmem:[#allocation2 + $0x30] sm:$0xff]
        %v404 = vld [vmem:[#allocation2 + $0x38] sm:$0xff]
        %v405 = vld [vmem:[#allocation2 + $0x40] sm:$0x3]
        %v406 = vld [vmem:[#allocation2 + $0x48] sm:$0xff]
        %v407 = vld [vmem:[#allocation2 + $0x50] sm:$0xff]
        %v408 = vld [vmem:[#allocation2 + $0x58] sm:$0x3]
        %v409 = vld [vmem:[#allocation2 + $0x60] sm:$0xff]
        %v410 = vld [vmem:[#allocation2 + $0x68] sm:$0xff]
        %v411 = vld [vmem:[#allocation2 + $0x70] sm:$0x3]
        %v412 = vld [vmem:[#allocation2 + $0x78] sm:$0xff]
        %v413 = vld [vmem:[#allocation2 + $0x80] sm:$0xff]
        %v414 = vld [vmem:[#allocation2 + $0x88] sm:$0x3]
        %v415 = vld [vmem:[#allocation2 + $0x90] sm:$0xff]
        %v416 = vld [vmem:[#allocation2 + $0x98] sm:$0xff]
        %v417 = vld [vmem:[#allocation2 + $0xa0] sm:$0x3]
        %v418 = vld [vmem:[#allocation2 + $0xa8] sm:$0xff]
        %v419 = vld [vmem:[#allocation2 + $0xb0] sm:$0xff]
        %v420 = vld [vmem:[#allocation2 + $0xb8] sm:$0x3]
        %v421 = vld [vmem:[#allocation2 + $0xc0] sm:$0xff]
        %v422 = vld [vmem:[#allocation2 + $0xc8] sm:$0xff]
        %v423 = vld [vmem:[#allocation2 + $0xd0] sm:$0x3]
        %v424 = vld [vmem:[#allocation2 + $0xd8] sm:$0xff]
        %v425 = vld [vmem:[#allocation2 + $0xe0] sm:$0xff]
        %v426 = vld [vmem:[#allocation2 + $0xe8] sm:$0x3]
        %v427 = vld [vmem:[#allocation2 + $0xf0] sm:$0xff]
        %v428 = vld [vmem:[#allocation2 + $0xf8] sm:$0xff]
        %v429 = vld [vmem:[#allocation2 + $0x100] sm:$0x3]
        %v430 = vld [vmem:[#allocation2 + $0x108] sm:$0xff]
        %v431 = vld [vmem:[#allocation2 + $0x110] sm:$0xff]
        %v432 = vld [vmem:[#allocation2 + $0x118] sm:$0x3]
        %v433 = vld [vmem:[#allocation2 + $0x120] sm:$0xff]
        %v434 = vld [vmem:[#allocation2 + $0x128] sm:$0xff]
        %v435 = vld [vmem:[#allocation2 + $0x130] sm:$0x3]
        %v436 = vld [vmem:[#allocation2 + $0x138] sm:$0xff]
        %v437 = vld [vmem:[#allocation2 + $0x140] sm:$0xff]
        %v438 = vld [vmem:[#allocation2 + $0x148] sm:$0x3]
        %v439 = vld [vmem:[#allocation2 + $0x150] sm:$0xff]
        %v440 = vld [vmem:[#allocation2 + $0x158] sm:$0xff]
        %v441 = vld [vmem:[#allocation2 + $0x160] sm:$0x3]
        %v442 = vld [vmem:[#allocation2 + $0x168] sm:$0xff]
        %v443 = vld [vmem:[#allocation2 + $0x170] sm:$0xff]
        %v444 = vld [vmem:[#allocation2 + $0x178] sm:$0x3]
        %v445 = vld [vmem:[#allocation2 + $0x180] sm:$0xff]
        %v446 = vld [vmem:[#allocation2 + $0x188] sm:$0xff]
        %v447 = vld [vmem:[#allocation2 + $0x190] sm:$0x3]
        %v448 = vld [vmem:[#allocation2 + $0x198] sm:$0xff]
        %v449 = vld [vmem:[#allocation2 + $0x1a0] sm:$0xff]
        %v450 = vld [vmem:[#allocation2 + $0x1a8] sm:$0x3]
        %v451 = vld [vmem:[%s1] sm:$0xff]
        %v452 = vld [vmem:[%s1 + $0x8] sm:$0xff]
        %v453 = vld [vmem:[%s1 + $0x10] sm:$0xff]
        %v454 = vld [vmem:[%s1 + $0x18] sm:$0x7]
        %v455 = vld [vmem:[%s2] sm:$0x1]
        %vm504 = vcmask 1046528
        %v505 = vrot.slane %v397, 1
        %v506 = vrot.slane %v398, 1
        %v507 = vsel %vm504, %v505, %v506
        %v508 = vrot.slane %v399, 1
        %v509 = vsel %vm504, %v506, %v508
        %v510 = vrot.slane %v400, 1
        %v511 = vrot.slane %v401, 1
        %v512 = vsel %vm504, %v510, %v511
        %v513 = vrot.slane %v402, 1
        %v514 = vsel %vm504, %v511, %v513
        %v515 = vrot.slane %v403, 1
        %v516 = vrot.slane %v404, 1
        %v517 = vsel %vm504, %v515, %v516
        %v518 = vrot.slane %v405, 1
        %v519 = vsel %vm504, %v516, %v518
        %v520 = vrot.slane %v406, 1
        %v521 = vrot.slane %v407, 1
        %v522 = vsel %vm504, %v520, %v521
        %v523 = vrot.slane %v408, 1
        %v524 = vsel %vm504, %v521, %v523
        %v525 = vrot.slane %v409, 1
        %v526 = vrot.slane %v410, 1
        %v527 = vsel %vm504, %v525, %v526
        %v528 = vrot.slane %v411, 1
        %v529 = vsel %vm504, %v526, %v528
        %v530 = vrot.slane %v412, 1
        %v531 = vrot.slane %v413, 1
        %v532 = vsel %vm504, %v530, %v531
        %v533 = vrot.slane %v414, 1
        %v534 = vsel %vm504, %v531, %v533
        %v535 = vrot.slane %v415, 1
        %v536 = vrot.slane %v416, 1
        %v537 = vsel %vm504, %v535, %v536
        %v538 = vrot.slane %v417, 1
        %v539 = vsel %vm504, %v536, %v538
        %v540 = vrot.slane %v418, 1
        %v541 = vrot.slane %v419, 1
        %v542 = vsel %vm504, %v540, %v541
        %v543 = vrot.slane %v420, 1
        %v544 = vsel %vm504, %v541, %v543
        %v545 = vrot.slane %v421, 1
        %v546 = vrot.slane %v422, 1
        %v547 = vsel %vm504, %v545, %v546
        %v548 = vrot.slane %v423, 1
        %v549 = vsel %vm504, %v546, %v548
        %v550 = vrot.slane %v424, 1
        %v551 = vrot.slane %v425, 1
        %v552 = vsel %vm504, %v550, %v551
        %v553 = vrot.slane %v426, 1
        %v554 = vsel %vm504, %v551, %v553
        %v555 = vrot.slane %v427, 1
        %v556 = vrot.slane %v428, 1
        %v557 = vsel %vm504, %v555, %v556
        %v558 = vrot.slane %v429, 1
        %v559 = vsel %vm504, %v556, %v558
        %v560 = vrot.slane %v430, 1
        %v561 = vrot.slane %v431, 1
        %v562 = vsel %vm504, %v560, %v561
        %v563 = vrot.slane %v432, 1
        %v564 = vsel %vm504, %v561, %v563
        %v565 = vrot.slane %v433, 1
        %v566 = vrot.slane %v434, 1
        %v567 = vsel %vm504, %v565, %v566
        %v568 = vrot.slane %v435, 1
        %v569 = vsel %vm504, %v566, %v568
        %v570 = vrot.slane %v436, 1
        %v571 = vrot.slane %v437, 1
        %v572 = vsel %vm504, %v570, %v571
        %v573 = vrot.slane %v438, 1
        %v574 = vsel %vm504, %v571, %v573
        %v575 = vrot.slane %v439, 1
        %v576 = vrot.slane %v440, 1
        %v577 = vsel %vm504, %v575, %v576
        %v578 = vrot.slane %v441, 1
        %v579 = vsel %vm504, %v576, %v578
        %v580 = vrot.slane %v442, 1
        %v581 = vrot.slane %v443, 1
        %v582 = vsel %vm504, %v580, %v581
        %v583 = vrot.slane %v444, 1
        %v584 = vsel %vm504, %v581, %v583
        %vm585 = vcmask 1045504
        %v586 = vrot.slane %v397, 2
        %v587 = vrot.slane %v398, 2
        %v588 = vsel %vm585, %v586, %v587
        %v589 = vrot.slane %v399, 2
        %v590 = vsel %vm585, %v587, %v589
        %v591 = vrot.slane %v400, 2
        %v592 = vrot.slane %v401, 2
        %v593 = vsel %vm585, %v591, %v592
        %v594 = vrot.slane %v402, 2
        %v595 = vsel %vm585, %v592, %v594
        %v596 = vrot.slane %v403, 2
        %v597 = vrot.slane %v404, 2
        %v598 = vsel %vm585, %v596, %v597
        %v599 = vrot.slane %v405, 2
        %v600 = vsel %vm585, %v597, %v599
        %v601 = vrot.slane %v406, 2
        %v602 = vrot.slane %v407, 2
        %v603 = vsel %vm585, %v601, %v602
        %v604 = vrot.slane %v408, 2
        %v605 = vsel %vm585, %v602, %v604
        %v606 = vrot.slane %v409, 2
        %v607 = vrot.slane %v410, 2
        %v608 = vsel %vm585, %v606, %v607
        %v609 = vrot.slane %v411, 2
        %v610 = vsel %vm585, %v607, %v609
        %v611 = vrot.slane %v412, 2
        %v612 = vrot.slane %v413, 2
        %v613 = vsel %vm585, %v611, %v612
        %v614 = vrot.slane %v414, 2
        %v615 = vsel %vm585, %v612, %v614
        %v616 = vrot.slane %v415, 2
        %v617 = vrot.slane %v416, 2
        %v618 = vsel %vm585, %v616, %v617
        %v619 = vrot.slane %v417, 2
        %v620 = vsel %vm585, %v617, %v619
        %v621 = vrot.slane %v418, 2
        %v622 = vrot.slane %v419, 2
        %v623 = vsel %vm585, %v621, %v622
        %v624 = vrot.slane %v420, 2
        %v625 = vsel %vm585, %v622, %v624
        %v626 = vrot.slane %v421, 2
        %v627 = vrot.slane %v422, 2
        %v628 = vsel %vm585, %v626, %v627
        %v629 = vrot.slane %v423, 2
        %v630 = vsel %vm585, %v627, %v629
        %v631 = vrot.slane %v424, 2
        %v632 = vrot.slane %v425, 2
        %v633 = vsel %vm585, %v631, %v632
        %v634 = vrot.slane %v426, 2
        %v635 = vsel %vm585, %v632, %v634
        %v636 = vrot.slane %v427, 2
        %v637 = vrot.slane %v428, 2
        %v638 = vsel %vm585, %v636, %v637
        %v639 = vrot.slane %v429, 2
        %v640 = vsel %vm585, %v637, %v639
        %v641 = vrot.slane %v430, 2
        %v642 = vrot.slane %v431, 2
        %v643 = vsel %vm585, %v641, %v642
        %v644 = vrot.slane %v432, 2
        %v645 = vsel %vm585, %v642, %v644
        %v646 = vrot.slane %v433, 2
        %v647 = vrot.slane %v434, 2
        %v648 = vsel %vm585, %v646, %v647
        %v649 = vrot.slane %v435, 2
        %v650 = vsel %vm585, %v647, %v649
        %v651 = vrot.slane %v436, 2
        %v652 = vrot.slane %v437, 2
        %v653 = vsel %vm585, %v651, %v652
        %v654 = vrot.slane %v438, 2
        %v655 = vsel %vm585, %v652, %v654
        %v656 = vrot.slane %v439, 2
        %v657 = vrot.slane %v440, 2
        %v658 = vsel %vm585, %v656, %v657
        %v659 = vrot.slane %v441, 2
        %v660 = vsel %vm585, %v657, %v659
        %v661 = vrot.slane %v442, 2
        %v662 = vrot.slane %v443, 2
        %v663 = vsel %vm585, %v661, %v662
        %v664 = vrot.slane %v444, 2
        %v665 = vsel %vm585, %v662, %v664
        %v669 = vrot.slane %v445, 1
        %v670 = vrot.slane %v446, 1
        %v671 = vsel %vm504, %v669, %v670
        %v672 = vrot.slane %v447, 1
        %v673 = vsel %vm504, %v670, %v672
        %v674 = vrot.slane %v445, 2
        %v675 = vrot.slane %v446, 2
        %v676 = vsel %vm585, %v674, %v675
        %v677 = vrot.slane %v447, 2
        %v678 = vsel %vm585, %v675, %v677
        %v682 = vrot.slane %v448, 1
        %v683 = vrot.slane %v449, 1
        %v684 = vsel %vm504, %v682, %v683
        %v685 = vrot.slane %v450, 1
        %v686 = vsel %vm504, %v683, %v685
        %v687 = vrot.slane %v448, 2
        %v688 = vrot.slane %v449, 2
        %v689 = vsel %vm585, %v687, %v688
        %v690 = vrot.slane %v450, 2
        %v691 = vsel %vm585, %v688, %v690
        %692 = vrot.lane.b32.xlu0 %v507, 3
        %v693 = vpop.permute.xlu0 %692
        %694 = vrot.lane.b32.xlu0 %v509, 3
        %v695 = vpop.permute.xlu0 %694
        %696 = vrot.lane.b32.xlu0 %v512, 3
        %v697 = vpop.permute.xlu0 %696
        %698 = vrot.lane.b32.xlu0 %v514, 3
        %v699 = vpop.permute.xlu0 %698
        %700 = vrot.lane.b32.xlu0 %v517, 3
        %v701 = vpop.permute.xlu0 %700
        %702 = vrot.lane.b32.xlu0 %v519, 3
        %v703 = vpop.permute.xlu0 %702
        %704 = vrot.lane.b32.xlu0 %v522, 3
        %v705 = vpop.permute.xlu0 %704
        %706 = vrot.lane.b32.xlu0 %v524, 3
        %v707 = vpop.permute.xlu0 %706
        %708 = vrot.lane.b32.xlu0 %v527, 3
        %v709 = vpop.permute.xlu0 %708
        %710 = vrot.lane.b32.xlu0 %v529, 3
        %v711 = vpop.permute.xlu0 %710
        %712 = vrot.lane.b32.xlu0 %v532, 3
        %v713 = vpop.permute.xlu0 %712
        %714 = vrot.lane.b32.xlu0 %v534, 3
        %v715 = vpop.permute.xlu0 %714
        %716 = vrot.lane.b32.xlu0 %v537, 3
        %v717 = vpop.permute.xlu0 %716
        %718 = vrot.lane.b32.xlu0 %v539, 3
        %v719 = vpop.permute.xlu0 %718
        %720 = vrot.lane.b32.xlu0 %v542, 3
        %v721 = vpop.permute.xlu0 %720
        %722 = vrot.lane.b32.xlu0 %v544, 3
        %v723 = vpop.permute.xlu0 %722
        %724 = vrot.lane.b32.xlu0 %v547, 3
        %v725 = vpop.permute.xlu0 %724
        %726 = vrot.lane.b32.xlu0 %v549, 3
        %v727 = vpop.permute.xlu0 %726
        %728 = vrot.lane.b32.xlu0 %v552, 3
        %v729 = vpop.permute.xlu0 %728
        %730 = vrot.lane.b32.xlu0 %v554, 3
        %v731 = vpop.permute.xlu0 %730
        %732 = vrot.lane.b32.xlu0 %v557, 3
        %v733 = vpop.permute.xlu0 %732
        %734 = vrot.lane.b32.xlu0 %v559, 3
        %v735 = vpop.permute.xlu0 %734
        %736 = vrot.lane.b32.xlu0 %v562, 3
        %v737 = vpop.permute.xlu0 %736
        %738 = vrot.lane.b32.xlu0 %v564, 3
        %v739 = vpop.permute.xlu0 %738
        %740 = vrot.lane.b32.xlu0 %v567, 3
        %v741 = vpop.permute.xlu0 %740
        %742 = vrot.lane.b32.xlu0 %v569, 3
        %v743 = vpop.permute.xlu0 %742
        %744 = vrot.lane.b32.xlu0 %v572, 3
        %v745 = vpop.permute.xlu0 %744
        %746 = vrot.lane.b32.xlu0 %v574, 3
        %v747 = vpop.permute.xlu0 %746
        %748 = vrot.lane.b32.xlu0 %v577, 3
        %v749 = vpop.permute.xlu0 %748
        %750 = vrot.lane.b32.xlu0 %v579, 3
        %v751 = vpop.permute.xlu0 %750
        %752 = vrot.lane.b32.xlu0 %v582, 3
        %v753 = vpop.permute.xlu0 %752
        %754 = vrot.lane.b32.xlu0 %v584, 3
        %v755 = vpop.permute.xlu0 %754
        %788 = vrot.lane.b32.xlu0 %v588, 6
        %v789 = vpop.permute.xlu0 %788
        %790 = vrot.lane.b32.xlu0 %v590, 6
        %v791 = vpop.permute.xlu0 %790
        %792 = vrot.lane.b32.xlu0 %v593, 6
        %v793 = vpop.permute.xlu0 %792
        %794 = vrot.lane.b32.xlu0 %v595, 6
        %v795 = vpop.permute.xlu0 %794
        %796 = vrot.lane.b32.xlu0 %v598, 6
        %v797 = vpop.permute.xlu0 %796
        %798 = vrot.lane.b32.xlu0 %v600, 6
        %v799 = vpop.permute.xlu0 %798
        %800 = vrot.lane.b32.xlu0 %v603, 6
        %v801 = vpop.permute.xlu0 %800
        %802 = vrot.lane.b32.xlu0 %v605, 6
        %v803 = vpop.permute.xlu0 %802
        %804 = vrot.lane.b32.xlu0 %v608, 6
        %v805 = vpop.permute.xlu0 %804
        %806 = vrot.lane.b32.xlu0 %v610, 6
        %v807 = vpop.permute.xlu0 %806
        %808 = vrot.lane.b32.xlu0 %v613, 6
        %v809 = vpop.permute.xlu0 %808
        %810 = vrot.lane.b32.xlu0 %v615, 6
        %v811 = vpop.permute.xlu0 %810
        %812 = vrot.lane.b32.xlu0 %v618, 6
        %v813 = vpop.permute.xlu0 %812
        %814 = vrot.lane.b32.xlu0 %v620, 6
        %v815 = vpop.permute.xlu0 %814
        %816 = vrot.lane.b32.xlu0 %v623, 6
        %v817 = vpop.permute.xlu0 %816
        %818 = vrot.lane.b32.xlu0 %v625, 6
        %v819 = vpop.permute.xlu0 %818
        %820 = vrot.lane.b32.xlu0 %v628, 6
        %v821 = vpop.permute.xlu0 %820
        %822 = vrot.lane.b32.xlu0 %v630, 6
        %v823 = vpop.permute.xlu0 %822
        %824 = vrot.lane.b32.xlu0 %v633, 6
        %v825 = vpop.permute.xlu0 %824
        %826 = vrot.lane.b32.xlu0 %v635, 6
        %v827 = vpop.permute.xlu0 %826
        %828 = vrot.lane.b32.xlu0 %v638, 6
        %v829 = vpop.permute.xlu0 %828
        %830 = vrot.lane.b32.xlu0 %v640, 6
        %v831 = vpop.permute.xlu0 %830
        %832 = vrot.lane.b32.xlu0 %v643, 6
        %v833 = vpop.permute.xlu0 %832
        %834 = vrot.lane.b32.xlu0 %v645, 6
        %v835 = vpop.permute.xlu0 %834
        %836 = vrot.lane.b32.xlu0 %v648, 6
        %v837 = vpop.permute.xlu0 %836
        %838 = vrot.lane.b32.xlu0 %v650, 6
        %v839 = vpop.permute.xlu0 %838
        %840 = vrot.lane.b32.xlu0 %v653, 6
        %v841 = vpop.permute.xlu0 %840
        %842 = vrot.lane.b32.xlu0 %v655, 6
        %v843 = vpop.permute.xlu0 %842
        %844 = vrot.lane.b32.xlu0 %v658, 6
        %v845 = vpop.permute.xlu0 %844
        %846 = vrot.lane.b32.xlu0 %v660, 6
        %v847 = vpop.permute.xlu0 %846
        %848 = vrot.lane.b32.xlu0 %v663, 6
        %v849 = vpop.permute.xlu0 %848
        %850 = vrot.lane.b32.xlu0 %v665, 6
        %v851 = vpop.permute.xlu0 %850
        %884 = vrot.lane.b32.xlu0 %v400, 9
        %v885 = vpop.permute.xlu0 %884
        %886 = vrot.lane.b32.xlu0 %v401, 9
        %v887 = vpop.permute.xlu0 %886
        %888 = vrot.lane.b32.xlu0 %v403, 9
        %v889 = vpop.permute.xlu0 %888
        %890 = vrot.lane.b32.xlu0 %v404, 9
        %v891 = vpop.permute.xlu0 %890
        %892 = vrot.lane.b32.xlu0 %v406, 9
        %v893 = vpop.permute.xlu0 %892
        %894 = vrot.lane.b32.xlu0 %v407, 9
        %v895 = vpop.permute.xlu0 %894
        %896 = vrot.lane.b32.xlu0 %v409, 9
        %v897 = vpop.permute.xlu0 %896
        %898 = vrot.lane.b32.xlu0 %v410, 9
        %v899 = vpop.permute.xlu0 %898
        %900 = vrot.lane.b32.xlu0 %v412, 9
        %v901 = vpop.permute.xlu0 %900
        %902 = vrot.lane.b32.xlu0 %v413, 9
        %v903 = vpop.permute.xlu0 %902
        %904 = vrot.lane.b32.xlu0 %v415, 9
        %v905 = vpop.permute.xlu0 %904
        %906 = vrot.lane.b32.xlu0 %v416, 9
        %v907 = vpop.permute.xlu0 %906
        %908 = vrot.lane.b32.xlu0 %v418, 9
        %v909 = vpop.permute.xlu0 %908
        %910 = vrot.lane.b32.xlu0 %v419, 9
        %v911 = vpop.permute.xlu0 %910
        %912 = vrot.lane.b32.xlu0 %v421, 9
        %v913 = vpop.permute.xlu0 %912
        %914 = vrot.lane.b32.xlu0 %v422, 9
        %v915 = vpop.permute.xlu0 %914
        %916 = vrot.lane.b32.xlu0 %v424, 9
        %v917 = vpop.permute.xlu0 %916
        %918 = vrot.lane.b32.xlu0 %v425, 9
        %v919 = vpop.permute.xlu0 %918
        %920 = vrot.lane.b32.xlu0 %v427, 9
        %v921 = vpop.permute.xlu0 %920
        %922 = vrot.lane.b32.xlu0 %v428, 9
        %v923 = vpop.permute.xlu0 %922
        %924 = vrot.lane.b32.xlu0 %v430, 9
        %v925 = vpop.permute.xlu0 %924
        %926 = vrot.lane.b32.xlu0 %v431, 9
        %v927 = vpop.permute.xlu0 %926
        %928 = vrot.lane.b32.xlu0 %v433, 9
        %v929 = vpop.permute.xlu0 %928
        %930 = vrot.lane.b32.xlu0 %v434, 9
        %v931 = vpop.permute.xlu0 %930
        %932 = vrot.lane.b32.xlu0 %v436, 9
        %v933 = vpop.permute.xlu0 %932
        %934 = vrot.lane.b32.xlu0 %v437, 9
        %v935 = vpop.permute.xlu0 %934
        %936 = vrot.lane.b32.xlu0 %v439, 9
        %v937 = vpop.permute.xlu0 %936
        %938 = vrot.lane.b32.xlu0 %v440, 9
        %v939 = vpop.permute.xlu0 %938
        %940 = vrot.lane.b32.xlu0 %v442, 9
        %v941 = vpop.permute.xlu0 %940
        %942 = vrot.lane.b32.xlu0 %v443, 9
        %v943 = vpop.permute.xlu0 %942
        %944 = vrot.lane.b32.xlu0 %v445, 9
        %v945 = vpop.permute.xlu0 %944
        %946 = vrot.lane.b32.xlu0 %v446, 9
        %v947 = vpop.permute.xlu0 %946
        %980 = vrot.lane.b32.xlu0 %v512, 12
        %v981 = vpop.permute.xlu0 %980
        %982 = vrot.lane.b32.xlu0 %v514, 12
        %v983 = vpop.permute.xlu0 %982
        %984 = vrot.lane.b32.xlu0 %v517, 12
        %v985 = vpop.permute.xlu0 %984
        %986 = vrot.lane.b32.xlu0 %v519, 12
        %v987 = vpop.permute.xlu0 %986
        %988 = vrot.lane.b32.xlu0 %v522, 12
        %v989 = vpop.permute.xlu0 %988
        %990 = vrot.lane.b32.xlu0 %v524, 12
        %v991 = vpop.permute.xlu0 %990
        %992 = vrot.lane.b32.xlu0 %v527, 12
        %v993 = vpop.permute.xlu0 %992
        %994 = vrot.lane.b32.xlu0 %v529, 12
        %v995 = vpop.permute.xlu0 %994
        %996 = vrot.lane.b32.xlu0 %v532, 12
        %v997 = vpop.permute.xlu0 %996
        %998 = vrot.lane.b32.xlu0 %v534, 12
        %v999 = vpop.permute.xlu0 %998
        %1000 = vrot.lane.b32.xlu0 %v537, 12
        %v1001 = vpop.permute.xlu0 %1000
        %1002 = vrot.lane.b32.xlu0 %v539, 12
        %v1003 = vpop.permute.xlu0 %1002
        %1004 = vrot.lane.b32.xlu0 %v542, 12
        %v1005 = vpop.permute.xlu0 %1004
        %1006 = vrot.lane.b32.xlu0 %v544, 12
        %v1007 = vpop.permute.xlu0 %1006
        %1008 = vrot.lane.b32.xlu0 %v547, 12
        %v1009 = vpop.permute.xlu0 %1008
        %1010 = vrot.lane.b32.xlu0 %v549, 12
        %v1011 = vpop.permute.xlu0 %1010
        %1012 = vrot.lane.b32.xlu0 %v552, 12
        %v1013 = vpop.permute.xlu0 %1012
        %1014 = vrot.lane.b32.xlu0 %v554, 12
        %v1015 = vpop.permute.xlu0 %1014
        %1016 = vrot.lane.b32.xlu0 %v557, 12
        %v1017 = vpop.permute.xlu0 %1016
        %1018 = vrot.lane.b32.xlu0 %v559, 12
        %v1019 = vpop.permute.xlu0 %1018
        %1020 = vrot.lane.b32.xlu0 %v562, 12
        %v1021 = vpop.permute.xlu0 %1020
        %1022 = vrot.lane.b32.xlu0 %v564, 12
        %v1023 = vpop.permute.xlu0 %1022
        %1024 = vrot.lane.b32.xlu0 %v567, 12
        %v1025 = vpop.permute.xlu0 %1024
        %1026 = vrot.lane.b32.xlu0 %v569, 12
        %v1027 = vpop.permute.xlu0 %1026
        %1028 = vrot.lane.b32.xlu0 %v572, 12
        %v1029 = vpop.permute.xlu0 %1028
        %1030 = vrot.lane.b32.xlu0 %v574, 12
        %v1031 = vpop.permute.xlu0 %1030
        %1032 = vrot.lane.b32.xlu0 %v577, 12
        %v1033 = vpop.permute.xlu0 %1032
        %1034 = vrot.lane.b32.xlu0 %v579, 12
        %v1035 = vpop.permute.xlu0 %1034
        %1036 = vrot.lane.b32.xlu0 %v582, 12
        %v1037 = vpop.permute.xlu0 %1036
        %1038 = vrot.lane.b32.xlu0 %v584, 12
        %v1039 = vpop.permute.xlu0 %1038
        %1040 = vrot.lane.b32.xlu0 %v671, 12
        %v1041 = vpop.permute.xlu0 %1040
        %1042 = vrot.lane.b32.xlu0 %v673, 12
        %v1043 = vpop.permute.xlu0 %1042
        %1076 = vrot.lane.b32.xlu0 %v593, 15
        %v1077 = vpop.permute.xlu0 %1076
        %1078 = vrot.lane.b32.xlu0 %v595, 15
        %v1079 = vpop.permute.xlu0 %1078
        %1080 = vrot.lane.b32.xlu0 %v598, 15
        %v1081 = vpop.permute.xlu0 %1080
        %1082 = vrot.lane.b32.xlu0 %v600, 15
        %v1083 = vpop.permute.xlu0 %1082
        %1084 = vrot.lane.b32.xlu0 %v603, 15
        %v1085 = vpop.permute.xlu0 %1084
        %1086 = vrot.lane.b32.xlu0 %v605, 15
        %v1087 = vpop.permute.xlu0 %1086
        %1088 = vrot.lane.b32.xlu0 %v608, 15
        %v1089 = vpop.permute.xlu0 %1088
        %1090 = vrot.lane.b32.xlu0 %v610, 15
        %v1091 = vpop.permute.xlu0 %1090
        %1092 = vrot.lane.b32.xlu0 %v613, 15
        %v1093 = vpop.permute.xlu0 %1092
        %1094 = vrot.lane.b32.xlu0 %v615, 15
        %v1095 = vpop.permute.xlu0 %1094
        %1096 = vrot.lane.b32.xlu0 %v618, 15
        %v1097 = vpop.permute.xlu0 %1096
        %1098 = vrot.lane.b32.xlu0 %v620, 15
        %v1099 = vpop.permute.xlu0 %1098
        %1100 = vrot.lane.b32.xlu0 %v623, 15
        %v1101 = vpop.permute.xlu0 %1100
        %1102 = vrot.lane.b32.xlu0 %v625, 15
        %v1103 = vpop.permute.xlu0 %1102
        %1104 = vrot.lane.b32.xlu0 %v628, 15
        %v1105 = vpop.permute.xlu0 %1104
        %1106 = vrot.lane.b32.xlu0 %v630, 15
        %v1107 = vpop.permute.xlu0 %1106
        %1108 = vrot.lane.b32.xlu0 %v633, 15
        %v1109 = vpop.permute.xlu0 %1108
        %1110 = vrot.lane.b32.xlu0 %v635, 15
        %v1111 = vpop.permute.xlu0 %1110
        %1112 = vrot.lane.b32.xlu0 %v638, 15
        %v1113 = vpop.permute.xlu0 %1112
        %1114 = vrot.lane.b32.xlu0 %v640, 15
        %v1115 = vpop.permute.xlu0 %1114
        %1116 = vrot.lane.b32.xlu0 %v643, 15
        %v1117 = vpop.permute.xlu0 %1116
        %1118 = vrot.lane.b32.xlu0 %v645, 15
        %v1119 = vpop.permute.xlu0 %1118
        %1120 = vrot.lane.b32.xlu0 %v648, 15
        %v1121 = vpop.permute.xlu0 %1120
        %1122 = vrot.lane.b32.xlu0 %v650, 15
        %v1123 = vpop.permute.xlu0 %1122
        %1124 = vrot.lane.b32.xlu0 %v653, 15
        %v1125 = vpop.permute.xlu0 %1124
        %1126 = vrot.lane.b32.xlu0 %v655, 15
        %v1127 = vpop.permute.xlu0 %1126
        %1128 = vrot.lane.b32.xlu0 %v658, 15
        %v1129 = vpop.permute.xlu0 %1128
        %1130 = vrot.lane.b32.xlu0 %v660, 15
        %v1131 = vpop.permute.xlu0 %1130
        %1132 = vrot.lane.b32.xlu0 %v663, 15
        %v1133 = vpop.permute.xlu0 %1132
        %1134 = vrot.lane.b32.xlu0 %v665, 15
        %v1135 = vpop.permute.xlu0 %1134
        %1136 = vrot.lane.b32.xlu0 %v676, 15
        %v1137 = vpop.permute.xlu0 %1136
        %1138 = vrot.lane.b32.xlu0 %v678, 15
        %v1139 = vpop.permute.xlu0 %1138
        %1172 = vrot.lane.b32.xlu0 %v403, 18
        %v1173 = vpop.permute.xlu0 %1172
        %1174 = vrot.lane.b32.xlu0 %v404, 18
        %v1175 = vpop.permute.xlu0 %1174
        %1176 = vrot.lane.b32.xlu0 %v406, 18
        %v1177 = vpop.permute.xlu0 %1176
        %1178 = vrot.lane.b32.xlu0 %v407, 18
        %v1179 = vpop.permute.xlu0 %1178
        %1180 = vrot.lane.b32.xlu0 %v409, 18
        %v1181 = vpop.permute.xlu0 %1180
        %1182 = vrot.lane.b32.xlu0 %v410, 18
        %v1183 = vpop.permute.xlu0 %1182
        %1184 = vrot.lane.b32.xlu0 %v412, 18
        %v1185 = vpop.permute.xlu0 %1184
        %1186 = vrot.lane.b32.xlu0 %v413, 18
        %v1187 = vpop.permute.xlu0 %1186
        %1188 = vrot.lane.b32.xlu0 %v415, 18
        %v1189 = vpop.permute.xlu0 %1188
        %1190 = vrot.lane.b32.xlu0 %v416, 18
        %v1191 = vpop.permute.xlu0 %1190
        %1192 = vrot.lane.b32.xlu0 %v418, 18
        %v1193 = vpop.permute.xlu0 %1192
        %1194 = vrot.lane.b32.xlu0 %v419, 18
        %v1195 = vpop.permute.xlu0 %1194
        %1196 = vrot.lane.b32.xlu0 %v421, 18
        %v1197 = vpop.permute.xlu0 %1196
        %1198 = vrot.lane.b32.xlu0 %v422, 18
        %v1199 = vpop.permute.xlu0 %1198
        %1200 = vrot.lane.b32.xlu0 %v424, 18
        %v1201 = vpop.permute.xlu0 %1200
        %1202 = vrot.lane.b32.xlu0 %v425, 18
        %v1203 = vpop.permute.xlu0 %1202
        %1204 = vrot.lane.b32.xlu0 %v427, 18
        %v1205 = vpop.permute.xlu0 %1204
        %1206 = vrot.lane.b32.xlu0 %v428, 18
        %v1207 = vpop.permute.xlu0 %1206
        %1208 = vrot.lane.b32.xlu0 %v430, 18
        %v1209 = vpop.permute.xlu0 %1208
        %1210 = vrot.lane.b32.xlu0 %v431, 18
        %v1211 = vpop.permute.xlu0 %1210
        %1212 = vrot.lane.b32.xlu0 %v433, 18
        %v1213 = vpop.permute.xlu0 %1212
        %1214 = vrot.lane.b32.xlu0 %v434, 18
        %v1215 = vpop.permute.xlu0 %1214
        %1216 = vrot.lane.b32.xlu0 %v436, 18
        %v1217 = vpop.permute.xlu0 %1216
        %1218 = vrot.lane.b32.xlu0 %v437, 18
        %v1219 = vpop.permute.xlu0 %1218
        %1220 = vrot.lane.b32.xlu0 %v439, 18
        %v1221 = vpop.permute.xlu0 %1220
        %1222 = vrot.lane.b32.xlu0 %v440, 18
        %v1223 = vpop.permute.xlu0 %1222
        %1224 = vrot.lane.b32.xlu0 %v442, 18
        %v1225 = vpop.permute.xlu0 %1224
        %1226 = vrot.lane.b32.xlu0 %v443, 18
        %v1227 = vpop.permute.xlu0 %1226
        %1228 = vrot.lane.b32.xlu0 %v445, 18
        %v1229 = vpop.permute.xlu0 %1228
        %1230 = vrot.lane.b32.xlu0 %v446, 18
        %v1231 = vpop.permute.xlu0 %1230
        %1232 = vrot.lane.b32.xlu0 %v448, 18
        %v1233 = vpop.permute.xlu0 %1232
        %1234 = vrot.lane.b32.xlu0 %v449, 18
        %v1235 = vpop.permute.xlu0 %1234
        %1268 = vrot.lane.b32.xlu0 %v517, 21
        %v1269 = vpop.permute.xlu0 %1268
        %1270 = vrot.lane.b32.xlu0 %v519, 21
        %v1271 = vpop.permute.xlu0 %1270
        %1272 = vrot.lane.b32.xlu0 %v522, 21
        %v1273 = vpop.permute.xlu0 %1272
        %1274 = vrot.lane.b32.xlu0 %v524, 21
        %v1275 = vpop.permute.xlu0 %1274
        %1276 = vrot.lane.b32.xlu0 %v527, 21
        %v1277 = vpop.permute.xlu0 %1276
        %1278 = vrot.lane.b32.xlu0 %v529, 21
        %v1279 = vpop.permute.xlu0 %1278
        %1280 = vrot.lane.b32.xlu0 %v532, 21
        %v1281 = vpop.permute.xlu0 %1280
        %1282 = vrot.lane.b32.xlu0 %v534, 21
        %v1283 = vpop.permute.xlu0 %1282
        %1284 = vrot.lane.b32.xlu0 %v537, 21
        %v1285 = vpop.permute.xlu0 %1284
        %1286 = vrot.lane.b32.xlu0 %v539, 21
        %v1287 = vpop.permute.xlu0 %1286
        %1288 = vrot.lane.b32.xlu0 %v542, 21
        %v1289 = vpop.permute.xlu0 %1288
        %1290 = vrot.lane.b32.xlu0 %v544, 21
        %v1291 = vpop.permute.xlu0 %1290
        %1292 = vrot.lane.b32.xlu0 %v547, 21
        %v1293 = vpop.permute.xlu0 %1292
        %1294 = vrot.lane.b32.xlu0 %v549, 21
        %v1295 = vpop.permute.xlu0 %1294
        %1296 = vrot.lane.b32.xlu0 %v552, 21
        %v1297 = vpop.permute.xlu0 %1296
        %1298 = vrot.lane.b32.xlu0 %v554, 21
        %v1299 = vpop.permute.xlu0 %1298
        %1300 = vrot.lane.b32.xlu0 %v557, 21
        %v1301 = vpop.permute.xlu0 %1300
        %1302 = vrot.lane.b32.xlu0 %v559, 21
        %v1303 = vpop.permute.xlu0 %1302
        %1304 = vrot.lane.b32.xlu0 %v562, 21
        %v1305 = vpop.permute.xlu0 %1304
        %1306 = vrot.lane.b32.xlu0 %v564, 21
        %v1307 = vpop.permute.xlu0 %1306
        %1308 = vrot.lane.b32.xlu0 %v567, 21
        %v1309 = vpop.permute.xlu0 %1308
        %1310 = vrot.lane.b32.xlu0 %v569, 21
        %v1311 = vpop.permute.xlu0 %1310
        %1312 = vrot.lane.b32.xlu0 %v572, 21
        %v1313 = vpop.permute.xlu0 %1312
        %1314 = vrot.lane.b32.xlu0 %v574, 21
        %v1315 = vpop.permute.xlu0 %1314
        %1316 = vrot.lane.b32.xlu0 %v577, 21
        %v1317 = vpop.permute.xlu0 %1316
        %1318 = vrot.lane.b32.xlu0 %v579, 21
        %v1319 = vpop.permute.xlu0 %1318
        %1320 = vrot.lane.b32.xlu0 %v582, 21
        %v1321 = vpop.permute.xlu0 %1320
        %1322 = vrot.lane.b32.xlu0 %v584, 21
        %v1323 = vpop.permute.xlu0 %1322
        %1324 = vrot.lane.b32.xlu0 %v671, 21
        %v1325 = vpop.permute.xlu0 %1324
        %1326 = vrot.lane.b32.xlu0 %v673, 21
        %v1327 = vpop.permute.xlu0 %1326
        %1328 = vrot.lane.b32.xlu0 %v684, 21
        %v1329 = vpop.permute.xlu0 %1328
        %1330 = vrot.lane.b32.xlu0 %v686, 21
        %v1331 = vpop.permute.xlu0 %1330
        %1364 = vrot.lane.b32.xlu0 %v598, 24
        %v1365 = vpop.permute.xlu0 %1364
        %1366 = vrot.lane.b32.xlu0 %v600, 24
        %v1367 = vpop.permute.xlu0 %1366
        %1368 = vrot.lane.b32.xlu0 %v603, 24
        %v1369 = vpop.permute.xlu0 %1368
        %1370 = vrot.lane.b32.xlu0 %v605, 24
        %v1371 = vpop.permute.xlu0 %1370
        %1372 = vrot.lane.b32.xlu0 %v608, 24
        %v1373 = vpop.permute.xlu0 %1372
        %1374 = vrot.lane.b32.xlu0 %v610, 24
        %v1375 = vpop.permute.xlu0 %1374
        %1376 = vrot.lane.b32.xlu0 %v613, 24
        %v1377 = vpop.permute.xlu0 %1376
        %1378 = vrot.lane.b32.xlu0 %v615, 24
        %v1379 = vpop.permute.xlu0 %1378
        %1380 = vrot.lane.b32.xlu0 %v618, 24
        %v1381 = vpop.permute.xlu0 %1380
        %1382 = vrot.lane.b32.xlu0 %v620, 24
        %v1383 = vpop.permute.xlu0 %1382
        %1384 = vrot.lane.b32.xlu0 %v623, 24
        %v1385 = vpop.permute.xlu0 %1384
        %1386 = vrot.lane.b32.xlu0 %v625, 24
        %v1387 = vpop.permute.xlu0 %1386
        %1388 = vrot.lane.b32.xlu0 %v628, 24
        %v1389 = vpop.permute.xlu0 %1388
        %1390 = vrot.lane.b32.xlu0 %v630, 24
        %v1391 = vpop.permute.xlu0 %1390
        %1392 = vrot.lane.b32.xlu0 %v633, 24
        %v1393 = vpop.permute.xlu0 %1392
        %1394 = vrot.lane.b32.xlu0 %v635, 24
        %v1395 = vpop.permute.xlu0 %1394
        %1396 = vrot.lane.b32.xlu0 %v638, 24
        %v1397 = vpop.permute.xlu0 %1396
        %1398 = vrot.lane.b32.xlu0 %v640, 24
        %v1399 = vpop.permute.xlu0 %1398
        %1400 = vrot.lane.b32.xlu0 %v643, 24
        %v1401 = vpop.permute.xlu0 %1400
        %1402 = vrot.lane.b32.xlu0 %v645, 24
        %v1403 = vpop.permute.xlu0 %1402
        %1404 = vrot.lane.b32.xlu0 %v648, 24
        %v1405 = vpop.permute.xlu0 %1404
        %1406 = vrot.lane.b32.xlu0 %v650, 24
        %v1407 = vpop.permute.xlu0 %1406
        %1408 = vrot.lane.b32.xlu0 %v653, 24
        %v1409 = vpop.permute.xlu0 %1408
        %1410 = vrot.lane.b32.xlu0 %v655, 24
        %v1411 = vpop.permute.xlu0 %1410
        %1412 = vrot.lane.b32.xlu0 %v658, 24
        %v1413 = vpop.permute.xlu0 %1412
        %1414 = vrot.lane.b32.xlu0 %v660, 24
        %v1415 = vpop.permute.xlu0 %1414
        %1416 = vrot.lane.b32.xlu0 %v663, 24
        %v1417 = vpop.permute.xlu0 %1416
        %1418 = vrot.lane.b32.xlu0 %v665, 24
        %v1419 = vpop.permute.xlu0 %1418
        %1420 = vrot.lane.b32.xlu0 %v676, 24
        %v1421 = vpop.permute.xlu0 %1420
        %1422 = vrot.lane.b32.xlu0 %v678, 24
        %v1423 = vpop.permute.xlu0 %1422
        %1424 = vrot.lane.b32.xlu0 %v689, 24
        %v1425 = vpop.permute.xlu0 %1424
        %1426 = vrot.lane.b32.xlu0 %v691, 24
        %v1427 = vpop.permute.xlu0 %1426
        %v1460 = vsel %vm276, %v397, %v693
        %v1461 = vsel %vm276, %v398, %v695
        %v1462 = vsel %vm276, %v400, %v697
        %v1463 = vsel %vm276, %v401, %v699
        %v1464 = vsel %vm276, %v403, %v701
        %v1465 = vsel %vm276, %v404, %v703
        %v1466 = vsel %vm276, %v406, %v705
        %v1467 = vsel %vm276, %v407, %v707
        %v1468 = vsel %vm276, %v409, %v709
        %v1469 = vsel %vm276, %v410, %v711
        %v1470 = vsel %vm276, %v412, %v713
        %v1471 = vsel %vm276, %v413, %v715
        %v1472 = vsel %vm276, %v415, %v717
        %v1473 = vsel %vm276, %v416, %v719
        %v1474 = vsel %vm276, %v418, %v721
        %v1475 = vsel %vm276, %v419, %v723
        %v1476 = vsel %vm276, %v421, %v725
        %v1477 = vsel %vm276, %v422, %v727
        %v1478 = vsel %vm276, %v424, %v729
        %v1479 = vsel %vm276, %v425, %v731
        %v1480 = vsel %vm276, %v427, %v733
        %v1481 = vsel %vm276, %v428, %v735
        %v1482 = vsel %vm276, %v430, %v737
        %v1483 = vsel %vm276, %v431, %v739
        %v1484 = vsel %vm276, %v433, %v741
        %v1485 = vsel %vm276, %v434, %v743
        %v1486 = vsel %vm276, %v436, %v745
        %v1487 = vsel %vm276, %v437, %v747
        %v1488 = vsel %vm276, %v439, %v749
        %v1489 = vsel %vm276, %v440, %v751
        %v1490 = vsel %vm276, %v442, %v753
        %v1491 = vsel %vm276, %v443, %v755
        %vm1492 = vcmask 48128
        %v1493 = vsel %vm1492, %v1460, %v789
        %v1494 = vsel %vm1492, %v1461, %v791
        %v1495 = vsel %vm1492, %v1462, %v793
        %v1496 = vsel %vm1492, %v1463, %v795
        %v1497 = vsel %vm1492, %v1464, %v797
        %v1498 = vsel %vm1492, %v1465, %v799
        %v1499 = vsel %vm1492, %v1466, %v801
        %v1500 = vsel %vm1492, %v1467, %v803
        %v1501 = vsel %vm1492, %v1468, %v805
        %v1502 = vsel %vm1492, %v1469, %v807
        %v1503 = vsel %vm1492, %v1470, %v809
        %v1504 = vsel %vm1492, %v1471, %v811
        %v1505 = vsel %vm1492, %v1472, %v813
        %v1506 = vsel %vm1492, %v1473, %v815
        %v1507 = vsel %vm1492, %v1474, %v817
        %v1508 = vsel %vm1492, %v1475, %v819
        %v1509 = vsel %vm1492, %v1476, %v821
        %v1510 = vsel %vm1492, %v1477, %v823
        %v1511 = vsel %vm1492, %v1478, %v825
        %v1512 = vsel %vm1492, %v1479, %v827
        %v1513 = vsel %vm1492, %v1480, %v829
        %v1514 = vsel %vm1492, %v1481, %v831
        %v1515 = vsel %vm1492, %v1482, %v833
        %v1516 = vsel %vm1492, %v1483, %v835
        %v1517 = vsel %vm1492, %v1484, %v837
        %v1518 = vsel %vm1492, %v1485, %v839
        %v1519 = vsel %vm1492, %v1486, %v841
        %v1520 = vsel %vm1492, %v1487, %v843
        %v1521 = vsel %vm1492, %v1488, %v845
        %v1522 = vsel %vm1492, %v1489, %v847
        %v1523 = vsel %vm1492, %v1490, %v849
        %v1524 = vsel %vm1492, %v1491, %v851
        %vm1525 = vcmask 72704
        %v1526 = vsel %vm1525, %v1493, %v885
        %v1527 = vsel %vm1525, %v1494, %v887
        %v1528 = vsel %vm1525, %v1495, %v889
        %v1529 = vsel %vm1525, %v1496, %v891
        %v1530 = vsel %vm1525, %v1497, %v893
        %v1531 = vsel %vm1525, %v1498, %v895
        %v1532 = vsel %vm1525, %v1499, %v897
        %v1533 = vsel %vm1525, %v1500, %v899
        %v1534 = vsel %vm1525, %v1501, %v901
        %v1535 = vsel %vm1525, %v1502, %v903
        %v1536 = vsel %vm1525, %v1503, %v905
        %v1537 = vsel %vm1525, %v1504, %v907
        %v1538 = vsel %vm1525, %v1505, %v909
        %v1539 = vsel %vm1525, %v1506, %v911
        %v1540 = vsel %vm1525, %v1507, %v913
        %v1541 = vsel %vm1525, %v1508, %v915
        %v1542 = vsel %vm1525, %v1509, %v917
        %v1543 = vsel %vm1525, %v1510, %v919
        %v1544 = vsel %vm1525, %v1511, %v921
        %v1545 = vsel %vm1525, %v1512, %v923
        %v1546 = vsel %vm1525, %v1513, %v925
        %v1547 = vsel %vm1525, %v1514, %v927
        %v1548 = vsel %vm1525, %v1515, %v929
        %v1549 = vsel %vm1525, %v1516, %v931
        %v1550 = vsel %vm1525, %v1517, %v933
        %v1551 = vsel %vm1525, %v1518, %v935
        %v1552 = vsel %vm1525, %v1519, %v937
        %v1553 = vsel %vm1525, %v1520, %v939
        %v1554 = vsel %vm1525, %v1521, %v941
        %v1555 = vsel %vm1525, %v1522, %v943
        %v1556 = vsel %vm1525, %v1523, %v945
        %v1557 = vsel %vm1525, %v1524, %v947
        %vm1558 = vcmask 97280
        %v1559 = vsel %vm1558, %v1526, %v981
        %v1560 = vsel %vm1558, %v1527, %v983
        %v1561 = vsel %vm1558, %v1528, %v985
        %v1562 = vsel %vm1558, %v1529, %v987
        %v1563 = vsel %vm1558, %v1530, %v989
        %v1564 = vsel %vm1558, %v1531, %v991
        %v1565 = vsel %vm1558, %v1532, %v993
        %v1566 = vsel %vm1558, %v1533, %v995
        %v1567 = vsel %vm1558, %v1534, %v997
        %v1568 = vsel %vm1558, %v1535, %v999
        %v1569 = vsel %vm1558, %v1536, %v1001
        %v1570 = vsel %vm1558, %v1537, %v1003
        %v1571 = vsel %vm1558, %v1538, %v1005
        %v1572 = vsel %vm1558, %v1539, %v1007
        %v1573 = vsel %vm1558, %v1540, %v1009
        %v1574 = vsel %vm1558, %v1541, %v1011
        %v1575 = vsel %vm1558, %v1542, %v1013
        %v1576 = vsel %vm1558, %v1543, %v1015
        %v1577 = vsel %vm1558, %v1544, %v1017
        %v1578 = vsel %vm1558, %v1545, %v1019
        %v1579 = vsel %vm1558, %v1546, %v1021
        %v1580 = vsel %vm1558, %v1547, %v1023
        %v1581 = vsel %vm1558, %v1548, %v1025
        %v1582 = vsel %vm1558, %v1549, %v1027
        %v1583 = vsel %vm1558, %v1550, %v1029
        %v1584 = vsel %vm1558, %v1551, %v1031
        %v1585 = vsel %vm1558, %v1552, %v1033
        %v1586 = vsel %vm1558, %v1553, %v1035
        %v1587 = vsel %vm1558, %v1554, %v1037
        %v1588 = vsel %vm1558, %v1555, %v1039
        %v1589 = vsel %vm1558, %v1556, %v1041
        %v1590 = vsel %vm1558, %v1557, %v1043
        %vm1591 = vcmask 121856
        %v1592 = vsel %vm1591, %v1559, %v1077
        %v1593 = vsel %vm1591, %v1560, %v1079
        %v1594 = vsel %vm1591, %v1561, %v1081
        %v1595 = vsel %vm1591, %v1562, %v1083
        %v1596 = vsel %vm1591, %v1563, %v1085
        %v1597 = vsel %vm1591, %v1564, %v1087
        %v1598 = vsel %vm1591, %v1565, %v1089
        %v1599 = vsel %vm1591, %v1566, %v1091
        %v1600 = vsel %vm1591, %v1567, %v1093
        %v1601 = vsel %vm1591, %v1568, %v1095
        %v1602 = vsel %vm1591, %v1569, %v1097
        %v1603 = vsel %vm1591, %v1570, %v1099
        %v1604 = vsel %vm1591, %v1571, %v1101
        %v1605 = vsel %vm1591, %v1572, %v1103
        %v1606 = vsel %vm1591, %v1573, %v1105
        %v1607 = vsel %vm1591, %v1574, %v1107
        %v1608 = vsel %vm1591, %v1575, %v1109
        %v1609 = vsel %vm1591, %v1576, %v1111
        %v1610 = vsel %vm1591, %v1577, %v1113
        %v1611 = vsel %vm1591, %v1578, %v1115
        %v1612 = vsel %vm1591, %v1579, %v1117
        %v1613 = vsel %vm1591, %v1580, %v1119
        %v1614 = vsel %vm1591, %v1581, %v1121
        %v1615 = vsel %vm1591, %v1582, %v1123
        %v1616 = vsel %vm1591, %v1583, %v1125
        %v1617 = vsel %vm1591, %v1584, %v1127
        %v1618 = vsel %vm1591, %v1585, %v1129
        %v1619 = vsel %vm1591, %v1586, %v1131
        %v1620 = vsel %vm1591, %v1587, %v1133
        %v1621 = vsel %vm1591, %v1588, %v1135
        %v1622 = vsel %vm1591, %v1589, %v1137
        %v1623 = vsel %vm1591, %v1590, %v1139
        %vm1624 = vcmask 146432
        %v1625 = vsel %vm1624, %v1592, %v1173
        %v1626 = vsel %vm1624, %v1593, %v1175
        %v1627 = vsel %vm1624, %v1594, %v1177
        %v1628 = vsel %vm1624, %v1595, %v1179
        %v1629 = vsel %vm1624, %v1596, %v1181
        %v1630 = vsel %vm1624, %v1597, %v1183
        %v1631 = vsel %vm1624, %v1598, %v1185
        %v1632 = vsel %vm1624, %v1599, %v1187
        %v1633 = vsel %vm1624, %v1600, %v1189
        %v1634 = vsel %vm1624, %v1601, %v1191
        %v1635 = vsel %vm1624, %v1602, %v1193
        %v1636 = vsel %vm1624, %v1603, %v1195
        %v1637 = vsel %vm1624, %v1604, %v1197
        %v1638 = vsel %vm1624, %v1605, %v1199
        %v1639 = vsel %vm1624, %v1606, %v1201
        %v1640 = vsel %vm1624, %v1607, %v1203
        %v1641 = vsel %vm1624, %v1608, %v1205
        %v1642 = vsel %vm1624, %v1609, %v1207
        %v1643 = vsel %vm1624, %v1610, %v1209
        %v1644 = vsel %vm1624, %v1611, %v1211
        %v1645 = vsel %vm1624, %v1612, %v1213
        %v1646 = vsel %vm1624, %v1613, %v1215
        %v1647 = vsel %vm1624, %v1614, %v1217
        %v1648 = vsel %vm1624, %v1615, %v1219
        %v1649 = vsel %vm1624, %v1616, %v1221
        %v1650 = vsel %vm1624, %v1617, %v1223
        %v1651 = vsel %vm1624, %v1618, %v1225
        %v1652 = vsel %vm1624, %v1619, %v1227
        %v1653 = vsel %vm1624, %v1620, %v1229
        %v1654 = vsel %vm1624, %v1621, %v1231
        %v1655 = vsel %vm1624, %v1622, %v1233
        %v1656 = vsel %vm1624, %v1623, %v1235
        %vm1657 = vcmask 171008
        %v1658 = vsel %vm1657, %v1625, %v1269
        %v1659 = vsel %vm1657, %v1626, %v1271
        %v1660 = vsel %vm1657, %v1627, %v1273
        %v1661 = vsel %vm1657, %v1628, %v1275
        %v1662 = vsel %vm1657, %v1629, %v1277
        %v1663 = vsel %vm1657, %v1630, %v1279
        %v1664 = vsel %vm1657, %v1631, %v1281
        %v1665 = vsel %vm1657, %v1632, %v1283
        %v1666 = vsel %vm1657, %v1633, %v1285
        %v1667 = vsel %vm1657, %v1634, %v1287
        %v1668 = vsel %vm1657, %v1635, %v1289
        %v1669 = vsel %vm1657, %v1636, %v1291
        %v1670 = vsel %vm1657, %v1637, %v1293
        %v1671 = vsel %vm1657, %v1638, %v1295
        %v1672 = vsel %vm1657, %v1639, %v1297
        %v1673 = vsel %vm1657, %v1640, %v1299
        %v1674 = vsel %vm1657, %v1641, %v1301
        %v1675 = vsel %vm1657, %v1642, %v1303
        %v1676 = vsel %vm1657, %v1643, %v1305
        %v1677 = vsel %vm1657, %v1644, %v1307
        %v1678 = vsel %vm1657, %v1645, %v1309
        %v1679 = vsel %vm1657, %v1646, %v1311
        %v1680 = vsel %vm1657, %v1647, %v1313
        %v1681 = vsel %vm1657, %v1648, %v1315
        %v1682 = vsel %vm1657, %v1649, %v1317
        %v1683 = vsel %vm1657, %v1650, %v1319
        %v1684 = vsel %vm1657, %v1651, %v1321
        %v1685 = vsel %vm1657, %v1652, %v1323
        %v1686 = vsel %vm1657, %v1653, %v1325
        %v1687 = vsel %vm1657, %v1654, %v1327
        %v1688 = vsel %vm1657, %v1655, %v1329
        %v1689 = vsel %vm1657, %v1656, %v1331
        %vm1690 = vcmask 195584
        %v1691 = vsel %vm1690, %v1658, %v1365
        %v1692 = vsel %vm1690, %v1659, %v1367
        %v1693 = vsel %vm1690, %v1660, %v1369
        %v1694 = vsel %vm1690, %v1661, %v1371
        %v1695 = vsel %vm1690, %v1662, %v1373
        %v1696 = vsel %vm1690, %v1663, %v1375
        %v1697 = vsel %vm1690, %v1664, %v1377
        %v1698 = vsel %vm1690, %v1665, %v1379
        %v1699 = vsel %vm1690, %v1666, %v1381
        %v1700 = vsel %vm1690, %v1667, %v1383
        %v1701 = vsel %vm1690, %v1668, %v1385
        %v1702 = vsel %vm1690, %v1669, %v1387
        %v1703 = vsel %vm1690, %v1670, %v1389
        %v1704 = vsel %vm1690, %v1671, %v1391
        %v1705 = vsel %vm1690, %v1672, %v1393
        %v1706 = vsel %vm1690, %v1673, %v1395
        %v1707 = vsel %vm1690, %v1674, %v1397
        %v1708 = vsel %vm1690, %v1675, %v1399
        %v1709 = vsel %vm1690, %v1676, %v1401
        %v1710 = vsel %vm1690, %v1677, %v1403
        %v1711 = vsel %vm1690, %v1678, %v1405
        %v1712 = vsel %vm1690, %v1679, %v1407
        %v1713 = vsel %vm1690, %v1680, %v1409
        %v1714 = vsel %vm1690, %v1681, %v1411
        %v1715 = vsel %vm1690, %v1682, %v1413
        %v1716 = vsel %vm1690, %v1683, %v1415
        %v1717 = vsel %vm1690, %v1684, %v1417
        %v1718 = vsel %vm1690, %v1685, %v1419
        %v1719 = vsel %vm1690, %v1686, %v1421
        %v1720 = vsel %vm1690, %v1687, %v1423
        %v1721 = vsel %vm1690, %v1688, %v1425
        %v1722 = vsel %vm1690, %v1689, %v1427
        %v1724 = vlaneseq
        %v1725 = vshrl.u32 %v1724, 7
        %v1726 = vsub.s32 0, %v1725
        %v1727 = vrot.slane %v455, %v1726
        %vm1729 = vcmask 220160
        %v1731 = vsel %vm1729, %v1691, 0
        %v1734 = vsel %vm1729, %v1692, 0
        %v1737 = vsel %vm1729, %v1693, 0
        %v1740 = vsel %vm1729, %v1694, 0
        %v1743 = vsel %vm1729, %v1695, 0
        %v1746 = vsel %vm1729, %v1696, 0
        %v1749 = vsel %vm1729, %v1697, 0
        %v1752 = vsel %vm1729, %v1698, 0
        %v1755 = vsel %vm1729, %v1699, 0
        %v1758 = vsel %vm1729, %v1700, 0
        %v1761 = vsel %vm1729, %v1701, 0
        %v1764 = vsel %vm1729, %v1702, 0
        %v1767 = vsel %vm1729, %v1703, 0
        %v1770 = vsel %vm1729, %v1704, 0
        %v1773 = vsel %vm1729, %v1705, 0
        %v1776 = vsel %vm1729, %v1706, 0
        %v1779 = vsel %vm1729, %v1707, 0
        %v1782 = vsel %vm1729, %v1708, 0
        %v1785 = vsel %vm1729, %v1709, 0
        %v1788 = vsel %vm1729, %v1710, 0
        %v1791 = vsel %vm1729, %v1711, 0
        %v1794 = vsel %vm1729, %v1712, 0
        %v1797 = vsel %vm1729, %v1713, 0
        %v1800 = vsel %vm1729, %v1714, 0
        %v1803 = vsel %vm1729, %v1715, 0
        %v1806 = vsel %vm1729, %v1716, 0
        %v1809 = vsel %vm1729, %v1717, 0
        %v1812 = vsel %vm1729, %v1718, 0
        %v1815 = vsel %vm1729, %v1719, 0
        %v1818 = vsel %vm1729, %v1720, 0
        %v1821 = vsel %vm1729, %v1721, 0
        %v1824 = vsel %vm1729, %v1722, 0
        %vm1826 = vcmask 1042432
        %v1828 = vsel %vm1826, %v454, 0
        %1830 = vmatprep.subr.mxu0 0.0
        %1831 = vmatpush1.msra.mxu0 %v451
        %1832 = vmatprep.subr.mxu0 0.0
        %1833 = vmatpush1.msra.mxu0 %v452
        %1834 = vmatprep.subr.mxu0 0.0
        %1835 = vmatpush1.msra.mxu0 %v453
        %1836 = vmatprep.subr.mxu0 0.0
        %1837 = vmatpush1.msra.mxu0 %v1828
        %1838 = vmatprep.subr.mxu0 0.0
        %1839 = vmatpush1.msra.mxu0 0.0
        %1840 = vmatprep.subr.mxu0 0.0
        %1841 = vmatpush1.msra.mxu0 0.0
        %1842 = vmatprep.subr.mxu0 0.0
        %1843 = vmatpush1.msra.mxu0 0.0
        %1844 = vmatprep.subr.mxu0 0.0
        %1845 = vmatpush1.msra.mxu0 0.0
        %1846 = vmatprep.subr.mxu0 0.0
        %1847 = vmatpush1.msra.mxu0 0.0
        %1848 = vmatprep.subr.mxu0 0.0
        %1849 = vmatpush1.msra.mxu0 0.0
        %1850 = vmatprep.subr.mxu0 0.0
        %1851 = vmatpush1.msra.mxu0 0.0
        %1852 = vmatprep.subr.mxu0 0.0
        %1853 = vmatpush1.msra.mxu0 0.0
        %1854 = vmatprep.subr.mxu0 0.0
        %1855 = vmatpush1.msra.mxu0 0.0
        %1856 = vmatprep.subr.mxu0 0.0
        %1857 = vmatpush1.msra.mxu0 0.0
        %1858 = vmatprep.subr.mxu0 0.0
        %1859 = vmatpush1.msra.mxu0 0.0
        %1860 = vmatprep.subr.mxu0 0.0
        %1861 = vmatpush1.msra.mxu0 0.0
        %1862 = vmatprep.subr.mxu0 0.0
        %1863 = vmatpush1.msra.mxu0 0.0
        %1864 = vmatprep.subr.mxu0 0.0
        %1865 = vmatpush1.msra.mxu0 0.0
        %1866 = vmatprep.subr.mxu0 0.0
        %1867 = vmatpush1.msra.mxu0 0.0
        %1868 = vmatprep.subr.mxu0 0.0
        %1869 = vmatpush1.msra.mxu0 0.0
        %1870 = vmatprep.subr.mxu0 0.0
        %1871 = vmatpush1.msra.mxu0 0.0
        %1872 = vmatprep.subr.mxu0 0.0
        %1873 = vmatpush1.msra.mxu0 0.0
        %1874 = vmatprep.subr.mxu0 0.0
        %1875 = vmatpush1.msra.mxu0 0.0
        %1876 = vmatprep.subr.mxu0 0.0
        %1877 = vmatpush1.msra.mxu0 0.0
        %1878 = vmatprep.subr.mxu0 0.0
        %1879 = vmatpush1.msra.mxu0 0.0
        %1880 = vmatprep.subr.mxu0 0.0
        %1881 = vmatpush1.msra.mxu0 0.0
        %1882 = vmatprep.subr.mxu0 0.0
        %1883 = vmatpush1.msra.mxu0 0.0
        %1884 = vmatprep.subr.mxu0 0.0
        %1885 = vmatpush1.msra.mxu0 0.0
        %1886 = vmatprep.subr.mxu0 0.0
        %1887 = vmatpush1.msra.mxu0 0.0
        %1888 = vmatprep.subr.mxu0 0.0
        %1889 = vmatpush1.msra.mxu0 0.0
        %1890 = vmatprep.subr.mxu0 0.0
        %1891 = vmatpush1.msra.mxu0 0.0
        %1892 = vmatprep.subr.mxu0 0.0
        %1893 = vmatpush1.msra.mxu0 0.0
        %1894 = vmatprep.mubr.f32.mxu0 0.0
        %1895 = vmatmul.mubr.f32.gmra.mrb[0].mxu0 %v1731
        %v1896 = vpop.f32.mrb[0].mxu0
        %v1897 = vadd.f32 %v1727, %v1896
        %v1898 = vpop.f32.mrb[0].mxu0
        %1899 = vmatprep.mubr.f32.mxu0 0.0
        %1900 = vmatmul.mubr.f32.gmra.mrb[0].mxu0 %v1734
        %v1901 = vpop.f32.mrb[0].mxu0
        %v1902 = vadd.f32 %v1727, %v1901
        %v1903 = vpop.f32.mrb[0].mxu0
        %1904 = vmatprep.mubr.f32.mxu0 0.0
        %1905 = vmatmul.mubr.f32.gmra.mrb[0].mxu0 %v1737
        %v1906 = vpop.f32.mrb[0].mxu0
        %v1907 = vadd.f32 %v1727, %v1906
        %v1908 = vpop.f32.mrb[0].mxu0
        %1909 = vmatprep.mubr.f32.mxu0 0.0
        %1910 = vmatmul.mubr.f32.gmra.mrb[0].mxu0 %v1740
        %v1911 = vpop.f32.mrb[0].mxu0
        %v1912 = vadd.f32 %v1727, %v1911
        %v1913 = vpop.f32.mrb[0].mxu0
        %1914 = vmatprep.mubr.f32.mxu0 0.0
        %1915 = vmatmul.mubr.f32.gmra.mrb[0].mxu0 %v1743
        %v1916 = vpop.f32.mrb[0].mxu0
        %v1917 = vadd.f32 %v1727, %v1916
        %v1918 = vpop.f32.mrb[0].mxu0
        %1919 = vmatprep.mubr.f32.mxu0 0.0
        %1920 = vmatmul.mubr.f32.gmra.mrb[0].mxu0 %v1746
        %v1921 = vpop.f32.mrb[0].mxu0
        %v1922 = vadd.f32 %v1727, %v1921
        %v1923 = vpop.f32.mrb[0].mxu0
        %1924 = vmatprep.mubr.f32.mxu0 0.0
        %1925 = vmatmul.mubr.f32.gmra.mrb[0].mxu0 %v1749
        %v1926 = vpop.f32.mrb[0].mxu0
        %v1927 = vadd.f32 %v1727, %v1926
        %v1928 = vpop.f32.mrb[0].mxu0
        %1929 = vmatprep.mubr.f32.mxu0 0.0
        %1930 = vmatmul.mubr.f32.gmra.mrb[0].mxu0 %v1752
        %v1931 = vpop.f32.mrb[0].mxu0
        %v1932 = vadd.f32 %v1727, %v1931
        %v1933 = vpop.f32.mrb[0].mxu0
        %1934 = vmatprep.mubr.f32.mxu0 0.0
        %1935 = vmatmul.mubr.f32.gmra.mrb[0].mxu0 %v1755
        %v1936 = vpop.f32.mrb[0].mxu0
        %v1937 = vadd.f32 %v1727, %v1936
        %v1938 = vpop.f32.mrb[0].mxu0
        %1939 = vmatprep.mubr.f32.mxu0 0.0
        %1940 = vmatmul.mubr.f32.gmra.mrb[0].mxu0 %v1758
        %v1941 = vpop.f32.mrb[0].mxu0
        %v1942 = vadd.f32 %v1727, %v1941
        %v1943 = vpop.f32.mrb[0].mxu0
        %1944 = vmatprep.mubr.f32.mxu0 0.0
        %1945 = vmatmul.mubr.f32.gmra.mrb[0].mxu0 %v1761
        %v1946 = vpop.f32.mrb[0].mxu0
        %v1947 = vadd.f32 %v1727, %v1946
        %v1948 = vpop.f32.mrb[0].mxu0
        %1949 = vmatprep.mubr.f32.mxu0 0.0
        %1950 = vmatmul.mubr.f32.gmra.mrb[0].mxu0 %v1764
        %v1951 = vpop.f32.mrb[0].mxu0
        %v1952 = vadd.f32 %v1727, %v1951
        %v1953 = vpop.f32.mrb[0].mxu0
        %1954 = vmatprep.mubr.f32.mxu0 0.0
        %1955 = vmatmul.mubr.f32.gmra.mrb[0].mxu0 %v1767
        %v1956 = vpop.f32.mrb[0].mxu0
        %v1957 = vadd.f32 %v1727, %v1956
        %v1958 = vpop.f32.mrb[0].mxu0
        %1959 = vmatprep.mubr.f32.mxu0 0.0
        %1960 = vmatmul.mubr.f32.gmra.mrb[0].mxu0 %v1770
        %v1961 = vpop.f32.mrb[0].mxu0
        %v1962 = vadd.f32 %v1727, %v1961
        %v1963 = vpop.f32.mrb[0].mxu0
        %1964 = vmatprep.mubr.f32.mxu0 0.0
        %1965 = vmatmul.mubr.f32.gmra.mrb[0].mxu0 %v1773
        %v1966 = vpop.f32.mrb[0].mxu0
        %v1967 = vadd.f32 %v1727, %v1966
        %v1968 = vpop.f32.mrb[0].mxu0
        %1969 = vmatprep.mubr.f32.mxu0 0.0
        %1970 = vmatmul.mubr.f32.gmra.mrb[0].mxu0 %v1776
        %v1971 = vpop.f32.mrb[0].mxu0
        %v1972 = vadd.f32 %v1727, %v1971
        %v1973 = vpop.f32.mrb[0].mxu0
        %1974 = vmatprep.mubr.f32.mxu0 0.0
        %1975 = vmatmul.mubr.f32.gmra.mrb[0].mxu0 %v1779
        %v1976 = vpop.f32.mrb[0].mxu0
        %v1977 = vadd.f32 %v1727, %v1976
        %v1978 = vpop.f32.mrb[0].mxu0
        %1979 = vmatprep.mubr.f32.mxu0 0.0
        %1980 = vmatmul.mubr.f32.gmra.mrb[0].mxu0 %v1782
        %v1981 = vpop.f32.mrb[0].mxu0
        %v1982 = vadd.f32 %v1727, %v1981
        %v1983 = vpop.f32.mrb[0].mxu0
        %1984 = vmatprep.mubr.f32.mxu0 0.0
        %1985 = vmatmul.mubr.f32.gmra.mrb[0].mxu0 %v1785
        %v1986 = vpop.f32.mrb[0].mxu0
        %v1987 = vadd.f32 %v1727, %v1986
        %v1988 = vpop.f32.mrb[0].mxu0
        %1989 = vmatprep.mubr.f32.mxu0 0.0
        %1990 = vmatmul.mubr.f32.gmra.mrb[0].mxu0 %v1788
        %v1991 = vpop.f32.mrb[0].mxu0
        %v1992 = vadd.f32 %v1727, %v1991
        %v1993 = vpop.f32.mrb[0].mxu0
        %1994 = vmatprep.mubr.f32.mxu0 0.0
        %1995 = vmatmul.mubr.f32.gmra.mrb[0].mxu0 %v1791
        %v1996 = vpop.f32.mrb[0].mxu0
        %v1997 = vadd.f32 %v1727, %v1996
        %v1998 = vpop.f32.mrb[0].mxu0
        %1999 = vmatprep.mubr.f32.mxu0 0.0
        %2000 = vmatmul.mubr.f32.gmra.mrb[0].mxu0 %v1794
        %v2001 = vpop.f32.mrb[0].mxu0
        %v2002 = vadd.f32 %v1727, %v2001
        %v2003 = vpop.f32.mrb[0].mxu0
        %2004 = vmatprep.mubr.f32.mxu0 0.0
        %2005 = vmatmul.mubr.f32.gmra.mrb[0].mxu0 %v1797
        %v2006 = vpop.f32.mrb[0].mxu0
        %v2007 = vadd.f32 %v1727, %v2006
        %v2008 = vpop.f32.mrb[0].mxu0
        %2009 = vmatprep.mubr.f32.mxu0 0.0
        %2010 = vmatmul.mubr.f32.gmra.mrb[0].mxu0 %v1800
        %v2011 = vpop.f32.mrb[0].mxu0
        %v2012 = vadd.f32 %v1727, %v2011
        %v2013 = vpop.f32.mrb[0].mxu0
        %2014 = vmatprep.mubr.f32.mxu0 0.0
        %2015 = vmatmul.mubr.f32.gmra.mrb[0].mxu0 %v1803
        %v2016 = vpop.f32.mrb[0].mxu0
        %v2017 = vadd.f32 %v1727, %v2016
        %v2018 = vpop.f32.mrb[0].mxu0
        %2019 = vmatprep.mubr.f32.mxu0 0.0
        %2020 = vmatmul.mubr.f32.gmra.mrb[0].mxu0 %v1806
        %v2021 = vpop.f32.mrb[0].mxu0
        %v2022 = vadd.f32 %v1727, %v2021
        %v2023 = vpop.f32.mrb[0].mxu0
        %2024 = vmatprep.mubr.f32.mxu0 0.0
        %2025 = vmatmul.mubr.f32.gmra.mrb[0].mxu0 %v1809
        %v2026 = vpop.f32.mrb[0].mxu0
        %v2027 = vadd.f32 %v1727, %v2026
        %v2028 = vpop.f32.mrb[0].mxu0
        %2029 = vmatprep.mubr.f32.mxu0 0.0
        %2030 = vmatmul.mubr.f32.gmra.mrb[0].mxu0 %v1812
        %v2031 = vpop.f32.mrb[0].mxu0
        %v2032 = vadd.f32 %v1727, %v2031
        %v2033 = vpop.f32.mrb[0].mxu0
        %2034 = vmatprep.mubr.f32.mxu0 0.0
        %2035 = vmatmul.mubr.f32.gmra.mrb[0].mxu0 %v1815
        %v2036 = vpop.f32.mrb[0].mxu0
        %v2037 = vadd.f32 %v1727, %v2036
        %v2038 = vpop.f32.mrb[0].mxu0
        %2039 = vmatprep.mubr.f32.mxu0 0.0
        %2040 = vmatmul.mubr.f32.gmra.mrb[0].mxu0 %v1818
        %v2041 = vpop.f32.mrb[0].mxu0
        %v2042 = vadd.f32 %v1727, %v2041
        %v2043 = vpop.f32.mrb[0].mxu0
        %2044 = vmatprep.mubr.f32.mxu0 0.0
        %2045 = vmatmul.mubr.f32.gmra.mrb[0].mxu0 %v1821
        %v2046 = vpop.f32.mrb[0].mxu0
        %v2047 = vadd.f32 %v1727, %v2046
        %v2048 = vpop.f32.mrb[0].mxu0
        %2049 = vmatprep.mubr.f32.mxu0 0.0
        %2050 = vmatmul.mubr.f32.gmra.mrb[0].mxu0 %v1824
        %v2051 = vpop.f32.mrb[0].mxu0
        %v2052 = vadd.f32 %v1727, %v2051
        %v2053 = vpop.f32.mrb[0].mxu0
        %2054 = vdwg.mxu0
        %v2055 = vmax.f32 %v1897, 0.0
        %v2056 = vmax.f32 %v1902, 0.0
        %v2057 = vmax.f32 %v1907, 0.0
        %v2058 = vmax.f32 %v1912, 0.0
        %v2059 = vmax.f32 %v1917, 0.0
        %v2060 = vmax.f32 %v1922, 0.0
        %v2061 = vmax.f32 %v1927, 0.0
        %v2062 = vmax.f32 %v1932, 0.0
        %v2063 = vmax.f32 %v1937, 0.0
        %v2064 = vmax.f32 %v1942, 0.0
        %v2065 = vmax.f32 %v1947, 0.0
        %v2066 = vmax.f32 %v1952, 0.0
        %v2067 = vmax.f32 %v1957, 0.0
        %v2068 = vmax.f32 %v1962, 0.0
        %v2069 = vmax.f32 %v1967, 0.0
        %v2070 = vmax.f32 %v1972, 0.0
        %v2071 = vmax.f32 %v1977, 0.0
        %v2072 = vmax.f32 %v1982, 0.0
        %v2073 = vmax.f32 %v1987, 0.0
        %v2074 = vmax.f32 %v1992, 0.0
        %v2075 = vmax.f32 %v1997, 0.0
        %v2076 = vmax.f32 %v2002, 0.0
        %v2077 = vmax.f32 %v2007, 0.0
        %v2078 = vmax.f32 %v2012, 0.0
        %v2079 = vmax.f32 %v2017, 0.0
        %v2080 = vmax.f32 %v2022, 0.0
        %v2081 = vmax.f32 %v2027, 0.0
        %v2082 = vmax.f32 %v2032, 0.0
        %v2083 = vmax.f32 %v2037, 0.0
        %v2084 = vmax.f32 %v2042, 0.0
        %v2085 = vmax.f32 %v2047, 0.0
        %v2086 = vmax.f32 %v2052, 0.0
        %v2119 = vcombine.high %v2055, %v2055
        %v2121 = vunpack.c.l.s4 1983009808
        %v2122 = vunpack.c.0.s8 %v2121
        %v2123 = vlaneseq
        %v2124 = vshrl.u32 %v2123, 7
        %v2125 = vsub.s32 %v2122, %v2124
        %v2126 = vrot.slane %v2055, %v2125
        %v2128 = vunpack.c.l.s4 1983009808
        %v2129 = vunpack.c.0.s8 %v2128
        %v2130 = vlaneseq
        %v2131 = vshrl.u32 %v2130, 7
        %v2132 = vsub.s32 %v2129, %v2131
        %v2133 = vrot.slane %v2119, %v2132
        %v2134 = vcombine.high %v2126, %v2126
        %v2135 = vcombine.high %v2133, %v2133
        %v2136 = vcombine.high %v2056, %v2056
        %v2138 = vunpack.c.l.s4 1983009808
        %v2139 = vunpack.c.0.s8 %v2138
        %v2140 = vlaneseq
        %v2141 = vshrl.u32 %v2140, 7
        %v2142 = vsub.s32 %v2139, %v2141
        %v2143 = vrot.slane %v2056, %v2142
        %v2145 = vunpack.c.l.s4 1983009808
        %v2146 = vunpack.c.0.s8 %v2145
        %v2147 = vlaneseq
        %v2148 = vshrl.u32 %v2147, 7
        %v2149 = vsub.s32 %v2146, %v2148
        %v2150 = vrot.slane %v2136, %v2149
        %v2151 = vcombine.high %v2143, %v2143
        %v2152 = vcombine.high %v2150, %v2150
        %v2153 = vcombine.high %v2057, %v2057
        %v2155 = vunpack.c.l.s4 1983009808
        %v2156 = vunpack.c.0.s8 %v2155
        %v2157 = vlaneseq
        %v2158 = vshrl.u32 %v2157, 7
        %v2159 = vsub.s32 %v2156, %v2158
        %v2160 = vrot.slane %v2057, %v2159
        %v2162 = vunpack.c.l.s4 1983009808
        %v2163 = vunpack.c.0.s8 %v2162
        %v2164 = vlaneseq
        %v2165 = vshrl.u32 %v2164, 7
        %v2166 = vsub.s32 %v2163, %v2165
        %v2167 = vrot.slane %v2153, %v2166
        %v2168 = vcombine.high %v2160, %v2160
        %v2169 = vcombine.high %v2167, %v2167
        %v2170 = vcombine.high %v2058, %v2058
        %v2172 = vunpack.c.l.s4 1983009808
        %v2173 = vunpack.c.0.s8 %v2172
        %v2174 = vlaneseq
        %v2175 = vshrl.u32 %v2174, 7
        %v2176 = vsub.s32 %v2173, %v2175
        %v2177 = vrot.slane %v2058, %v2176
        %v2179 = vunpack.c.l.s4 1983009808
        %v2180 = vunpack.c.0.s8 %v2179
        %v2181 = vlaneseq
        %v2182 = vshrl.u32 %v2181, 7
        %v2183 = vsub.s32 %v2180, %v2182
        %v2184 = vrot.slane %v2170, %v2183
        %v2185 = vcombine.high %v2177, %v2177
        %v2186 = vcombine.high %v2184, %v2184
        %v2187 = vcombine.high %v2059, %v2059
        %v2189 = vunpack.c.l.s4 1983009808
        %v2190 = vunpack.c.0.s8 %v2189
        %v2191 = vlaneseq
        %v2192 = vshrl.u32 %v2191, 7
        %v2193 = vsub.s32 %v2190, %v2192
        %v2194 = vrot.slane %v2059, %v2193
        %v2196 = vunpack.c.l.s4 1983009808
        %v2197 = vunpack.c.0.s8 %v2196
        %v2198 = vlaneseq
        %v2199 = vshrl.u32 %v2198, 7
        %v2200 = vsub.s32 %v2197, %v2199
        %v2201 = vrot.slane %v2187, %v2200
        %v2202 = vcombine.high %v2194, %v2194
        %v2203 = vcombine.high %v2201, %v2201
        %v2204 = vcombine.high %v2060, %v2060
        %v2206 = vunpack.c.l.s4 1983009808
        %v2207 = vunpack.c.0.s8 %v2206
        %v2208 = vlaneseq
        %v2209 = vshrl.u32 %v2208, 7
        %v2210 = vsub.s32 %v2207, %v2209
        %v2211 = vrot.slane %v2060, %v2210
        %v2213 = vunpack.c.l.s4 1983009808
        %v2214 = vunpack.c.0.s8 %v2213
        %v2215 = vlaneseq
        %v2216 = vshrl.u32 %v2215, 7
        %v2217 = vsub.s32 %v2214, %v2216
        %v2218 = vrot.slane %v2204, %v2217
        %v2219 = vcombine.high %v2211, %v2211
        %v2220 = vcombine.high %v2218, %v2218
        %v2221 = vcombine.high %v2061, %v2061
        %v2223 = vunpack.c.l.s4 1983009808
        %v2224 = vunpack.c.0.s8 %v2223
        %v2225 = vlaneseq
        %v2226 = vshrl.u32 %v2225, 7
        %v2227 = vsub.s32 %v2224, %v2226
        %v2228 = vrot.slane %v2061, %v2227
        %v2230 = vunpack.c.l.s4 1983009808
        %v2231 = vunpack.c.0.s8 %v2230
        %v2232 = vlaneseq
        %v2233 = vshrl.u32 %v2232, 7
        %v2234 = vsub.s32 %v2231, %v2233
        %v2235 = vrot.slane %v2221, %v2234
        %v2236 = vcombine.high %v2228, %v2228
        %v2237 = vcombine.high %v2235, %v2235
        %v2238 = vcombine.high %v2062, %v2062
        %v2240 = vunpack.c.l.s4 1983009808
        %v2241 = vunpack.c.0.s8 %v2240
        %v2242 = vlaneseq
        %v2243 = vshrl.u32 %v2242, 7
        %v2244 = vsub.s32 %v2241, %v2243
        %v2245 = vrot.slane %v2062, %v2244
        %v2247 = vunpack.c.l.s4 1983009808
        %v2248 = vunpack.c.0.s8 %v2247
        %v2249 = vlaneseq
        %v2250 = vshrl.u32 %v2249, 7
        %v2251 = vsub.s32 %v2248, %v2250
        %v2252 = vrot.slane %v2238, %v2251
        %v2253 = vcombine.high %v2245, %v2245
        %v2254 = vcombine.high %v2252, %v2252
        %v2255 = vcombine.high %v2063, %v2063
        %v2257 = vunpack.c.l.s4 1983009808
        %v2258 = vunpack.c.0.s8 %v2257
        %v2259 = vlaneseq
        %v2260 = vshrl.u32 %v2259, 7
        %v2261 = vsub.s32 %v2258, %v2260
        %v2262 = vrot.slane %v2063, %v2261
        %v2264 = vunpack.c.l.s4 1983009808
        %v2265 = vunpack.c.0.s8 %v2264
        %v2266 = vlaneseq
        %v2267 = vshrl.u32 %v2266, 7
        %v2268 = vsub.s32 %v2265, %v2267
        %v2269 = vrot.slane %v2255, %v2268
        %v2270 = vcombine.high %v2262, %v2262
        %v2271 = vcombine.high %v2269, %v2269
        %v2272 = vcombine.high %v2064, %v2064
        %v2274 = vunpack.c.l.s4 1983009808
        %v2275 = vunpack.c.0.s8 %v2274
        %v2276 = vlaneseq
        %v2277 = vshrl.u32 %v2276, 7
        %v2278 = vsub.s32 %v2275, %v2277
        %v2279 = vrot.slane %v2064, %v2278
        %v2281 = vunpack.c.l.s4 1983009808
        %v2282 = vunpack.c.0.s8 %v2281
        %v2283 = vlaneseq
        %v2284 = vshrl.u32 %v2283, 7
        %v2285 = vsub.s32 %v2282, %v2284
        %v2286 = vrot.slane %v2272, %v2285
        %v2287 = vcombine.high %v2279, %v2279
        %v2288 = vcombine.high %v2286, %v2286
        %v2289 = vcombine.high %v2065, %v2065
        %v2291 = vunpack.c.l.s4 1983009808
        %v2292 = vunpack.c.0.s8 %v2291
        %v2293 = vlaneseq
        %v2294 = vshrl.u32 %v2293, 7
        %v2295 = vsub.s32 %v2292, %v2294
        %v2296 = vrot.slane %v2065, %v2295
        %v2298 = vunpack.c.l.s4 1983009808
        %v2299 = vunpack.c.0.s8 %v2298
        %v2300 = vlaneseq
        %v2301 = vshrl.u32 %v2300, 7
        %v2302 = vsub.s32 %v2299, %v2301
        %v2303 = vrot.slane %v2289, %v2302
        %v2304 = vcombine.high %v2296, %v2296
        %v2305 = vcombine.high %v2303, %v2303
        %v2306 = vcombine.high %v2066, %v2066
        %v2308 = vunpack.c.l.s4 1983009808
        %v2309 = vunpack.c.0.s8 %v2308
        %v2310 = vlaneseq
        %v2311 = vshrl.u32 %v2310, 7
        %v2312 = vsub.s32 %v2309, %v2311
        %v2313 = vrot.slane %v2066, %v2312
        %v2315 = vunpack.c.l.s4 1983009808
        %v2316 = vunpack.c.0.s8 %v2315
        %v2317 = vlaneseq
        %v2318 = vshrl.u32 %v2317, 7
        %v2319 = vsub.s32 %v2316, %v2318
        %v2320 = vrot.slane %v2306, %v2319
        %v2321 = vcombine.high %v2313, %v2313
        %v2322 = vcombine.high %v2320, %v2320
        %v2323 = vcombine.high %v2067, %v2067
        %v2325 = vunpack.c.l.s4 1983009808
        %v2326 = vunpack.c.0.s8 %v2325
        %v2327 = vlaneseq
        %v2328 = vshrl.u32 %v2327, 7
        %v2329 = vsub.s32 %v2326, %v2328
        %v2330 = vrot.slane %v2067, %v2329
        %v2332 = vunpack.c.l.s4 1983009808
        %v2333 = vunpack.c.0.s8 %v2332
        %v2334 = vlaneseq
        %v2335 = vshrl.u32 %v2334, 7
        %v2336 = vsub.s32 %v2333, %v2335
        %v2337 = vrot.slane %v2323, %v2336
        %v2338 = vcombine.high %v2330, %v2330
        %v2339 = vcombine.high %v2337, %v2337
        %v2340 = vcombine.high %v2068, %v2068
        %v2342 = vunpack.c.l.s4 1983009808
        %v2343 = vunpack.c.0.s8 %v2342
        %v2344 = vlaneseq
        %v2345 = vshrl.u32 %v2344, 7
        %v2346 = vsub.s32 %v2343, %v2345
        %v2347 = vrot.slane %v2068, %v2346
        %v2349 = vunpack.c.l.s4 1983009808
        %v2350 = vunpack.c.0.s8 %v2349
        %v2351 = vlaneseq
        %v2352 = vshrl.u32 %v2351, 7
        %v2353 = vsub.s32 %v2350, %v2352
        %v2354 = vrot.slane %v2340, %v2353
        %v2355 = vcombine.high %v2347, %v2347
        %v2356 = vcombine.high %v2354, %v2354
        %v2357 = vcombine.high %v2069, %v2069
        %v2359 = vunpack.c.l.s4 1983009808
        %v2360 = vunpack.c.0.s8 %v2359
        %v2361 = vlaneseq
        %v2362 = vshrl.u32 %v2361, 7
        %v2363 = vsub.s32 %v2360, %v2362
        %v2364 = vrot.slane %v2069, %v2363
        %v2366 = vunpack.c.l.s4 1983009808
        %v2367 = vunpack.c.0.s8 %v2366
        %v2368 = vlaneseq
        %v2369 = vshrl.u32 %v2368, 7
        %v2370 = vsub.s32 %v2367, %v2369
        %v2371 = vrot.slane %v2357, %v2370
        %v2372 = vcombine.high %v2364, %v2364
        %v2373 = vcombine.high %v2371, %v2371
        %v2374 = vcombine.high %v2070, %v2070
        %v2376 = vunpack.c.l.s4 1983009808
        %v2377 = vunpack.c.0.s8 %v2376
        %v2378 = vlaneseq
        %v2379 = vshrl.u32 %v2378, 7
        %v2380 = vsub.s32 %v2377, %v2379
        %v2381 = vrot.slane %v2070, %v2380
        %v2383 = vunpack.c.l.s4 1983009808
        %v2384 = vunpack.c.0.s8 %v2383
        %v2385 = vlaneseq
        %v2386 = vshrl.u32 %v2385, 7
        %v2387 = vsub.s32 %v2384, %v2386
        %v2388 = vrot.slane %v2374, %v2387
        %v2389 = vcombine.high %v2381, %v2381
        %v2390 = vcombine.high %v2388, %v2388
        %v2391 = vcombine.high %v2071, %v2071
        %v2393 = vunpack.c.l.s4 1983009808
        %v2394 = vunpack.c.0.s8 %v2393
        %v2395 = vlaneseq
        %v2396 = vshrl.u32 %v2395, 7
        %v2397 = vsub.s32 %v2394, %v2396
        %v2398 = vrot.slane %v2071, %v2397
        %v2400 = vunpack.c.l.s4 1983009808
        %v2401 = vunpack.c.0.s8 %v2400
        %v2402 = vlaneseq
        %v2403 = vshrl.u32 %v2402, 7
        %v2404 = vsub.s32 %v2401, %v2403
        %v2405 = vrot.slane %v2391, %v2404
        %v2406 = vcombine.high %v2398, %v2398
        %v2407 = vcombine.high %v2405, %v2405
        %v2408 = vcombine.high %v2072, %v2072
        %v2410 = vunpack.c.l.s4 1983009808
        %v2411 = vunpack.c.0.s8 %v2410
        %v2412 = vlaneseq
        %v2413 = vshrl.u32 %v2412, 7
        %v2414 = vsub.s32 %v2411, %v2413
        %v2415 = vrot.slane %v2072, %v2414
        %v2417 = vunpack.c.l.s4 1983009808
        %v2418 = vunpack.c.0.s8 %v2417
        %v2419 = vlaneseq
        %v2420 = vshrl.u32 %v2419, 7
        %v2421 = vsub.s32 %v2418, %v2420
        %v2422 = vrot.slane %v2408, %v2421
        %v2423 = vcombine.high %v2415, %v2415
        %v2424 = vcombine.high %v2422, %v2422
        %v2425 = vcombine.high %v2073, %v2073
        %v2427 = vunpack.c.l.s4 1983009808
        %v2428 = vunpack.c.0.s8 %v2427
        %v2429 = vlaneseq
        %v2430 = vshrl.u32 %v2429, 7
        %v2431 = vsub.s32 %v2428, %v2430
        %v2432 = vrot.slane %v2073, %v2431
        %v2434 = vunpack.c.l.s4 1983009808
        %v2435 = vunpack.c.0.s8 %v2434
        %v2436 = vlaneseq
        %v2437 = vshrl.u32 %v2436, 7
        %v2438 = vsub.s32 %v2435, %v2437
        %v2439 = vrot.slane %v2425, %v2438
        %v2440 = vcombine.high %v2432, %v2432
        %v2441 = vcombine.high %v2439, %v2439
        %v2442 = vcombine.high %v2074, %v2074
        %v2444 = vunpack.c.l.s4 1983009808
        %v2445 = vunpack.c.0.s8 %v2444
        %v2446 = vlaneseq
        %v2447 = vshrl.u32 %v2446, 7
        %v2448 = vsub.s32 %v2445, %v2447
        %v2449 = vrot.slane %v2074, %v2448
        %v2451 = vunpack.c.l.s4 1983009808
        %v2452 = vunpack.c.0.s8 %v2451
        %v2453 = vlaneseq
        %v2454 = vshrl.u32 %v2453, 7
        %v2455 = vsub.s32 %v2452, %v2454
        %v2456 = vrot.slane %v2442, %v2455
        %v2457 = vcombine.high %v2449, %v2449
        %v2458 = vcombine.high %v2456, %v2456
        %v2459 = vcombine.high %v2075, %v2075
        %v2461 = vunpack.c.l.s4 1983009808
        %v2462 = vunpack.c.0.s8 %v2461
        %v2463 = vlaneseq
        %v2464 = vshrl.u32 %v2463, 7
        %v2465 = vsub.s32 %v2462, %v2464
        %v2466 = vrot.slane %v2075, %v2465
        %v2468 = vunpack.c.l.s4 1983009808
        %v2469 = vunpack.c.0.s8 %v2468
        %v2470 = vlaneseq
        %v2471 = vshrl.u32 %v2470, 7
        %v2472 = vsub.s32 %v2469, %v2471
        %v2473 = vrot.slane %v2459, %v2472
        %v2474 = vcombine.high %v2466, %v2466
        %v2475 = vcombine.high %v2473, %v2473
        %v2476 = vcombine.high %v2076, %v2076
        %v2478 = vunpack.c.l.s4 1983009808
        %v2479 = vunpack.c.0.s8 %v2478
        %v2480 = vlaneseq
        %v2481 = vshrl.u32 %v2480, 7
        %v2482 = vsub.s32 %v2479, %v2481
        %v2483 = vrot.slane %v2076, %v2482
        %v2485 = vunpack.c.l.s4 1983009808
        %v2486 = vunpack.c.0.s8 %v2485
        %v2487 = vlaneseq
        %v2488 = vshrl.u32 %v2487, 7
        %v2489 = vsub.s32 %v2486, %v2488
        %v2490 = vrot.slane %v2476, %v2489
        %v2491 = vcombine.high %v2483, %v2483
        %v2492 = vcombine.high %v2490, %v2490
        %v2493 = vcombine.high %v2077, %v2077
        %v2495 = vunpack.c.l.s4 1983009808
        %v2496 = vunpack.c.0.s8 %v2495
        %v2497 = vlaneseq
        %v2498 = vshrl.u32 %v2497, 7
        %v2499 = vsub.s32 %v2496, %v2498
        %v2500 = vrot.slane %v2077, %v2499
        %v2502 = vunpack.c.l.s4 1983009808
        %v2503 = vunpack.c.0.s8 %v2502
        %v2504 = vlaneseq
        %v2505 = vshrl.u32 %v2504, 7
        %v2506 = vsub.s32 %v2503, %v2505
        %v2507 = vrot.slane %v2493, %v2506
        %v2508 = vcombine.high %v2500, %v2500
        %v2509 = vcombine.high %v2507, %v2507
        %v2510 = vcombine.high %v2078, %v2078
        %v2512 = vunpack.c.l.s4 1983009808
        %v2513 = vunpack.c.0.s8 %v2512
        %v2514 = vlaneseq
        %v2515 = vshrl.u32 %v2514, 7
        %v2516 = vsub.s32 %v2513, %v2515
        %v2517 = vrot.slane %v2078, %v2516
        %v2519 = vunpack.c.l.s4 1983009808
        %v2520 = vunpack.c.0.s8 %v2519
        %v2521 = vlaneseq
        %v2522 = vshrl.u32 %v2521, 7
        %v2523 = vsub.s32 %v2520, %v2522
        %v2524 = vrot.slane %v2510, %v2523
        %v2525 = vcombine.high %v2517, %v2517
        %v2526 = vcombine.high %v2524, %v2524
        %v2527 = vcombine.high %v2079, %v2079
        %v2529 = vunpack.c.l.s4 1983009808
        %v2530 = vunpack.c.0.s8 %v2529
        %v2531 = vlaneseq
        %v2532 = vshrl.u32 %v2531, 7
        %v2533 = vsub.s32 %v2530, %v2532
        %v2534 = vrot.slane %v2079, %v2533
        %v2536 = vunpack.c.l.s4 1983009808
        %v2537 = vunpack.c.0.s8 %v2536
        %v2538 = vlaneseq
        %v2539 = vshrl.u32 %v2538, 7
        %v2540 = vsub.s32 %v2537, %v2539
        %v2541 = vrot.slane %v2527, %v2540
        %v2542 = vcombine.high %v2534, %v2534
        %v2543 = vcombine.high %v2541, %v2541
        %v2544 = vcombine.high %v2080, %v2080
        %v2546 = vunpack.c.l.s4 1983009808
        %v2547 = vunpack.c.0.s8 %v2546
        %v2548 = vlaneseq
        %v2549 = vshrl.u32 %v2548, 7
        %v2550 = vsub.s32 %v2547, %v2549
        %v2551 = vrot.slane %v2080, %v2550
        %v2553 = vunpack.c.l.s4 1983009808
        %v2554 = vunpack.c.0.s8 %v2553
        %v2555 = vlaneseq
        %v2556 = vshrl.u32 %v2555, 7
        %v2557 = vsub.s32 %v2554, %v2556
        %v2558 = vrot.slane %v2544, %v2557
        %v2559 = vcombine.high %v2551, %v2551
        %v2560 = vcombine.high %v2558, %v2558
        %v2561 = vcombine.high %v2081, %v2081
        %v2563 = vunpack.c.l.s4 1983009808
        %v2564 = vunpack.c.0.s8 %v2563
        %v2565 = vlaneseq
        %v2566 = vshrl.u32 %v2565, 7
        %v2567 = vsub.s32 %v2564, %v2566
        %v2568 = vrot.slane %v2081, %v2567
        %v2570 = vunpack.c.l.s4 1983009808
        %v2571 = vunpack.c.0.s8 %v2570
        %v2572 = vlaneseq
        %v2573 = vshrl.u32 %v2572, 7
        %v2574 = vsub.s32 %v2571, %v2573
        %v2575 = vrot.slane %v2561, %v2574
        %v2576 = vcombine.high %v2568, %v2568
        %v2577 = vcombine.high %v2575, %v2575
        %v2578 = vcombine.high %v2082, %v2082
        %v2580 = vunpack.c.l.s4 1983009808
        %v2581 = vunpack.c.0.s8 %v2580
        %v2582 = vlaneseq
        %v2583 = vshrl.u32 %v2582, 7
        %v2584 = vsub.s32 %v2581, %v2583
        %v2585 = vrot.slane %v2082, %v2584
        %v2587 = vunpack.c.l.s4 1983009808
        %v2588 = vunpack.c.0.s8 %v2587
        %v2589 = vlaneseq
        %v2590 = vshrl.u32 %v2589, 7
        %v2591 = vsub.s32 %v2588, %v2590
        %v2592 = vrot.slane %v2578, %v2591
        %v2593 = vcombine.high %v2585, %v2585
        %v2594 = vcombine.high %v2592, %v2592
        %v2595 = vcombine.high %v2083, %v2083
        %v2597 = vunpack.c.l.s4 1983009808
        %v2598 = vunpack.c.0.s8 %v2597
        %v2599 = vlaneseq
        %v2600 = vshrl.u32 %v2599, 7
        %v2601 = vsub.s32 %v2598, %v2600
        %v2602 = vrot.slane %v2083, %v2601
        %v2604 = vunpack.c.l.s4 1983009808
        %v2605 = vunpack.c.0.s8 %v2604
        %v2606 = vlaneseq
        %v2607 = vshrl.u32 %v2606, 7
        %v2608 = vsub.s32 %v2605, %v2607
        %v2609 = vrot.slane %v2595, %v2608
        %v2610 = vcombine.high %v2602, %v2602
        %v2611 = vcombine.high %v2609, %v2609
        %v2612 = vcombine.high %v2084, %v2084
        %v2614 = vunpack.c.l.s4 1983009808
        %v2615 = vunpack.c.0.s8 %v2614
        %v2616 = vlaneseq
        %v2617 = vshrl.u32 %v2616, 7
        %v2618 = vsub.s32 %v2615, %v2617
        %v2619 = vrot.slane %v2084, %v2618
        %v2621 = vunpack.c.l.s4 1983009808
        %v2622 = vunpack.c.0.s8 %v2621
        %v2623 = vlaneseq
        %v2624 = vshrl.u32 %v2623, 7
        %v2625 = vsub.s32 %v2622, %v2624
        %v2626 = vrot.slane %v2612, %v2625
        %v2627 = vcombine.high %v2619, %v2619
        %v2628 = vcombine.high %v2626, %v2626
        %v2629 = vcombine.high %v2085, %v2085
        %v2631 = vunpack.c.l.s4 1983009808
        %v2632 = vunpack.c.0.s8 %v2631
        %v2633 = vlaneseq
        %v2634 = vshrl.u32 %v2633, 7
        %v2635 = vsub.s32 %v2632, %v2634
        %v2636 = vrot.slane %v2085, %v2635
        %v2638 = vunpack.c.l.s4 1983009808
        %v2639 = vunpack.c.0.s8 %v2638
        %v2640 = vlaneseq
        %v2641 = vshrl.u32 %v2640, 7
        %v2642 = vsub.s32 %v2639, %v2641
        %v2643 = vrot.slane %v2629, %v2642
        %v2644 = vcombine.high %v2636, %v2636
        %v2645 = vcombine.high %v2643, %v2643
        %v2646 = vcombine.high %v2086, %v2086
        %v2648 = vunpack.c.l.s4 1983009808
        %v2649 = vunpack.c.0.s8 %v2648
        %v2650 = vlaneseq
        %v2651 = vshrl.u32 %v2650, 7
        %v2652 = vsub.s32 %v2649, %v2651
        %v2653 = vrot.slane %v2086, %v2652
        %v2655 = vunpack.c.l.s4 1983009808
        %v2656 = vunpack.c.0.s8 %v2655
        %v2657 = vlaneseq
        %v2658 = vshrl.u32 %v2657, 7
        %v2659 = vsub.s32 %v2656, %v2658
        %v2660 = vrot.slane %v2646, %v2659
        %v2661 = vcombine.high %v2653, %v2653
        %v2662 = vcombine.high %v2660, %v2660
        %v2791 = vrot.slane %v2126, 7
        %v2792 = vrot.slane %v2791, 2
        %v2793 = vrot.slane %v2134, 7
        %v2794 = vrot.slane %v2793, 2
        %v2795 = vrot.slane %v2133, 7
        %v2796 = vrot.slane %v2795, 2
        %v2797 = vrot.slane %v2135, 7
        %v2798 = vrot.slane %v2797, 2
        %v2799 = vrot.slane %v2143, 7
        %v2800 = vrot.slane %v2799, 2
        %v2801 = vrot.slane %v2151, 7
        %v2802 = vrot.slane %v2801, 2
        %v2803 = vrot.slane %v2150, 7
        %v2804 = vrot.slane %v2803, 2
        %v2805 = vrot.slane %v2152, 7
        %v2806 = vrot.slane %v2805, 2
        %v2807 = vrot.slane %v2160, 7
        %v2808 = vrot.slane %v2807, 2
        %v2809 = vrot.slane %v2168, 7
        %v2810 = vrot.slane %v2809, 2
        %v2811 = vrot.slane %v2167, 7
        %v2812 = vrot.slane %v2811, 2
        %v2813 = vrot.slane %v2169, 7
        %v2814 = vrot.slane %v2813, 2
        %v2815 = vrot.slane %v2177, 7
        %v2816 = vrot.slane %v2815, 2
        %v2817 = vrot.slane %v2185, 7
        %v2818 = vrot.slane %v2817, 2
        %v2819 = vrot.slane %v2184, 7
        %v2820 = vrot.slane %v2819, 2
        %v2821 = vrot.slane %v2186, 7
        %v2822 = vrot.slane %v2821, 2
        %v2823 = vrot.slane %v2194, 7
        %v2824 = vrot.slane %v2823, 2
        %v2825 = vrot.slane %v2202, 7
        %v2826 = vrot.slane %v2825, 2
        %v2827 = vrot.slane %v2201, 7
        %v2828 = vrot.slane %v2827, 2
        %v2829 = vrot.slane %v2203, 7
        %v2830 = vrot.slane %v2829, 2
        %v2831 = vrot.slane %v2211, 7
        %v2832 = vrot.slane %v2831, 2
        %v2833 = vrot.slane %v2219, 7
        %v2834 = vrot.slane %v2833, 2
        %v2835 = vrot.slane %v2218, 7
        %v2836 = vrot.slane %v2835, 2
        %v2837 = vrot.slane %v2220, 7
        %v2838 = vrot.slane %v2837, 2
        %v2839 = vrot.slane %v2228, 7
        %v2840 = vrot.slane %v2839, 2
        %v2841 = vrot.slane %v2236, 7
        %v2842 = vrot.slane %v2841, 2
        %v2843 = vrot.slane %v2235, 7
        %v2844 = vrot.slane %v2843, 2
        %v2845 = vrot.slane %v2237, 7
        %v2846 = vrot.slane %v2845, 2
        %v2847 = vrot.slane %v2245, 7
        %v2848 = vrot.slane %v2847, 2
        %v2849 = vrot.slane %v2253, 7
        %v2850 = vrot.slane %v2849, 2
        %v2851 = vrot.slane %v2252, 7
        %v2852 = vrot.slane %v2851, 2
        %v2853 = vrot.slane %v2254, 7
        %v2854 = vrot.slane %v2853, 2
        %v2855 = vrot.slane %v2262, 7
        %v2856 = vrot.slane %v2855, 2
        %v2857 = vrot.slane %v2270, 7
        %v2858 = vrot.slane %v2857, 2
        %v2859 = vrot.slane %v2269, 7
        %v2860 = vrot.slane %v2859, 2
        %v2861 = vrot.slane %v2271, 7
        %v2862 = vrot.slane %v2861, 2
        %v2863 = vrot.slane %v2279, 7
        %v2864 = vrot.slane %v2863, 2
        %v2865 = vrot.slane %v2287, 7
        %v2866 = vrot.slane %v2865, 2
        %v2867 = vrot.slane %v2286, 7
        %v2868 = vrot.slane %v2867, 2
        %v2869 = vrot.slane %v2288, 7
        %v2870 = vrot.slane %v2869, 2
        %v2871 = vrot.slane %v2296, 7
        %v2872 = vrot.slane %v2871, 2
        %v2873 = vrot.slane %v2304, 7
        %v2874 = vrot.slane %v2873, 2
        %v2875 = vrot.slane %v2303, 7
        %v2876 = vrot.slane %v2875, 2
        %v2877 = vrot.slane %v2305, 7
        %v2878 = vrot.slane %v2877, 2
        %v2879 = vrot.slane %v2313, 7
        %v2880 = vrot.slane %v2879, 2
        %v2881 = vrot.slane %v2321, 7
        %v2882 = vrot.slane %v2881, 2
        %v2883 = vrot.slane %v2320, 7
        %v2884 = vrot.slane %v2883, 2
        %v2885 = vrot.slane %v2322, 7
        %v2886 = vrot.slane %v2885, 2
        %v2887 = vrot.slane %v2330, 7
        %v2888 = vrot.slane %v2887, 2
        %v2889 = vrot.slane %v2338, 7
        %v2890 = vrot.slane %v2889, 2
        %v2891 = vrot.slane %v2337, 7
        %v2892 = vrot.slane %v2891, 2
        %v2893 = vrot.slane %v2339, 7
        %v2894 = vrot.slane %v2893, 2
        %v2895 = vrot.slane %v2347, 7
        %v2896 = vrot.slane %v2895, 2
        %v2897 = vrot.slane %v2355, 7
        %v2898 = vrot.slane %v2897, 2
        %v2899 = vrot.slane %v2354, 7
        %v2900 = vrot.slane %v2899, 2
        %v2901 = vrot.slane %v2356, 7
        %v2902 = vrot.slane %v2901, 2
        %v2903 = vrot.slane %v2364, 7
        %v2904 = vrot.slane %v2903, 2
        %v2905 = vrot.slane %v2372, 7
        %v2906 = vrot.slane %v2905, 2
        %v2907 = vrot.slane %v2371, 7
        %v2908 = vrot.slane %v2907, 2
        %v2909 = vrot.slane %v2373, 7
        %v2910 = vrot.slane %v2909, 2
        %v2911 = vrot.slane %v2381, 7
        %v2912 = vrot.slane %v2911, 2
        %v2913 = vrot.slane %v2389, 7
        %v2914 = vrot.slane %v2913, 2
        %v2915 = vrot.slane %v2388, 7
        %v2916 = vrot.slane %v2915, 2
        %v2917 = vrot.slane %v2390, 7
        %v2918 = vrot.slane %v2917, 2
        %v2919 = vrot.slane %v2398, 7
        %v2920 = vrot.slane %v2919, 2
        %v2921 = vrot.slane %v2406, 7
        %v2922 = vrot.slane %v2921, 2
        %v2923 = vrot.slane %v2405, 7
        %v2924 = vrot.slane %v2923, 2
        %v2925 = vrot.slane %v2407, 7
        %v2926 = vrot.slane %v2925, 2
        %v2927 = vrot.slane %v2415, 7
        %v2928 = vrot.slane %v2927, 2
        %v2929 = vrot.slane %v2423, 7
        %v2930 = vrot.slane %v2929, 2
        %v2931 = vrot.slane %v2422, 7
        %v2932 = vrot.slane %v2931, 2
        %v2933 = vrot.slane %v2424, 7
        %v2934 = vrot.slane %v2933, 2
        %v2935 = vrot.slane %v2432, 7
        %v2936 = vrot.slane %v2935, 2
        %v2937 = vrot.slane %v2440, 7
        %v2938 = vrot.slane %v2937, 2
        %v2939 = vrot.slane %v2439, 7
        %v2940 = vrot.slane %v2939, 2
        %v2941 = vrot.slane %v2441, 7
        %v2942 = vrot.slane %v2941, 2
        %v2943 = vrot.slane %v2449, 7
        %v2944 = vrot.slane %v2943, 2
        %v2945 = vrot.slane %v2457, 7
        %v2946 = vrot.slane %v2945, 2
        %v2947 = vrot.slane %v2456, 7
        %v2948 = vrot.slane %v2947, 2
        %v2949 = vrot.slane %v2458, 7
        %v2950 = vrot.slane %v2949, 2
        %v2951 = vrot.slane %v2466, 7
        %v2952 = vrot.slane %v2951, 2
        %v2953 = vrot.slane %v2474, 7
        %v2954 = vrot.slane %v2953, 2
        %v2955 = vrot.slane %v2473, 7
        %v2956 = vrot.slane %v2955, 2
        %v2957 = vrot.slane %v2475, 7
        %v2958 = vrot.slane %v2957, 2
        %v2959 = vrot.slane %v2483, 7
        %v2960 = vrot.slane %v2959, 2
        %v2961 = vrot.slane %v2491, 7
        %v2962 = vrot.slane %v2961, 2
        %v2963 = vrot.slane %v2490, 7
        %v2964 = vrot.slane %v2963, 2
        %v2965 = vrot.slane %v2492, 7
        %v2966 = vrot.slane %v2965, 2
        %v2967 = vrot.slane %v2500, 7
        %v2968 = vrot.slane %v2967, 2
        %v2969 = vrot.slane %v2508, 7
        %v2970 = vrot.slane %v2969, 2
        %v2971 = vrot.slane %v2507, 7
        %v2972 = vrot.slane %v2971, 2
        %v2973 = vrot.slane %v2509, 7
        %v2974 = vrot.slane %v2973, 2
        %v2975 = vrot.slane %v2517, 7
        %v2976 = vrot.slane %v2975, 2
        %v2977 = vrot.slane %v2525, 7
        %v2978 = vrot.slane %v2977, 2
        %v2979 = vrot.slane %v2524, 7
        %v2980 = vrot.slane %v2979, 2
        %v2981 = vrot.slane %v2526, 7
        %v2982 = vrot.slane %v2981, 2
        %v2983 = vrot.slane %v2534, 7
        %v2984 = vrot.slane %v2983, 2
        %v2985 = vrot.slane %v2542, 7
        %v2986 = vrot.slane %v2985, 2
        %v2987 = vrot.slane %v2541, 7
        %v2988 = vrot.slane %v2987, 2
        %v2989 = vrot.slane %v2543, 7
        %v2990 = vrot.slane %v2989, 2
        %v2991 = vrot.slane %v2551, 7
        %v2992 = vrot.slane %v2991, 2
        %v2993 = vrot.slane %v2559, 7
        %v2994 = vrot.slane %v2993, 2
        %v2995 = vrot.slane %v2558, 7
        %v2996 = vrot.slane %v2995, 2
        %v2997 = vrot.slane %v2560, 7
        %v2998 = vrot.slane %v2997, 2
        %v2999 = vrot.slane %v2568, 7
        %v3000 = vrot.slane %v2999, 2
        %v3001 = vrot.slane %v2576, 7
        %v3002 = vrot.slane %v3001, 2
        %v3003 = vrot.slane %v2575, 7
        %v3004 = vrot.slane %v3003, 2
        %v3005 = vrot.slane %v2577, 7
        %v3006 = vrot.slane %v3005, 2
        %v3007 = vrot.slane %v2585, 7
        %v3008 = vrot.slane %v3007, 2
        %v3009 = vrot.slane %v2593, 7
        %v3010 = vrot.slane %v3009, 2
        %v3011 = vrot.slane %v2592, 7
        %v3012 = vrot.slane %v3011, 2
        %v3013 = vrot.slane %v2594, 7
        %v3014 = vrot.slane %v3013, 2
        %v3015 = vrot.slane %v2602, 7
        %v3016 = vrot.slane %v3015, 2
        %v3017 = vrot.slane %v2610, 7
        %v3018 = vrot.slane %v3017, 2
        %v3019 = vrot.slane %v2609, 7
        %v3020 = vrot.slane %v3019, 2
        %v3021 = vrot.slane %v2611, 7
        %v3022 = vrot.slane %v3021, 2
        %v3023 = vrot.slane %v2619, 7
        %v3024 = vrot.slane %v3023, 2
        %v3025 = vrot.slane %v2627, 7
        %v3026 = vrot.slane %v3025, 2
        %v3027 = vrot.slane %v2626, 7
        %v3028 = vrot.slane %v3027, 2
        %v3029 = vrot.slane %v2628, 7
        %v3030 = vrot.slane %v3029, 2
        %v3031 = vrot.slane %v2636, 7
        %v3032 = vrot.slane %v3031, 2
        %v3033 = vrot.slane %v2644, 7
        %v3034 = vrot.slane %v3033, 2
        %v3035 = vrot.slane %v2643, 7
        %v3036 = vrot.slane %v3035, 2
        %v3037 = vrot.slane %v2645, 7
        %v3038 = vrot.slane %v3037, 2
        %v3039 = vrot.slane %v2653, 7
        %v3040 = vrot.slane %v3039, 2
        %v3041 = vrot.slane %v2661, 7
        %v3042 = vrot.slane %v3041, 2
        %v3043 = vrot.slane %v2660, 7
        %v3044 = vrot.slane %v3043, 2
        %v3045 = vrot.slane %v2662, 7
        %v3046 = vrot.slane %v3045, 2
        %v3175 = vmax.f32 %v2126, %v2792
        %v3176 = vmax.f32 %v2134, %v2794
        %v3177 = vmax.f32 %v2133, %v2796
        %v3178 = vmax.f32 %v2135, %v2798
        %v3179 = vmax.f32 %v2143, %v2800
        %v3180 = vmax.f32 %v2151, %v2802
        %v3181 = vmax.f32 %v2150, %v2804
        %v3182 = vmax.f32 %v2152, %v2806
        %v3183 = vmax.f32 %v2160, %v2808
        %v3184 = vmax.f32 %v2168, %v2810
        %v3185 = vmax.f32 %v2167, %v2812
        %v3186 = vmax.f32 %v2169, %v2814
        %v3187 = vmax.f32 %v2177, %v2816
        %v3188 = vmax.f32 %v2185, %v2818
        %v3189 = vmax.f32 %v2184, %v2820
        %v3190 = vmax.f32 %v2186, %v2822
        %v3191 = vmax.f32 %v2194, %v2824
        %v3192 = vmax.f32 %v2202, %v2826
        %v3193 = vmax.f32 %v2201, %v2828
        %v3194 = vmax.f32 %v2203, %v2830
        %v3195 = vmax.f32 %v2211, %v2832
        %v3196 = vmax.f32 %v2219, %v2834
        %v3197 = vmax.f32 %v2218, %v2836
        %v3198 = vmax.f32 %v2220, %v2838
        %v3199 = vmax.f32 %v2228, %v2840
        %v3200 = vmax.f32 %v2236, %v2842
        %v3201 = vmax.f32 %v2235, %v2844
        %v3202 = vmax.f32 %v2237, %v2846
        %v3203 = vmax.f32 %v2245, %v2848
        %v3204 = vmax.f32 %v2253, %v2850
        %v3205 = vmax.f32 %v2252, %v2852
        %v3206 = vmax.f32 %v2254, %v2854
        %v3207 = vmax.f32 %v2262, %v2856
        %v3208 = vmax.f32 %v2270, %v2858
        %v3209 = vmax.f32 %v2269, %v2860
        %v3210 = vmax.f32 %v2271, %v2862
        %v3211 = vmax.f32 %v2279, %v2864
        %v3212 = vmax.f32 %v2287, %v2866
        %v3213 = vmax.f32 %v2286, %v2868
        %v3214 = vmax.f32 %v2288, %v2870
        %v3215 = vmax.f32 %v2296, %v2872
        %v3216 = vmax.f32 %v2304, %v2874
        %v3217 = vmax.f32 %v2303, %v2876
        %v3218 = vmax.f32 %v2305, %v2878
        %v3219 = vmax.f32 %v2313, %v2880
        %v3220 = vmax.f32 %v2321, %v2882
        %v3221 = vmax.f32 %v2320, %v2884
        %v3222 = vmax.f32 %v2322, %v2886
        %v3223 = vmax.f32 %v2330, %v2888
        %v3224 = vmax.f32 %v2338, %v2890
        %v3225 = vmax.f32 %v2337, %v2892
        %v3226 = vmax.f32 %v2339, %v2894
        %v3227 = vmax.f32 %v2347, %v2896
        %v3228 = vmax.f32 %v2355, %v2898
        %v3229 = vmax.f32 %v2354, %v2900
        %v3230 = vmax.f32 %v2356, %v2902
        %v3231 = vmax.f32 %v2364, %v2904
        %v3232 = vmax.f32 %v2372, %v2906
        %v3233 = vmax.f32 %v2371, %v2908
        %v3234 = vmax.f32 %v2373, %v2910
        %v3235 = vmax.f32 %v2381, %v2912
        %v3236 = vmax.f32 %v2389, %v2914
        %v3237 = vmax.f32 %v2388, %v2916
        %v3238 = vmax.f32 %v2390, %v2918
        %v3239 = vmax.f32 %v2398, %v2920
        %v3240 = vmax.f32 %v2406, %v2922
        %v3241 = vmax.f32 %v2405, %v2924
        %v3242 = vmax.f32 %v2407, %v2926
        %v3243 = vmax.f32 %v2415, %v2928
        %v3244 = vmax.f32 %v2423, %v2930
        %v3245 = vmax.f32 %v2422, %v2932
        %v3246 = vmax.f32 %v2424, %v2934
        %v3247 = vmax.f32 %v2432, %v2936
        %v3248 = vmax.f32 %v2440, %v2938
        %v3249 = vmax.f32 %v2439, %v2940
        %v3250 = vmax.f32 %v2441, %v2942
        %v3251 = vmax.f32 %v2449, %v2944
        %v3252 = vmax.f32 %v2457, %v2946
        %v3253 = vmax.f32 %v2456, %v2948
        %v3254 = vmax.f32 %v2458, %v2950
        %v3255 = vmax.f32 %v2466, %v2952
        %v3256 = vmax.f32 %v2474, %v2954
        %v3257 = vmax.f32 %v2473, %v2956
        %v3258 = vmax.f32 %v2475, %v2958
        %v3259 = vmax.f32 %v2483, %v2960
        %v3260 = vmax.f32 %v2491, %v2962
        %v3261 = vmax.f32 %v2490, %v2964
        %v3262 = vmax.f32 %v2492, %v2966
        %v3263 = vmax.f32 %v2500, %v2968
        %v3264 = vmax.f32 %v2508, %v2970
        %v3265 = vmax.f32 %v2507, %v2972
        %v3266 = vmax.f32 %v2509, %v2974
        %v3267 = vmax.f32 %v2517, %v2976
        %v3268 = vmax.f32 %v2525, %v2978
        %v3269 = vmax.f32 %v2524, %v2980
        %v3270 = vmax.f32 %v2526, %v2982
        %v3271 = vmax.f32 %v2534, %v2984
        %v3272 = vmax.f32 %v2542, %v2986
        %v3273 = vmax.f32 %v2541, %v2988
        %v3274 = vmax.f32 %v2543, %v2990
        %v3275 = vmax.f32 %v2551, %v2992
        %v3276 = vmax.f32 %v2559, %v2994
        %v3277 = vmax.f32 %v2558, %v2996
        %v3278 = vmax.f32 %v2560, %v2998
        %v3279 = vmax.f32 %v2568, %v3000
        %v3280 = vmax.f32 %v2576, %v3002
        %v3281 = vmax.f32 %v2575, %v3004
        %v3282 = vmax.f32 %v2577, %v3006
        %v3283 = vmax.f32 %v2585, %v3008
        %v3284 = vmax.f32 %v2593, %v3010
        %v3285 = vmax.f32 %v2592, %v3012
        %v3286 = vmax.f32 %v2594, %v3014
        %v3287 = vmax.f32 %v2602, %v3016
        %v3288 = vmax.f32 %v2610, %v3018
        %v3289 = vmax.f32 %v2609, %v3020
        %v3290 = vmax.f32 %v2611, %v3022
        %v3291 = vmax.f32 %v2619, %v3024
        %v3292 = vmax.f32 %v2627, %v3026
        %v3293 = vmax.f32 %v2626, %v3028
        %v3294 = vmax.f32 %v2628, %v3030
        %v3295 = vmax.f32 %v2636, %v3032
        %v3296 = vmax.f32 %v2644, %v3034
        %v3297 = vmax.f32 %v2643, %v3036
        %v3298 = vmax.f32 %v2645, %v3038
        %v3299 = vmax.f32 %v2653, %v3040
        %v3300 = vmax.f32 %v2661, %v3042
        %v3301 = vmax.f32 %v2660, %v3044
        %v3302 = vmax.f32 %v2662, %v3046
        %v3303 = vmax.f32 %v3175, %v3183
        %v3304 = vmax.f32 %v3176, %v3184
        %v3305 = vmax.f32 %v3177, %v3185
        %v3306 = vmax.f32 %v3178, %v3186
        %v3307 = vmax.f32 %v3179, %v3187
        %v3308 = vmax.f32 %v3180, %v3188
        %v3309 = vmax.f32 %v3181, %v3189
        %v3310 = vmax.f32 %v3182, %v3190
        %v3311 = vmax.f32 %v3191, %v3199
        %v3312 = vmax.f32 %v3192, %v3200
        %v3313 = vmax.f32 %v3193, %v3201
        %v3314 = vmax.f32 %v3194, %v3202
        %v3315 = vmax.f32 %v3195, %v3203
        %v3316 = vmax.f32 %v3196, %v3204
        %v3317 = vmax.f32 %v3197, %v3205
        %v3318 = vmax.f32 %v3198, %v3206
        %v3319 = vmax.f32 %v3207, %v3215
        %v3320 = vmax.f32 %v3208, %v3216
        %v3321 = vmax.f32 %v3209, %v3217
        %v3322 = vmax.f32 %v3210, %v3218
        %v3323 = vmax.f32 %v3211, %v3219
        %v3324 = vmax.f32 %v3212, %v3220
        %v3325 = vmax.f32 %v3213, %v3221
        %v3326 = vmax.f32 %v3214, %v3222
        %v3327 = vmax.f32 %v3223, %v3231
        %v3328 = vmax.f32 %v3224, %v3232
        %v3329 = vmax.f32 %v3225, %v3233
        %v3330 = vmax.f32 %v3226, %v3234
        %v3331 = vmax.f32 %v3227, %v3235
        %v3332 = vmax.f32 %v3228, %v3236
        %v3333 = vmax.f32 %v3229, %v3237
        %v3334 = vmax.f32 %v3230, %v3238
        %v3335 = vmax.f32 %v3239, %v3247
        %v3336 = vmax.f32 %v3240, %v3248
        %v3337 = vmax.f32 %v3241, %v3249
        %v3338 = vmax.f32 %v3242, %v3250
        %v3339 = vmax.f32 %v3243, %v3251
        %v3340 = vmax.f32 %v3244, %v3252
        %v3341 = vmax.f32 %v3245, %v3253
        %v3342 = vmax.f32 %v3246, %v3254
        %v3343 = vmax.f32 %v3255, %v3263
        %v3344 = vmax.f32 %v3256, %v3264
        %v3345 = vmax.f32 %v3257, %v3265
        %v3346 = vmax.f32 %v3258, %v3266
        %v3347 = vmax.f32 %v3259, %v3267
        %v3348 = vmax.f32 %v3260, %v3268
        %v3349 = vmax.f32 %v3261, %v3269
        %v3350 = vmax.f32 %v3262, %v3270
        %v3351 = vmax.f32 %v3271, %v3279
        %v3352 = vmax.f32 %v3272, %v3280
        %v3353 = vmax.f32 %v3273, %v3281
        %v3354 = vmax.f32 %v3274, %v3282
        %v3355 = vmax.f32 %v3275, %v3283
        %v3356 = vmax.f32 %v3276, %v3284
        %v3357 = vmax.f32 %v3277, %v3285
        %v3358 = vmax.f32 %v3278, %v3286
        %v3359 = vmax.f32 %v3287, %v3295
        %v3360 = vmax.f32 %v3288, %v3296
        %v3361 = vmax.f32 %v3289, %v3297
        %v3362 = vmax.f32 %v3290, %v3298
        %v3363 = vmax.f32 %v3291, %v3299
        %v3364 = vmax.f32 %v3292, %v3300
        %v3365 = vmax.f32 %v3293, %v3301
        %v3366 = vmax.f32 %v3294, %v3302
        %vm3367 = vcmask 64512
        %3368 = vst.msk [vmem:[#allocation3] sm:$0xff] %vm3367, 0.0
        %vm3369 = vcmask 58368
        %3370 = vst.msk [vmem:[#allocation3 + $0x8] sm:$0x3] %vm3369, 0.0
        %3371 = vst.msk [vmem:[#allocation3 + $0x10] sm:$0xff] %vm3367, 0.0
        %3372 = vst.msk [vmem:[#allocation3 + $0x18] sm:$0x3] %vm3369, 0.0
        %3373 = vst.msk [vmem:[#allocation3 + $0x20] sm:$0xff] %vm3367, 0.0
        %3374 = vst.msk [vmem:[#allocation3 + $0x28] sm:$0x3] %vm3369, 0.0
        %3375 = vst.msk [vmem:[#allocation3 + $0x30] sm:$0xff] %vm3367, 0.0
        %3376 = vst.msk [vmem:[#allocation3 + $0x38] sm:$0x3] %vm3369, 0.0
        %3377 = vst.msk [vmem:[#allocation3 + $0x40] sm:$0xff] %vm3367, 0.0
        %3378 = vst.msk [vmem:[#allocation3 + $0x48] sm:$0x3] %vm3369, 0.0
        %3379 = vst.msk [vmem:[#allocation3 + $0x50] sm:$0xff] %vm3367, 0.0
        %3380 = vst.msk [vmem:[#allocation3 + $0x58] sm:$0x3] %vm3369, 0.0
        %3381 = vst.msk [vmem:[#allocation3 + $0x60] sm:$0xff] %vm3367, 0.0
        %3382 = vst.msk [vmem:[#allocation3 + $0x68] sm:$0x3] %vm3369, 0.0
        %3383 = vst.msk [vmem:[#allocation3 + $0x70] sm:$0xff] %vm3367, 0.0
        %3384 = vst.msk [vmem:[#allocation3 + $0x78] sm:$0x3] %vm3369, 0.0
        %3385 = vst.msk [vmem:[#allocation3 + $0x80] sm:$0xff] %vm3367, 0.0
        %3386 = vst.msk [vmem:[#allocation3 + $0x88] sm:$0x3] %vm3369, 0.0
        %3387 = vst.msk [vmem:[#allocation3 + $0x90] sm:$0xff] %vm3367, 0.0
        %3388 = vst.msk [vmem:[#allocation3 + $0x98] sm:$0x3] %vm3369, 0.0
        %v3453 = vlaneseq
        %v3454 = vshrl.u32 %v3453, 7
        %v3455 = vsub.s32 0, %v3454
        %v3456 = vrot.slane %v3303, %v3455
        %v3457 = vlaneseq
        %v3458 = vshrl.u32 %v3457, 7
        %v3459 = vsub.s32 0, %v3458
        %v3460 = vrot.slane %v3304, %v3459
        %v3461 = vlaneseq
        %v3462 = vshrl.u32 %v3461, 7
        %v3463 = vsub.s32 0, %v3462
        %v3464 = vrot.slane %v3305, %v3463
        %v3465 = vlaneseq
        %v3466 = vshrl.u32 %v3465, 7
        %v3467 = vsub.s32 0, %v3466
        %v3468 = vrot.slane %v3306, %v3467
        %v3469 = vlaneseq
        %v3470 = vshrl.u32 %v3469, 7
        %v3471 = vsub.s32 0, %v3470
        %v3472 = vrot.slane %v3307, %v3471
        %v3473 = vlaneseq
        %v3474 = vshrl.u32 %v3473, 7
        %v3475 = vsub.s32 0, %v3474
        %v3476 = vrot.slane %v3308, %v3475
        %v3477 = vlaneseq
        %v3478 = vshrl.u32 %v3477, 7
        %v3479 = vsub.s32 0, %v3478
        %v3480 = vrot.slane %v3309, %v3479
        %v3481 = vlaneseq
        %v3482 = vshrl.u32 %v3481, 7
        %v3483 = vsub.s32 0, %v3482
        %v3484 = vrot.slane %v3310, %v3483
        %v3485 = vlaneseq
        %v3486 = vshrl.u32 %v3485, 7
        %v3487 = vsub.s32 0, %v3486
        %v3488 = vrot.slane %v3311, %v3487
        %v3489 = vlaneseq
        %v3490 = vshrl.u32 %v3489, 7
        %v3491 = vsub.s32 0, %v3490
        %v3492 = vrot.slane %v3312, %v3491
        %v3493 = vlaneseq
        %v3494 = vshrl.u32 %v3493, 7
        %v3495 = vsub.s32 0, %v3494
        %v3496 = vrot.slane %v3313, %v3495
        %v3497 = vlaneseq
        %v3498 = vshrl.u32 %v3497, 7
        %v3499 = vsub.s32 0, %v3498
        %v3500 = vrot.slane %v3314, %v3499
        %v3501 = vlaneseq
        %v3502 = vshrl.u32 %v3501, 7
        %v3503 = vsub.s32 0, %v3502
        %v3504 = vrot.slane %v3315, %v3503
        %v3505 = vlaneseq
        %v3506 = vshrl.u32 %v3505, 7
        %v3507 = vsub.s32 0, %v3506
        %v3508 = vrot.slane %v3316, %v3507
        %v3509 = vlaneseq
        %v3510 = vshrl.u32 %v3509, 7
        %v3511 = vsub.s32 0, %v3510
        %v3512 = vrot.slane %v3317, %v3511
        %v3513 = vlaneseq
        %v3514 = vshrl.u32 %v3513, 7
        %v3515 = vsub.s32 0, %v3514
        %v3516 = vrot.slane %v3318, %v3515
        %v3517 = vlaneseq
        %v3518 = vshrl.u32 %v3517, 7
        %v3519 = vsub.s32 0, %v3518
        %v3520 = vrot.slane %v3319, %v3519
        %v3521 = vlaneseq
        %v3522 = vshrl.u32 %v3521, 7
        %v3523 = vsub.s32 0, %v3522
        %v3524 = vrot.slane %v3320, %v3523
        %v3525 = vlaneseq
        %v3526 = vshrl.u32 %v3525, 7
        %v3527 = vsub.s32 0, %v3526
        %v3528 = vrot.slane %v3321, %v3527
        %v3529 = vlaneseq
        %v3530 = vshrl.u32 %v3529, 7
        %v3531 = vsub.s32 0, %v3530
        %v3532 = vrot.slane %v3322, %v3531
        %v3533 = vlaneseq
        %v3534 = vshrl.u32 %v3533, 7
        %v3535 = vsub.s32 0, %v3534
        %v3536 = vrot.slane %v3323, %v3535
        %v3537 = vlaneseq
        %v3538 = vshrl.u32 %v3537, 7
        %v3539 = vsub.s32 0, %v3538
        %v3540 = vrot.slane %v3324, %v3539
        %v3541 = vlaneseq
        %v3542 = vshrl.u32 %v3541, 7
        %v3543 = vsub.s32 0, %v3542
        %v3544 = vrot.slane %v3325, %v3543
        %v3545 = vlaneseq
        %v3546 = vshrl.u32 %v3545, 7
        %v3547 = vsub.s32 0, %v3546
        %v3548 = vrot.slane %v3326, %v3547
        %v3549 = vlaneseq
        %v3550 = vshrl.u32 %v3549, 7
        %v3551 = vsub.s32 0, %v3550
        %v3552 = vrot.slane %v3327, %v3551
        %v3553 = vlaneseq
        %v3554 = vshrl.u32 %v3553, 7
        %v3555 = vsub.s32 0, %v3554
        %v3556 = vrot.slane %v3328, %v3555
        %v3557 = vlaneseq
        %v3558 = vshrl.u32 %v3557, 7
        %v3559 = vsub.s32 0, %v3558
        %v3560 = vrot.slane %v3329, %v3559
        %v3561 = vlaneseq
        %v3562 = vshrl.u32 %v3561, 7
        %v3563 = vsub.s32 0, %v3562
        %v3564 = vrot.slane %v3330, %v3563
        %v3565 = vlaneseq
        %v3566 = vshrl.u32 %v3565, 7
        %v3567 = vsub.s32 0, %v3566
        %v3568 = vrot.slane %v3331, %v3567
        %v3569 = vlaneseq
        %v3570 = vshrl.u32 %v3569, 7
        %v3571 = vsub.s32 0, %v3570
        %v3572 = vrot.slane %v3332, %v3571
        %v3573 = vlaneseq
        %v3574 = vshrl.u32 %v3573, 7
        %v3575 = vsub.s32 0, %v3574
        %v3576 = vrot.slane %v3333, %v3575
        %v3577 = vlaneseq
        %v3578 = vshrl.u32 %v3577, 7
        %v3579 = vsub.s32 0, %v3578
        %v3580 = vrot.slane %v3334, %v3579
        %v3581 = vlaneseq
        %v3582 = vshrl.u32 %v3581, 7
        %v3583 = vsub.s32 0, %v3582
        %v3584 = vrot.slane %v3335, %v3583
        %v3585 = vlaneseq
        %v3586 = vshrl.u32 %v3585, 7
        %v3587 = vsub.s32 0, %v3586
        %v3588 = vrot.slane %v3336, %v3587
        %v3589 = vlaneseq
        %v3590 = vshrl.u32 %v3589, 7
        %v3591 = vsub.s32 0, %v3590
        %v3592 = vrot.slane %v3337, %v3591
        %v3593 = vlaneseq
        %v3594 = vshrl.u32 %v3593, 7
        %v3595 = vsub.s32 0, %v3594
        %v3596 = vrot.slane %v3338, %v3595
        %v3597 = vlaneseq
        %v3598 = vshrl.u32 %v3597, 7
        %v3599 = vsub.s32 0, %v3598
        %v3600 = vrot.slane %v3339, %v3599
        %v3601 = vlaneseq
        %v3602 = vshrl.u32 %v3601, 7
        %v3603 = vsub.s32 0, %v3602
        %v3604 = vrot.slane %v3340, %v3603
        %v3605 = vlaneseq
        %v3606 = vshrl.u32 %v3605, 7
        %v3607 = vsub.s32 0, %v3606
        %v3608 = vrot.slane %v3341, %v3607
        %v3609 = vlaneseq
        %v3610 = vshrl.u32 %v3609, 7
        %v3611 = vsub.s32 0, %v3610
        %v3612 = vrot.slane %v3342, %v3611
        %v3613 = vlaneseq
        %v3614 = vshrl.u32 %v3613, 7
        %v3615 = vsub.s32 0, %v3614
        %v3616 = vrot.slane %v3343, %v3615
        %v3617 = vlaneseq
        %v3618 = vshrl.u32 %v3617, 7
        %v3619 = vsub.s32 0, %v3618
        %v3620 = vrot.slane %v3344, %v3619
        %v3621 = vlaneseq
        %v3622 = vshrl.u32 %v3621, 7
        %v3623 = vsub.s32 0, %v3622
        %v3624 = vrot.slane %v3345, %v3623
        %v3625 = vlaneseq
        %v3626 = vshrl.u32 %v3625, 7
        %v3627 = vsub.s32 0, %v3626
        %v3628 = vrot.slane %v3346, %v3627
        %v3629 = vlaneseq
        %v3630 = vshrl.u32 %v3629, 7
        %v3631 = vsub.s32 0, %v3630
        %v3632 = vrot.slane %v3347, %v3631
        %v3633 = vlaneseq
        %v3634 = vshrl.u32 %v3633, 7
        %v3635 = vsub.s32 0, %v3634
        %v3636 = vrot.slane %v3348, %v3635
        %v3637 = vlaneseq
        %v3638 = vshrl.u32 %v3637, 7
        %v3639 = vsub.s32 0, %v3638
        %v3640 = vrot.slane %v3349, %v3639
        %v3641 = vlaneseq
        %v3642 = vshrl.u32 %v3641, 7
        %v3643 = vsub.s32 0, %v3642
        %v3644 = vrot.slane %v3350, %v3643
        %v3645 = vlaneseq
        %v3646 = vshrl.u32 %v3645, 7
        %v3647 = vsub.s32 0, %v3646
        %v3648 = vrot.slane %v3351, %v3647
        %v3649 = vlaneseq
        %v3650 = vshrl.u32 %v3649, 7
        %v3651 = vsub.s32 0, %v3650
        %v3652 = vrot.slane %v3352, %v3651
        %v3653 = vlaneseq
        %v3654 = vshrl.u32 %v3653, 7
        %v3655 = vsub.s32 0, %v3654
        %v3656 = vrot.slane %v3353, %v3655
        %v3657 = vlaneseq
        %v3658 = vshrl.u32 %v3657, 7
        %v3659 = vsub.s32 0, %v3658
        %v3660 = vrot.slane %v3354, %v3659
        %v3661 = vlaneseq
        %v3662 = vshrl.u32 %v3661, 7
        %v3663 = vsub.s32 0, %v3662
        %v3664 = vrot.slane %v3355, %v3663
        %v3665 = vlaneseq
        %v3666 = vshrl.u32 %v3665, 7
        %v3667 = vsub.s32 0, %v3666
        %v3668 = vrot.slane %v3356, %v3667
        %v3669 = vlaneseq
        %v3670 = vshrl.u32 %v3669, 7
        %v3671 = vsub.s32 0, %v3670
        %v3672 = vrot.slane %v3357, %v3671
        %v3673 = vlaneseq
        %v3674 = vshrl.u32 %v3673, 7
        %v3675 = vsub.s32 0, %v3674
        %v3676 = vrot.slane %v3358, %v3675
        %v3677 = vlaneseq
        %v3678 = vshrl.u32 %v3677, 7
        %v3679 = vsub.s32 0, %v3678
        %v3680 = vrot.slane %v3359, %v3679
        %v3681 = vlaneseq
        %v3682 = vshrl.u32 %v3681, 7
        %v3683 = vsub.s32 0, %v3682
        %v3684 = vrot.slane %v3360, %v3683
        %v3685 = vlaneseq
        %v3686 = vshrl.u32 %v3685, 7
        %v3687 = vsub.s32 0, %v3686
        %v3688 = vrot.slane %v3361, %v3687
        %v3689 = vlaneseq
        %v3690 = vshrl.u32 %v3689, 7
        %v3691 = vsub.s32 0, %v3690
        %v3692 = vrot.slane %v3362, %v3691
        %v3693 = vlaneseq
        %v3694 = vshrl.u32 %v3693, 7
        %v3695 = vsub.s32 0, %v3694
        %v3696 = vrot.slane %v3363, %v3695
        %v3697 = vlaneseq
        %v3698 = vshrl.u32 %v3697, 7
        %v3699 = vsub.s32 0, %v3698
        %v3700 = vrot.slane %v3364, %v3699
        %v3701 = vlaneseq
        %v3702 = vshrl.u32 %v3701, 7
        %v3703 = vsub.s32 0, %v3702
        %v3704 = vrot.slane %v3365, %v3703
        %v3705 = vlaneseq
        %v3706 = vshrl.u32 %v3705, 7
        %v3707 = vsub.s32 0, %v3706
        %v3708 = vrot.slane %v3366, %v3707
        %vm3709 = vcmask 1041409
        %v3710 = vsel %vm3709, %v3460, %v3456
        %vm3711 = vcmask 1042434
        %v3712 = vsel %vm3711, %v3464, %v3710
        %vm3713 = vcmask 1043459
        %v3714 = vsel %vm3713, %v3468, %v3712
        %vm3715 = vcmask 1044484
        %v3716 = vsel %vm3715, %v3472, %v3714
        %vm3717 = vcmask 1045509
        %v3718 = vsel %vm3717, %v3476, %v3716
        %vm3719 = vcmask 1046534
        %v3720 = vsel %vm3719, %v3480, %v3718
        %vm3721 = vcmask 1047559
        %v3722 = vsel %vm3721, %v3484, %v3720
        %v3723 = vsel %vm3709, %v3492, %v3488
        %v3724 = vsel %vm3711, %v3496, %v3723
        %v3725 = vsel %vm3713, %v3500, %v3724
        %v3726 = vsel %vm3715, %v3504, %v3725
        %v3727 = vsel %vm3717, %v3508, %v3726
        %v3728 = vsel %vm3719, %v3512, %v3727
        %v3729 = vsel %vm3721, %v3516, %v3728
        %v3730 = vsel %vm3709, %v3524, %v3520
        %v3731 = vsel %vm3711, %v3528, %v3730
        %v3732 = vsel %vm3713, %v3532, %v3731
        %v3733 = vsel %vm3715, %v3536, %v3732
        %v3734 = vsel %vm3717, %v3540, %v3733
        %v3735 = vsel %vm3719, %v3544, %v3734
        %v3736 = vsel %vm3721, %v3548, %v3735
        %v3737 = vsel %vm3709, %v3556, %v3552
        %v3738 = vsel %vm3711, %v3560, %v3737
        %v3739 = vsel %vm3713, %v3564, %v3738
        %v3740 = vsel %vm3715, %v3568, %v3739
        %v3741 = vsel %vm3717, %v3572, %v3740
        %v3742 = vsel %vm3719, %v3576, %v3741
        %v3743 = vsel %vm3721, %v3580, %v3742
        %v3744 = vsel %vm3709, %v3588, %v3584
        %v3745 = vsel %vm3711, %v3592, %v3744
        %v3746 = vsel %vm3713, %v3596, %v3745
        %v3747 = vsel %vm3715, %v3600, %v3746
        %v3748 = vsel %vm3717, %v3604, %v3747
        %v3749 = vsel %vm3719, %v3608, %v3748
        %v3750 = vsel %vm3721, %v3612, %v3749
        %v3751 = vsel %vm3709, %v3620, %v3616
        %v3752 = vsel %vm3711, %v3624, %v3751
        %v3753 = vsel %vm3713, %v3628, %v3752
        %v3754 = vsel %vm3715, %v3632, %v3753
        %v3755 = vsel %vm3717, %v3636, %v3754
        %v3756 = vsel %vm3719, %v3640, %v3755
        %v3757 = vsel %vm3721, %v3644, %v3756
        %v3758 = vsel %vm3709, %v3652, %v3648
        %v3759 = vsel %vm3711, %v3656, %v3758
        %v3760 = vsel %vm3713, %v3660, %v3759
        %v3761 = vsel %vm3715, %v3664, %v3760
        %v3762 = vsel %vm3717, %v3668, %v3761
        %v3763 = vsel %vm3719, %v3672, %v3762
        %v3764 = vsel %vm3721, %v3676, %v3763
        %v3765 = vsel %vm3709, %v3684, %v3680
        %v3766 = vsel %vm3711, %v3688, %v3765
        %v3767 = vsel %vm3713, %v3692, %v3766
        %v3768 = vsel %vm3715, %v3696, %v3767
        %v3769 = vsel %vm3717, %v3700, %v3768
        %v3770 = vsel %vm3719, %v3704, %v3769
        %v3771 = vsel %vm3721, %v3708, %v3770
        %s3780 = scalar_lea.vmem [#allocation3], 16
        %3781 = vst.msk [vmem:[%s3780 + $0x1] sm:$0xff] %vm3367, %v3722
        %3782 = vst.msk [vmem:[%s3780 + $0x11] sm:$0xff] %vm3367, %v3729
        %3783 = vst.msk [vmem:[%s3780 + $0x21] sm:$0xff] %vm3367, %v3736
        %3784 = vst.msk [vmem:[%s3780 + $0x31] sm:$0xff] %vm3367, %v3743
        %3785 = vst.msk [vmem:[%s3780 + $0x41] sm:$0xff] %vm3367, %v3750
        %3786 = vst.msk [vmem:[%s3780 + $0x51] sm:$0xff] %vm3367, %v3757
        %3787 = vst.msk [vmem:[%s3780 + $0x61] sm:$0xff] %vm3367, %v3764
        %3788 = vst.msk [vmem:[%s3780 + $0x71] sm:$0xff] %vm3367, %v3771
        %v3789 = vld [vmem:[#allocation3] sm:$0xff]
        %v3790 = vld [vmem:[#allocation3 + $0x8] sm:$0x3]
        %v3791 = vld [vmem:[#allocation3 + $0x10] sm:$0xff]
        %v3792 = vld [vmem:[#allocation3 + $0x18] sm:$0x3]
        %v3793 = vld [vmem:[#allocation3 + $0x20] sm:$0xff]
        %v3794 = vld [vmem:[#allocation3 + $0x28] sm:$0x3]
        %v3795 = vld [vmem:[#allocation3 + $0x30] sm:$0xff]
        %v3796 = vld [vmem:[#allocation3 + $0x38] sm:$0x3]
        %v3797 = vld [vmem:[#allocation3 + $0x40] sm:$0xff]
        %v3798 = vld [vmem:[#allocation3 + $0x48] sm:$0x3]
        %v3799 = vld [vmem:[#allocation3 + $0x50] sm:$0xff]
        %v3800 = vld [vmem:[#allocation3 + $0x58] sm:$0x3]
        %v3801 = vld [vmem:[#allocation3 + $0x60] sm:$0xff]
        %v3802 = vld [vmem:[#allocation3 + $0x68] sm:$0x3]
        %v3803 = vld [vmem:[#allocation3 + $0x70] sm:$0xff]
        %v3804 = vld [vmem:[#allocation3 + $0x78] sm:$0x3]
        %v3805 = vld [vmem:[#allocation3 + $0x80] sm:$0xff]
        %v3806 = vld [vmem:[#allocation3 + $0x88] sm:$0x3]
        %v3807 = vld [vmem:[#allocation3 + $0x90] sm:$0xff]
        %v3808 = vld [vmem:[#allocation3 + $0x98] sm:$0x3]
        %v3809 = vld [vmem:[%s3] sm:$0xff]
        %v3810 = vld [vmem:[%s3 + $0x8] sm:$0xff]
        %v3811 = vld [vmem:[%s3 + $0x10] sm:$0xff]
        %v3812 = vld [vmem:[%s3 + $0x18] sm:$0xff]
        %v3813 = vld [vmem:[%s3 + $0x20] sm:$0xff]
        %v3814 = vld [vmem:[%s3 + $0x28] sm:$0xff]
        %v3815 = vld [vmem:[%s3 + $0x30] sm:$0xff]
        %v3816 = vld [vmem:[%s3 + $0x38] sm:$0xff]
        %v3817 = vld [vmem:[%s3 + $0x40] sm:$0xff]
        %v3818 = vld [vmem:[%s4] sm:$0x1]
        %v3835 = vrot.slane %v3789, 1
        %v3836 = vrot.slane %v3790, 1
        %v3837 = vsel %vm504, %v3835, %v3836
        %v3838 = vrot.slane %v3791, 1
        %v3839 = vrot.slane %v3792, 1
        %v3840 = vsel %vm504, %v3838, %v3839
        %v3841 = vrot.slane %v3793, 1
        %v3842 = vrot.slane %v3794, 1
        %v3843 = vsel %vm504, %v3841, %v3842
        %v3844 = vrot.slane %v3795, 1
        %v3845 = vrot.slane %v3796, 1
        %v3846 = vsel %vm504, %v3844, %v3845
        %v3847 = vrot.slane %v3797, 1
        %v3848 = vrot.slane %v3798, 1
        %v3849 = vsel %vm504, %v3847, %v3848
        %v3850 = vrot.slane %v3799, 1
        %v3851 = vrot.slane %v3800, 1
        %v3852 = vsel %vm504, %v3850, %v3851
        %v3853 = vrot.slane %v3801, 1
        %v3854 = vrot.slane %v3802, 1
        %v3855 = vsel %vm504, %v3853, %v3854
        %v3856 = vrot.slane %v3803, 1
        %v3857 = vrot.slane %v3804, 1
        %v3858 = vsel %vm504, %v3856, %v3857
        %v3859 = vrot.slane %v3789, 2
        %v3860 = vrot.slane %v3790, 2
        %v3861 = vsel %vm585, %v3859, %v3860
        %v3862 = vrot.slane %v3791, 2
        %v3863 = vrot.slane %v3792, 2
        %v3864 = vsel %vm585, %v3862, %v3863
        %v3865 = vrot.slane %v3793, 2
        %v3866 = vrot.slane %v3794, 2
        %v3867 = vsel %vm585, %v3865, %v3866
        %v3868 = vrot.slane %v3795, 2
        %v3869 = vrot.slane %v3796, 2
        %v3870 = vsel %vm585, %v3868, %v3869
        %v3871 = vrot.slane %v3797, 2
        %v3872 = vrot.slane %v3798, 2
        %v3873 = vsel %vm585, %v3871, %v3872
        %v3874 = vrot.slane %v3799, 2
        %v3875 = vrot.slane %v3800, 2
        %v3876 = vsel %vm585, %v3874, %v3875
        %v3877 = vrot.slane %v3801, 2
        %v3878 = vrot.slane %v3802, 2
        %v3879 = vsel %vm585, %v3877, %v3878
        %v3880 = vrot.slane %v3803, 2
        %v3881 = vrot.slane %v3804, 2
        %v3882 = vsel %vm585, %v3880, %v3881
        %v3885 = vrot.slane %v3805, 1
        %v3886 = vrot.slane %v3806, 1
        %v3887 = vsel %vm504, %v3885, %v3886
        %v3888 = vrot.slane %v3805, 2
        %v3889 = vrot.slane %v3806, 2
        %v3890 = vsel %vm585, %v3888, %v3889
        %v3893 = vrot.slane %v3807, 1
        %v3894 = vrot.slane %v3808, 1
        %v3895 = vsel %vm504, %v3893, %v3894
        %v3896 = vrot.slane %v3807, 2
        %v3897 = vrot.slane %v3808, 2
        %v3898 = vsel %vm585, %v3896, %v3897
        %3899 = vrot.lane.b32.xlu0 %v3837, 8
        %v3900 = vpop.permute.xlu0 %3899
        %3901 = vrot.lane.b32.xlu0 %v3840, 8
        %v3902 = vpop.permute.xlu0 %3901
        %3903 = vrot.lane.b32.xlu0 %v3843, 8
        %v3904 = vpop.permute.xlu0 %3903
        %3905 = vrot.lane.b32.xlu0 %v3846, 8
        %v3906 = vpop.permute.xlu0 %3905
        %3907 = vrot.lane.b32.xlu0 %v3849, 8
        %v3908 = vpop.permute.xlu0 %3907
        %3909 = vrot.lane.b32.xlu0 %v3852, 8
        %v3910 = vpop.permute.xlu0 %3909
        %3911 = vrot.lane.b32.xlu0 %v3855, 8
        %v3912 = vpop.permute.xlu0 %3911
        %3913 = vrot.lane.b32.xlu0 %v3858, 8
        %v3914 = vpop.permute.xlu0 %3913
        %3923 = vrot.lane.b32.xlu0 %v3861, 16
        %v3924 = vpop.permute.xlu0 %3923
        %3925 = vrot.lane.b32.xlu0 %v3864, 16
        %v3926 = vpop.permute.xlu0 %3925
        %3927 = vrot.lane.b32.xlu0 %v3867, 16
        %v3928 = vpop.permute.xlu0 %3927
        %3929 = vrot.lane.b32.xlu0 %v3870, 16
        %v3930 = vpop.permute.xlu0 %3929
        %3931 = vrot.lane.b32.xlu0 %v3873, 16
        %v3932 = vpop.permute.xlu0 %3931
        %3933 = vrot.lane.b32.xlu0 %v3876, 16
        %v3934 = vpop.permute.xlu0 %3933
        %3935 = vrot.lane.b32.xlu0 %v3879, 16
        %v3936 = vpop.permute.xlu0 %3935
        %3937 = vrot.lane.b32.xlu0 %v3882, 16
        %v3938 = vpop.permute.xlu0 %3937
        %3947 = vrot.lane.b32.xlu0 %v3791, 24
        %v3948 = vpop.permute.xlu0 %3947
        %3949 = vrot.lane.b32.xlu0 %v3793, 24
        %v3950 = vpop.permute.xlu0 %3949
        %3951 = vrot.lane.b32.xlu0 %v3795, 24
        %v3952 = vpop.permute.xlu0 %3951
        %3953 = vrot.lane.b32.xlu0 %v3797, 24
        %v3954 = vpop.permute.xlu0 %3953
        %3955 = vrot.lane.b32.xlu0 %v3799, 24
        %v3956 = vpop.permute.xlu0 %3955
        %3957 = vrot.lane.b32.xlu0 %v3801, 24
        %v3958 = vpop.permute.xlu0 %3957
        %3959 = vrot.lane.b32.xlu0 %v3803, 24
        %v3960 = vpop.permute.xlu0 %3959
        %3961 = vrot.lane.b32.xlu0 %v3805, 24
        %v3962 = vpop.permute.xlu0 %3961
        %3971 = vrot.lane.b32.xlu0 %v3840, 32
        %v3972 = vpop.permute.xlu0 %3971
        %3973 = vrot.lane.b32.xlu0 %v3843, 32
        %v3974 = vpop.permute.xlu0 %3973
        %3975 = vrot.lane.b32.xlu0 %v3846, 32
        %v3976 = vpop.permute.xlu0 %3975
        %3977 = vrot.lane.b32.xlu0 %v3849, 32
        %v3978 = vpop.permute.xlu0 %3977
        %3979 = vrot.lane.b32.xlu0 %v3852, 32
        %v3980 = vpop.permute.xlu0 %3979
        %3981 = vrot.lane.b32.xlu0 %v3855, 32
        %v3982 = vpop.permute.xlu0 %3981
        %3983 = vrot.lane.b32.xlu0 %v3858, 32
        %v3984 = vpop.permute.xlu0 %3983
        %3985 = vrot.lane.b32.xlu0 %v3887, 32
        %v3986 = vpop.permute.xlu0 %3985
        %3995 = vrot.lane.b32.xlu0 %v3864, 40
        %v3996 = vpop.permute.xlu0 %3995
        %3997 = vrot.lane.b32.xlu0 %v3867, 40
        %v3998 = vpop.permute.xlu0 %3997
        %3999 = vrot.lane.b32.xlu0 %v3870, 40
        %v4000 = vpop.permute.xlu0 %3999
        %4001 = vrot.lane.b32.xlu0 %v3873, 40
        %v4002 = vpop.permute.xlu0 %4001
        %4003 = vrot.lane.b32.xlu0 %v3876, 40
        %v4004 = vpop.permute.xlu0 %4003
        %4005 = vrot.lane.b32.xlu0 %v3879, 40
        %v4006 = vpop.permute.xlu0 %4005
        %4007 = vrot.lane.b32.xlu0 %v3882, 40
        %v4008 = vpop.permute.xlu0 %4007
        %4009 = vrot.lane.b32.xlu0 %v3890, 40
        %v4010 = vpop.permute.xlu0 %4009
        %4019 = vrot.lane.b32.xlu0 %v3793, 48
        %v4020 = vpop.permute.xlu0 %4019
        %4021 = vrot.lane.b32.xlu0 %v3795, 48
        %v4022 = vpop.permute.xlu0 %4021
        %4023 = vrot.lane.b32.xlu0 %v3797, 48
        %v4024 = vpop.permute.xlu0 %4023
        %4025 = vrot.lane.b32.xlu0 %v3799, 48
        %v4026 = vpop.permute.xlu0 %4025
        %4027 = vrot.lane.b32.xlu0 %v3801, 48
        %v4028 = vpop.permute.xlu0 %4027
        %4029 = vrot.lane.b32.xlu0 %v3803, 48
        %v4030 = vpop.permute.xlu0 %4029
        %4031 = vrot.lane.b32.xlu0 %v3805, 48
        %v4032 = vpop.permute.xlu0 %4031
        %4033 = vrot.lane.b32.xlu0 %v3807, 48
        %v4034 = vpop.permute.xlu0 %4033
        %4043 = vrot.lane.b32.xlu0 %v3843, 56
        %v4044 = vpop.permute.xlu0 %4043
        %4045 = vrot.lane.b32.xlu0 %v3846, 56
        %v4046 = vpop.permute.xlu0 %4045
        %4047 = vrot.lane.b32.xlu0 %v3849, 56
        %v4048 = vpop.permute.xlu0 %4047
        %4049 = vrot.lane.b32.xlu0 %v3852, 56
        %v4050 = vpop.permute.xlu0 %4049
        %4051 = vrot.lane.b32.xlu0 %v3855, 56
        %v4052 = vpop.permute.xlu0 %4051
        %4053 = vrot.lane.b32.xlu0 %v3858, 56
        %v4054 = vpop.permute.xlu0 %4053
        %4055 = vrot.lane.b32.xlu0 %v3887, 56
        %v4056 = vpop.permute.xlu0 %4055
        %4057 = vrot.lane.b32.xlu0 %v3895, 56
        %v4058 = vpop.permute.xlu0 %4057
        %4067 = vrot.lane.b32.xlu0 %v3867, 64
        %v4068 = vpop.permute.xlu0 %4067
        %4069 = vrot.lane.b32.xlu0 %v3870, 64
        %v4070 = vpop.permute.xlu0 %4069
        %4071 = vrot.lane.b32.xlu0 %v3873, 64
        %v4072 = vpop.permute.xlu0 %4071
        %4073 = vrot.lane.b32.xlu0 %v3876, 64
        %v4074 = vpop.permute.xlu0 %4073
        %4075 = vrot.lane.b32.xlu0 %v3879, 64
        %v4076 = vpop.permute.xlu0 %4075
        %4077 = vrot.lane.b32.xlu0 %v3882, 64
        %v4078 = vpop.permute.xlu0 %4077
        %4079 = vrot.lane.b32.xlu0 %v3890, 64
        %v4080 = vpop.permute.xlu0 %4079
        %4081 = vrot.lane.b32.xlu0 %v3898, 64
        %v4082 = vpop.permute.xlu0 %4081
        %v4091 = vsel %vm3367, %v3789, %v3900
        %v4092 = vsel %vm3367, %v3791, %v3902
        %v4093 = vsel %vm3367, %v3793, %v3904
        %v4094 = vsel %vm3367, %v3795, %v3906
        %v4095 = vsel %vm3367, %v3797, %v3908
        %v4096 = vsel %vm3367, %v3799, %v3910
        %v4097 = vsel %vm3367, %v3801, %v3912
        %v4098 = vsel %vm3367, %v3803, %v3914
        %vm4099 = vcmask 130048
        %v4100 = vsel %vm4099, %v4091, %v3924
        %v4101 = vsel %vm4099, %v4092, %v3926
        %v4102 = vsel %vm4099, %v4093, %v3928
        %v4103 = vsel %vm4099, %v4094, %v3930
        %v4104 = vsel %vm4099, %v4095, %v3932
        %v4105 = vsel %vm4099, %v4096, %v3934
        %v4106 = vsel %vm4099, %v4097, %v3936
        %v4107 = vsel %vm4099, %v4098, %v3938
        %v4108 = vsel %vm1690, %v4100, %v3948
        %v4109 = vsel %vm1690, %v4101, %v3950
        %v4110 = vsel %vm1690, %v4102, %v3952
        %v4111 = vsel %vm1690, %v4103, %v3954
        %v4112 = vsel %vm1690, %v4104, %v3956
        %v4113 = vsel %vm1690, %v4105, %v3958
        %v4114 = vsel %vm1690, %v4106, %v3960
        %v4115 = vsel %vm1690, %v4107, %v3962
        %vm4116 = vcmask 261120
        %v4117 = vsel %vm4116, %v4108, %v3972
        %v4118 = vsel %vm4116, %v4109, %v3974
        %v4119 = vsel %vm4116, %v4110, %v3976
        %v4120 = vsel %vm4116, %v4111, %v3978
        %v4121 = vsel %vm4116, %v4112, %v3980
        %v4122 = vsel %vm4116, %v4113, %v3982
        %v4123 = vsel %vm4116, %v4114, %v3984
        %v4124 = vsel %vm4116, %v4115, %v3986
        %vm4125 = vcmask 326656
        %v4126 = vsel %vm4125, %v4117, %v3996
        %v4127 = vsel %vm4125, %v4118, %v3998
        %v4128 = vsel %vm4125, %v4119, %v4000
        %v4129 = vsel %vm4125, %v4120, %v4002
        %v4130 = vsel %vm4125, %v4121, %v4004
        %v4131 = vsel %vm4125, %v4122, %v4006
        %v4132 = vsel %vm4125, %v4123, %v4008
        %v4133 = vsel %vm4125, %v4124, %v4010
        %vm4134 = vcmask 392192
        %v4135 = vsel %vm4134, %v4126, %v4020
        %v4136 = vsel %vm4134, %v4127, %v4022
        %v4137 = vsel %vm4134, %v4128, %v4024
        %v4138 = vsel %vm4134, %v4129, %v4026
        %v4139 = vsel %vm4134, %v4130, %v4028
        %v4140 = vsel %vm4134, %v4131, %v4030
        %v4141 = vsel %vm4134, %v4132, %v4032
        %v4142 = vsel %vm4134, %v4133, %v4034
        %vm4143 = vcmask 457728
        %v4144 = vsel %vm4143, %v4135, %v4044
        %v4145 = vsel %vm4143, %v4136, %v4046
        %v4146 = vsel %vm4143, %v4137, %v4048
        %v4147 = vsel %vm4143, %v4138, %v4050
        %v4148 = vsel %vm4143, %v4139, %v4052
        %v4149 = vsel %vm4143, %v4140, %v4054
        %v4150 = vsel %vm4143, %v4141, %v4056
        %v4151 = vsel %vm4143, %v4142, %v4058
        %vm4152 = vcmask 523264
        %v4153 = vsel %vm4152, %v4144, %v4068
        %v4154 = vsel %vm4152, %v4145, %v4070
        %v4155 = vsel %vm4152, %v4146, %v4072
        %v4156 = vsel %vm4152, %v4147, %v4074
        %v4157 = vsel %vm4152, %v4148, %v4076
        %v4158 = vsel %vm4152, %v4149, %v4078
        %v4159 = vsel %vm4152, %v4150, %v4080
        %v4160 = vsel %vm4152, %v4151, %v4082
        %v4162 = vlaneseq
        %v4163 = vshrl.u32 %v4162, 7
        %v4164 = vsub.s32 0, %v4163
        %v4165 = vrot.slane %v3818, %v4164
        %vm4167 = vcmask 588800
        %v4169 = vsel %vm4167, %v4153, 0
        %v4172 = vsel %vm4167, %v4154, 0
        %v4175 = vsel %vm4167, %v4155, 0
        %v4178 = vsel %vm4167, %v4156, 0
        %v4181 = vsel %vm4167, %v4157, 0
        %v4184 = vsel %vm4167, %v4158, 0
        %v4187 = vsel %vm4167, %v4159, 0
        %v4190 = vsel %vm4167, %v4160, 0
        %4192 = vmatprep.subr.mxu0 0.0
        %4193 = vmatpush1.msra.mxu0 %v3809
        %4194 = vmatprep.subr.mxu0 0.0
        %4195 = vmatpush1.msra.mxu0 %v3810
        %4196 = vmatprep.subr.mxu0 0.0
        %4197 = vmatpush1.msra.mxu0 %v3811
        %4198 = vmatprep.subr.mxu0 0.0
        %4199 = vmatpush1.msra.mxu0 %v3812
        %4200 = vmatprep.subr.mxu0 0.0
        %4201 = vmatpush1.msra.mxu0 %v3813
        %4202 = vmatprep.subr.mxu0 0.0
        %4203 = vmatpush1.msra.mxu0 %v3814
        %4204 = vmatprep.subr.mxu0 0.0
        %4205 = vmatpush1.msra.mxu0 %v3815
        %4206 = vmatprep.subr.mxu0 0.0
        %4207 = vmatpush1.msra.mxu0 %v3816
        %4208 = vmatprep.subr.mxu0 0.0
        %4209 = vmatpush1.msra.mxu0 %v3817
        %4210 = vmatprep.subr.mxu0 0.0
        %4211 = vmatpush1.msra.mxu0 0.0
        %4212 = vmatprep.subr.mxu0 0.0
        %4213 = vmatpush1.msra.mxu0 0.0
        %4214 = vmatprep.subr.mxu0 0.0
        %4215 = vmatpush1.msra.mxu0 0.0
        %4216 = vmatprep.subr.mxu0 0.0
        %4217 = vmatpush1.msra.mxu0 0.0
        %4218 = vmatprep.subr.mxu0 0.0
        %4219 = vmatpush1.msra.mxu0 0.0
        %4220 = vmatprep.subr.mxu0 0.0
        %4221 = vmatpush1.msra.mxu0 0.0
        %4222 = vmatprep.subr.mxu0 0.0
        %4223 = vmatpush1.msra.mxu0 0.0
        %4224 = vmatprep.subr.mxu0 0.0
        %4225 = vmatpush1.msra.mxu0 0.0
        %4226 = vmatprep.subr.mxu0 0.0
        %4227 = vmatpush1.msra.mxu0 0.0
        %4228 = vmatprep.subr.mxu0 0.0
        %4229 = vmatpush1.msra.mxu0 0.0
        %4230 = vmatprep.subr.mxu0 0.0
        %4231 = vmatpush1.msra.mxu0 0.0
        %4232 = vmatprep.subr.mxu0 0.0
        %4233 = vmatpush1.msra.mxu0 0.0
        %4234 = vmatprep.subr.mxu0 0.0
        %4235 = vmatpush1.msra.mxu0 0.0
        %4236 = vmatprep.subr.mxu0 0.0
        %4237 = vmatpush1.msra.mxu0 0.0
        %4238 = vmatprep.subr.mxu0 0.0
        %4239 = vmatpush1.msra.mxu0 0.0
        %4240 = vmatprep.subr.mxu0 0.0
        %4241 = vmatpush1.msra.mxu0 0.0
        %4242 = vmatprep.subr.mxu0 0.0
        %4243 = vmatpush1.msra.mxu0 0.0
        %4244 = vmatprep.subr.mxu0 0.0
        %4245 = vmatpush1.msra.mxu0 0.0
        %4246 = vmatprep.subr.mxu0 0.0
        %4247 = vmatpush1.msra.mxu0 0.0
        %4248 = vmatprep.subr.mxu0 0.0
        %4249 = vmatpush1.msra.mxu0 0.0
        %4250 = vmatprep.subr.mxu0 0.0
        %4251 = vmatpush1.msra.mxu0 0.0
        %4252 = vmatprep.subr.mxu0 0.0
        %4253 = vmatpush1.msra.mxu0 0.0
        %4254 = vmatprep.subr.mxu0 0.0
        %4255 = vmatpush1.msra.mxu0 0.0
        %4256 = vmatprep.mubr.f32.mxu0 0.0
        %4257 = vmatmul.mubr.f32.gmra.mrb[0].mxu0 %v4169
        %v4258 = vpop.f32.mrb[0].mxu0
        %v4259 = vadd.f32 %v4165, %v4258
        %v4260 = vpop.f32.mrb[0].mxu0
        %4261 = vmatprep.mubr.f32.mxu0 0.0
        %4262 = vmatmul.mubr.f32.gmra.mrb[0].mxu0 %v4172
        %v4263 = vpop.f32.mrb[0].mxu0
        %v4264 = vadd.f32 %v4165, %v4263
        %v4265 = vpop.f32.mrb[0].mxu0
        %4266 = vmatprep.mubr.f32.mxu0 0.0
        %4267 = vmatmul.mubr.f32.gmra.mrb[0].mxu0 %v4175
        %v4268 = vpop.f32.mrb[0].mxu0
        %v4269 = vadd.f32 %v4165, %v4268
        %v4270 = vpop.f32.mrb[0].mxu0
        %4271 = vmatprep.mubr.f32.mxu0 0.0
        %4272 = vmatmul.mubr.f32.gmra.mrb[0].mxu0 %v4178
        %v4273 = vpop.f32.mrb[0].mxu0
        %v4274 = vadd.f32 %v4165, %v4273
        %v4275 = vpop.f32.mrb[0].mxu0
        %4276 = vmatprep.mubr.f32.mxu0 0.0
        %4277 = vmatmul.mubr.f32.gmra.mrb[0].mxu0 %v4181
        %v4278 = vpop.f32.mrb[0].mxu0
        %v4279 = vadd.f32 %v4165, %v4278
        %v4280 = vpop.f32.mrb[0].mxu0
        %4281 = vmatprep.mubr.f32.mxu0 0.0
        %4282 = vmatmul.mubr.f32.gmra.mrb[0].mxu0 %v4184
        %v4283 = vpop.f32.mrb[0].mxu0
        %v4284 = vadd.f32 %v4165, %v4283
        %v4285 = vpop.f32.mrb[0].mxu0
        %4286 = vmatprep.mubr.f32.mxu0 0.0
        %4287 = vmatmul.mubr.f32.gmra.mrb[0].mxu0 %v4187
        %v4288 = vpop.f32.mrb[0].mxu0
        %v4289 = vadd.f32 %v4165, %v4288
        %v4290 = vpop.f32.mrb[0].mxu0
        %4291 = vmatprep.mubr.f32.mxu0 0.0
        %4292 = vmatmul.mubr.f32.gmra.mrb[0].mxu0 %v4190
        %v4293 = vpop.f32.mrb[0].mxu0
        %v4294 = vadd.f32 %v4165, %v4293
        %v4295 = vpop.f32.mrb[0].mxu0
        %4296 = vdwg.mxu0
        %v4297 = vmax.f32 %v4259, 0.0
        %v4298 = vmax.f32 %v4264, 0.0
        %v4299 = vmax.f32 %v4269, 0.0
        %v4300 = vmax.f32 %v4274, 0.0
        %v4301 = vmax.f32 %v4279, 0.0
        %v4302 = vmax.f32 %v4284, 0.0
        %v4303 = vmax.f32 %v4289, 0.0
        %v4304 = vmax.f32 %v4294, 0.0
        %v4313 = vcombine.high %v4297, %v4297
        %v4315 = vunpack.c.l.s4 1983009808
        %v4316 = vunpack.c.0.s8 %v4315
        %v4317 = vlaneseq
        %v4318 = vshrl.u32 %v4317, 7
        %v4319 = vsub.s32 %v4316, %v4318
        %v4320 = vrot.slane %v4297, %v4319
        %v4322 = vunpack.c.l.s4 1983009808
        %v4323 = vunpack.c.0.s8 %v4322
        %v4324 = vlaneseq
        %v4325 = vshrl.u32 %v4324, 7
        %v4326 = vsub.s32 %v4323, %v4325
        %v4327 = vrot.slane %v4313, %v4326
        %v4328 = vcombine.high %v4320, %v4320
        %v4329 = vcombine.high %v4327, %v4327
        %v4330 = vcombine.high %v4298, %v4298
        %v4332 = vunpack.c.l.s4 1983009808
        %v4333 = vunpack.c.0.s8 %v4332
        %v4334 = vlaneseq
        %v4335 = vshrl.u32 %v4334, 7
        %v4336 = vsub.s32 %v4333, %v4335
        %v4337 = vrot.slane %v4298, %v4336
        %v4339 = vunpack.c.l.s4 1983009808
        %v4340 = vunpack.c.0.s8 %v4339
        %v4341 = vlaneseq
        %v4342 = vshrl.u32 %v4341, 7
        %v4343 = vsub.s32 %v4340, %v4342
        %v4344 = vrot.slane %v4330, %v4343
        %v4345 = vcombine.high %v4337, %v4337
        %v4346 = vcombine.high %v4344, %v4344
        %v4347 = vcombine.high %v4299, %v4299
        %v4349 = vunpack.c.l.s4 1983009808
        %v4350 = vunpack.c.0.s8 %v4349
        %v4351 = vlaneseq
        %v4352 = vshrl.u32 %v4351, 7
        %v4353 = vsub.s32 %v4350, %v4352
        %v4354 = vrot.slane %v4299, %v4353
        %v4356 = vunpack.c.l.s4 1983009808
        %v4357 = vunpack.c.0.s8 %v4356
        %v4358 = vlaneseq
        %v4359 = vshrl.u32 %v4358, 7
        %v4360 = vsub.s32 %v4357, %v4359
        %v4361 = vrot.slane %v4347, %v4360
        %v4362 = vcombine.high %v4354, %v4354
        %v4363 = vcombine.high %v4361, %v4361
        %v4364 = vcombine.high %v4300, %v4300
        %v4366 = vunpack.c.l.s4 1983009808
        %v4367 = vunpack.c.0.s8 %v4366
        %v4368 = vlaneseq
        %v4369 = vshrl.u32 %v4368, 7
        %v4370 = vsub.s32 %v4367, %v4369
        %v4371 = vrot.slane %v4300, %v4370
        %v4373 = vunpack.c.l.s4 1983009808
        %v4374 = vunpack.c.0.s8 %v4373
        %v4375 = vlaneseq
        %v4376 = vshrl.u32 %v4375, 7
        %v4377 = vsub.s32 %v4374, %v4376
        %v4378 = vrot.slane %v4364, %v4377
        %v4379 = vcombine.high %v4371, %v4371
        %v4380 = vcombine.high %v4378, %v4378
        %v4381 = vcombine.high %v4301, %v4301
        %v4383 = vunpack.c.l.s4 1983009808
        %v4384 = vunpack.c.0.s8 %v4383
        %v4385 = vlaneseq
        %v4386 = vshrl.u32 %v4385, 7
        %v4387 = vsub.s32 %v4384, %v4386
        %v4388 = vrot.slane %v4301, %v4387
        %v4390 = vunpack.c.l.s4 1983009808
        %v4391 = vunpack.c.0.s8 %v4390
        %v4392 = vlaneseq
        %v4393 = vshrl.u32 %v4392, 7
        %v4394 = vsub.s32 %v4391, %v4393
        %v4395 = vrot.slane %v4381, %v4394
        %v4396 = vcombine.high %v4388, %v4388
        %v4397 = vcombine.high %v4395, %v4395
        %v4398 = vcombine.high %v4302, %v4302
        %v4400 = vunpack.c.l.s4 1983009808
        %v4401 = vunpack.c.0.s8 %v4400
        %v4402 = vlaneseq
        %v4403 = vshrl.u32 %v4402, 7
        %v4404 = vsub.s32 %v4401, %v4403
        %v4405 = vrot.slane %v4302, %v4404
        %v4407 = vunpack.c.l.s4 1983009808
        %v4408 = vunpack.c.0.s8 %v4407
        %v4409 = vlaneseq
        %v4410 = vshrl.u32 %v4409, 7
        %v4411 = vsub.s32 %v4408, %v4410
        %v4412 = vrot.slane %v4398, %v4411
        %v4413 = vcombine.high %v4405, %v4405
        %v4414 = vcombine.high %v4412, %v4412
        %v4415 = vcombine.high %v4303, %v4303
        %v4417 = vunpack.c.l.s4 1983009808
        %v4418 = vunpack.c.0.s8 %v4417
        %v4419 = vlaneseq
        %v4420 = vshrl.u32 %v4419, 7
        %v4421 = vsub.s32 %v4418, %v4420
        %v4422 = vrot.slane %v4303, %v4421
        %v4424 = vunpack.c.l.s4 1983009808
        %v4425 = vunpack.c.0.s8 %v4424
        %v4426 = vlaneseq
        %v4427 = vshrl.u32 %v4426, 7
        %v4428 = vsub.s32 %v4425, %v4427
        %v4429 = vrot.slane %v4415, %v4428
        %v4430 = vcombine.high %v4422, %v4422
        %v4431 = vcombine.high %v4429, %v4429
        %v4432 = vcombine.high %v4304, %v4304
        %v4434 = vunpack.c.l.s4 1983009808
        %v4435 = vunpack.c.0.s8 %v4434
        %v4436 = vlaneseq
        %v4437 = vshrl.u32 %v4436, 7
        %v4438 = vsub.s32 %v4435, %v4437
        %v4439 = vrot.slane %v4304, %v4438
        %v4441 = vunpack.c.l.s4 1983009808
        %v4442 = vunpack.c.0.s8 %v4441
        %v4443 = vlaneseq
        %v4444 = vshrl.u32 %v4443, 7
        %v4445 = vsub.s32 %v4442, %v4444
        %v4446 = vrot.slane %v4432, %v4445
        %v4447 = vcombine.high %v4439, %v4439
        %v4448 = vcombine.high %v4446, %v4446
        %v4481 = vrot.slane %v4320, 7
        %v4482 = vrot.slane %v4481, 2
        %v4483 = vrot.slane %v4328, 7
        %v4484 = vrot.slane %v4483, 2
        %v4485 = vrot.slane %v4327, 7
        %v4486 = vrot.slane %v4485, 2
        %v4487 = vrot.slane %v4329, 7
        %v4488 = vrot.slane %v4487, 2
        %v4489 = vrot.slane %v4337, 7
        %v4490 = vrot.slane %v4489, 2
        %v4491 = vrot.slane %v4345, 7
        %v4492 = vrot.slane %v4491, 2
        %v4493 = vrot.slane %v4344, 7
        %v4494 = vrot.slane %v4493, 2
        %v4495 = vrot.slane %v4346, 7
        %v4496 = vrot.slane %v4495, 2
        %v4497 = vrot.slane %v4354, 7
        %v4498 = vrot.slane %v4497, 2
        %v4499 = vrot.slane %v4362, 7
        %v4500 = vrot.slane %v4499, 2
        %v4501 = vrot.slane %v4361, 7
        %v4502 = vrot.slane %v4501, 2
        %v4503 = vrot.slane %v4363, 7
        %v4504 = vrot.slane %v4503, 2
        %v4505 = vrot.slane %v4371, 7
        %v4506 = vrot.slane %v4505, 2
        %v4507 = vrot.slane %v4379, 7
        %v4508 = vrot.slane %v4507, 2
        %v4509 = vrot.slane %v4378, 7
        %v4510 = vrot.slane %v4509, 2
        %v4511 = vrot.slane %v4380, 7
        %v4512 = vrot.slane %v4511, 2
        %v4513 = vrot.slane %v4388, 7
        %v4514 = vrot.slane %v4513, 2
        %v4515 = vrot.slane %v4396, 7
        %v4516 = vrot.slane %v4515, 2
        %v4517 = vrot.slane %v4395, 7
        %v4518 = vrot.slane %v4517, 2
        %v4519 = vrot.slane %v4397, 7
        %v4520 = vrot.slane %v4519, 2
        %v4521 = vrot.slane %v4405, 7
        %v4522 = vrot.slane %v4521, 2
        %v4523 = vrot.slane %v4413, 7
        %v4524 = vrot.slane %v4523, 2
        %v4525 = vrot.slane %v4412, 7
        %v4526 = vrot.slane %v4525, 2
        %v4527 = vrot.slane %v4414, 7
        %v4528 = vrot.slane %v4527, 2
        %v4529 = vrot.slane %v4422, 7
        %v4530 = vrot.slane %v4529, 2
        %v4531 = vrot.slane %v4430, 7
        %v4532 = vrot.slane %v4531, 2
        %v4533 = vrot.slane %v4429, 7
        %v4534 = vrot.slane %v4533, 2
        %v4535 = vrot.slane %v4431, 7
        %v4536 = vrot.slane %v4535, 2
        %v4537 = vrot.slane %v4439, 7
        %v4538 = vrot.slane %v4537, 2
        %v4539 = vrot.slane %v4447, 7
        %v4540 = vrot.slane %v4539, 2
        %v4541 = vrot.slane %v4446, 7
        %v4542 = vrot.slane %v4541, 2
        %v4543 = vrot.slane %v4448, 7
        %v4544 = vrot.slane %v4543, 2
        %v4577 = vmax.f32 %v4320, %v4482
        %v4578 = vmax.f32 %v4328, %v4484
        %v4579 = vmax.f32 %v4327, %v4486
        %v4580 = vmax.f32 %v4329, %v4488
        %v4581 = vmax.f32 %v4337, %v4490
        %v4582 = vmax.f32 %v4345, %v4492
        %v4583 = vmax.f32 %v4344, %v4494
        %v4584 = vmax.f32 %v4346, %v4496
        %v4585 = vmax.f32 %v4354, %v4498
        %v4586 = vmax.f32 %v4362, %v4500
        %v4587 = vmax.f32 %v4361, %v4502
        %v4588 = vmax.f32 %v4363, %v4504
        %v4589 = vmax.f32 %v4371, %v4506
        %v4590 = vmax.f32 %v4379, %v4508
        %v4591 = vmax.f32 %v4378, %v4510
        %v4592 = vmax.f32 %v4380, %v4512
        %v4593 = vmax.f32 %v4388, %v4514
        %v4594 = vmax.f32 %v4396, %v4516
        %v4595 = vmax.f32 %v4395, %v4518
        %v4596 = vmax.f32 %v4397, %v4520
        %v4597 = vmax.f32 %v4405, %v4522
        %v4598 = vmax.f32 %v4413, %v4524
        %v4599 = vmax.f32 %v4412, %v4526
        %v4600 = vmax.f32 %v4414, %v4528
        %v4601 = vmax.f32 %v4422, %v4530
        %v4602 = vmax.f32 %v4430, %v4532
        %v4603 = vmax.f32 %v4429, %v4534
        %v4604 = vmax.f32 %v4431, %v4536
        %v4605 = vmax.f32 %v4439, %v4538
        %v4606 = vmax.f32 %v4447, %v4540
        %v4607 = vmax.f32 %v4446, %v4542
        %v4608 = vmax.f32 %v4448, %v4544
        %v4609 = vmax.f32 %v4577, %v4581
        %v4610 = vmax.f32 %v4578, %v4582
        %v4611 = vmax.f32 %v4579, %v4583
        %v4612 = vmax.f32 %v4580, %v4584
        %v4613 = vmax.f32 %v4585, %v4589
        %v4614 = vmax.f32 %v4586, %v4590
        %v4615 = vmax.f32 %v4587, %v4591
        %v4616 = vmax.f32 %v4588, %v4592
        %v4617 = vmax.f32 %v4593, %v4597
        %v4618 = vmax.f32 %v4594, %v4598
        %v4619 = vmax.f32 %v4595, %v4599
        %v4620 = vmax.f32 %v4596, %v4600
        %v4621 = vmax.f32 %v4601, %v4605
        %v4622 = vmax.f32 %v4602, %v4606
        %v4623 = vmax.f32 %v4603, %v4607
        %v4624 = vmax.f32 %v4604, %v4608
        %v4626 = vlaneseq
        %v4627 = vshrl.u32 %v4626, 7
        %v4628 = vsub.s32 0, %v4627
        %v4629 = vrot.slane %v4610, %v4628
        %4630 = vrot.lane.b32.xlu0 %v4629, 16
        %v4631 = vpop.permute.xlu0 %4630
        %v4634 = vlaneseq
        %v4635 = vshrl.u32 %v4634, 7
        %v4636 = vsub.s32 0, %v4635
        %v4637 = vrot.slane %v4611, %v4636
        %4638 = vrot.lane.b32.xlu0 %v4637, 32
        %v4639 = vpop.permute.xlu0 %4638
        %v4642 = vlaneseq
        %v4643 = vshrl.u32 %v4642, 7
        %v4644 = vsub.s32 0, %v4643
        %v4645 = vrot.slane %v4612, %v4644
        %4646 = vrot.lane.b32.xlu0 %v4645, 48
        %v4647 = vpop.permute.xlu0 %4646
        %v4650 = vlaneseq
        %v4651 = vshrl.u32 %v4650, 7
        %v4652 = vsub.s32 0, %v4651
        %v4653 = vrot.slane %v4613, %v4652
        %4654 = vrot.lane.b32.xlu0 %v4653, 64
        %v4655 = vpop.permute.xlu0 %4654
        %v4658 = vlaneseq
        %v4659 = vshrl.u32 %v4658, 7
        %v4660 = vsub.s32 0, %v4659
        %v4661 = vrot.slane %v4614, %v4660
        %4662 = vrot.lane.b32.xlu0 %v4661, 80
        %v4663 = vpop.permute.xlu0 %4662
        %v4666 = vlaneseq
        %v4667 = vshrl.u32 %v4666, 7
        %v4668 = vsub.s32 0, %v4667
        %v4669 = vrot.slane %v4615, %v4668
        %4670 = vrot.lane.b32.xlu0 %v4669, 96
        %v4671 = vpop.permute.xlu0 %4670
        %v4674 = vlaneseq
        %v4675 = vshrl.u32 %v4674, 7
        %v4676 = vsub.s32 0, %v4675
        %v4677 = vrot.slane %v4616, %v4676
        %4678 = vrot.lane.b32.xlu0 %v4677, 112
        %v4679 = vpop.permute.xlu0 %4678
        %v4682 = vlaneseq
        %v4683 = vshrl.u32 %v4682, 7
        %v4684 = vsub.s32 0, %v4683
        %v4685 = vrot.slane %v4618, %v4684
        %4686 = vrot.lane.b32.xlu0 %v4685, 16
        %v4687 = vpop.permute.xlu0 %4686
        %v4690 = vlaneseq
        %v4691 = vshrl.u32 %v4690, 7
        %v4692 = vsub.s32 0, %v4691
        %v4693 = vrot.slane %v4619, %v4692
        %4694 = vrot.lane.b32.xlu0 %v4693, 32
        %v4695 = vpop.permute.xlu0 %4694
        %v4698 = vlaneseq
        %v4699 = vshrl.u32 %v4698, 7
        %v4700 = vsub.s32 0, %v4699
        %v4701 = vrot.slane %v4620, %v4700
        %4702 = vrot.lane.b32.xlu0 %v4701, 48
        %v4703 = vpop.permute.xlu0 %4702
        %v4706 = vlaneseq
        %v4707 = vshrl.u32 %v4706, 7
        %v4708 = vsub.s32 0, %v4707
        %v4709 = vrot.slane %v4621, %v4708
        %4710 = vrot.lane.b32.xlu0 %v4709, 64
        %v4711 = vpop.permute.xlu0 %4710
        %v4714 = vlaneseq
        %v4715 = vshrl.u32 %v4714, 7
        %v4716 = vsub.s32 0, %v4715
        %v4717 = vrot.slane %v4622, %v4716
        %4718 = vrot.lane.b32.xlu0 %v4717, 80
        %v4719 = vpop.permute.xlu0 %4718
        %v4722 = vlaneseq
        %v4723 = vshrl.u32 %v4722, 7
        %v4724 = vsub.s32 0, %v4723
        %v4725 = vrot.slane %v4623, %v4724
        %4726 = vrot.lane.b32.xlu0 %v4725, 96
        %v4727 = vpop.permute.xlu0 %4726
        %v4730 = vlaneseq
        %v4731 = vshrl.u32 %v4730, 7
        %v4732 = vsub.s32 0, %v4731
        %v4733 = vrot.slane %v4624, %v4732
        %4734 = vrot.lane.b32.xlu0 %v4733, 112
        %v4735 = vpop.permute.xlu0 %4734
        %v4737 = vsel %vm4099, %v4609, %v4631
        %v4738 = vsel %vm4116, %v4737, %v4639
        %v4739 = vsel %vm4134, %v4738, %v4647
        %v4740 = vsel %vm4152, %v4739, %v4655
        %vm4741 = vcmask 654336
        %v4742 = vsel %vm4741, %v4740, %v4663
        %vm4743 = vcmask 785408
        %v4744 = vsel %vm4743, %v4742, %v4671
        %vm4745 = vcmask 916480
        %v4746 = vsel %vm4745, %v4744, %v4679
        %v4747 = vsel %vm4099, %v4617, %v4687
        %v4748 = vsel %vm4116, %v4747, %v4695
        %v4749 = vsel %vm4134, %v4748, %v4703
        %v4750 = vsel %vm4152, %v4749, %v4711
        %v4751 = vsel %vm4741, %v4750, %v4719
        %v4752 = vsel %vm4743, %v4751, %v4727
        %v4753 = vsel %vm4745, %v4752, %v4735
        %v4754 = vld [vmem:[%s5] sm:$0xff]
        %v4755 = vld [vmem:[%s5 + $0x8] sm:$0xff]
        %v4756 = vld [vmem:[%s5 + $0x10] sm:$0xff]
        %v4757 = vld [vmem:[%s5 + $0x18] sm:$0xff]
        %v4758 = vld [vmem:[%s5 + $0x20] sm:$0xff]
        %v4759 = vld [vmem:[%s5 + $0x28] sm:$0xff]
        %v4760 = vld [vmem:[%s5 + $0x30] sm:$0xff]
        %v4761 = vld [vmem:[%s5 + $0x38] sm:$0xff]
        %v4762 = vld [vmem:[%s5 + $0x40] sm:$0xff]
        %v4763 = vld [vmem:[%s5 + $0x48] sm:$0xff]
        %v4764 = vld [vmem:[%s5 + $0x50] sm:$0xff]
        %v4765 = vld [vmem:[%s5 + $0x58] sm:$0xff]
        %v4766 = vld [vmem:[%s5 + $0x60] sm:$0xff]
        %v4767 = vld [vmem:[%s5 + $0x68] sm:$0xff]
        %v4768 = vld [vmem:[%s5 + $0x70] sm:$0xff]
        %v4769 = vld [vmem:[%s5 + $0x78] sm:$0xff]
        %v4770 = vld [vmem:[%s5 + $0x80] sm:$0xff]
        %v4771 = vld [vmem:[%s5 + $0x88] sm:$0xff]
        %v4772 = vld [vmem:[%s5 + $0x90] sm:$0xff]
        %v4773 = vld [vmem:[%s5 + $0x98] sm:$0xff]
        %v4774 = vld [vmem:[%s5 + $0xa0] sm:$0xff]
        %v4775 = vld [vmem:[%s5 + $0xa8] sm:$0xff]
        %v4776 = vld [vmem:[%s5 + $0xb0] sm:$0xff]
        %v4777 = vld [vmem:[%s5 + $0xb8] sm:$0xff]
        %v4778 = vld [vmem:[%s5 + $0xc0] sm:$0xff]
        %v4779 = vld [vmem:[%s5 + $0xc8] sm:$0xff]
        %v4780 = vld [vmem:[%s5 + $0xd0] sm:$0xff]
        %v4781 = vld [vmem:[%s5 + $0xd8] sm:$0xff]
        %v4782 = vld [vmem:[%s5 + $0xe0] sm:$0xff]
        %v4783 = vld [vmem:[%s5 + $0xe8] sm:$0xff]
        %v4784 = vld [vmem:[%s5 + $0xf0] sm:$0xff]
        %v4785 = vld [vmem:[%s5 + $0xf8] sm:$0xff]
        %v4786 = vld [vmem:[%s6] sm:$0x1]
        %4787 = vmatprep.subr.mxu0 0.0
        %4788 = vmatpush1.msra.mxu0 %v4754
        %4789 = vmatprep.subr.mxu0 0.0
        %4790 = vmatpush1.msra.mxu0 %v4755
        %4791 = vmatprep.subr.mxu0 0.0
        %4792 = vmatpush1.msra.mxu0 %v4756
        %4793 = vmatprep.subr.mxu0 0.0
        %4794 = vmatpush1.msra.mxu0 %v4757
        %4795 = vmatprep.subr.mxu0 0.0
        %4796 = vmatpush1.msra.mxu0 %v4758
        %4797 = vmatprep.subr.mxu0 0.0
        %4798 = vmatpush1.msra.mxu0 %v4759
        %4799 = vmatprep.subr.mxu0 0.0
        %4800 = vmatpush1.msra.mxu0 %v4760
        %4801 = vmatprep.subr.mxu0 0.0
        %4802 = vmatpush1.msra.mxu0 %v4761
        %4803 = vmatprep.subr.mxu0 0.0
        %4804 = vmatpush1.msra.mxu0 %v4762
        %4805 = vmatprep.subr.mxu0 0.0
        %4806 = vmatpush1.msra.mxu0 %v4763
        %4807 = vmatprep.subr.mxu0 0.0
        %4808 = vmatpush1.msra.mxu0 %v4764
        %4809 = vmatprep.subr.mxu0 0.0
        %4810 = vmatpush1.msra.mxu0 %v4765
        %4811 = vmatprep.subr.mxu0 0.0
        %4812 = vmatpush1.msra.mxu0 %v4766
        %4813 = vmatprep.subr.mxu0 0.0
        %4814 = vmatpush1.msra.mxu0 %v4767
        %4815 = vmatprep.subr.mxu0 0.0
        %4816 = vmatpush1.msra.mxu0 %v4768
        %4817 = vmatprep.subr.mxu0 0.0
        %4818 = vmatpush1.msra.mxu0 %v4769
        %4819 = vmatprep.subr.mxu0 0.0
        %4820 = vmatpush1.msra.mxu0 %v4770
        %4821 = vmatprep.subr.mxu0 0.0
        %4822 = vmatpush1.msra.mxu0 %v4771
        %4823 = vmatprep.subr.mxu0 0.0
        %4824 = vmatpush1.msra.mxu0 %v4772
        %4825 = vmatprep.subr.mxu0 0.0
        %4826 = vmatpush1.msra.mxu0 %v4773
        %4827 = vmatprep.subr.mxu0 0.0
        %4828 = vmatpush1.msra.mxu0 %v4774
        %4829 = vmatprep.subr.mxu0 0.0
        %4830 = vmatpush1.msra.mxu0 %v4775
        %4831 = vmatprep.subr.mxu0 0.0
        %4832 = vmatpush1.msra.mxu0 %v4776
        %4833 = vmatprep.subr.mxu0 0.0
        %4834 = vmatpush1.msra.mxu0 %v4777
        %4835 = vmatprep.subr.mxu0 0.0
        %4836 = vmatpush1.msra.mxu0 %v4778
        %4837 = vmatprep.subr.mxu0 0.0
        %4838 = vmatpush1.msra.mxu0 %v4779
        %4839 = vmatprep.subr.mxu0 0.0
        %4840 = vmatpush1.msra.mxu0 %v4780
        %4841 = vmatprep.subr.mxu0 0.0
        %4842 = vmatpush1.msra.mxu0 %v4781
        %4843 = vmatprep.subr.mxu0 0.0
        %4844 = vmatpush1.msra.mxu0 %v4782
        %4845 = vmatprep.subr.mxu0 0.0
        %4846 = vmatpush1.msra.mxu0 %v4783
        %4847 = vmatprep.subr.mxu0 0.0
        %4848 = vmatpush1.msra.mxu0 %v4784
        %4849 = vmatprep.subr.mxu0 0.0
        %4850 = vmatpush1.msra.mxu0 %v4785
        %4851 = vmatprep.mubr.f32.mxu0 %v4753
        %4852 = vmatmul.mubr.f32.gmra.mrb[0].mxu0 %v4746
        %v4853 = vpop.f32.mrb[0].mxu0
        %v4854 = vadd.f32 %v4786, %v4853
        %v4855 = vpop.f32.mrb[0].mxu0
        %4856 = vdwg.mxu0
        %vm4857 = vcmask 73728
        %4858 = vst.msk [vmem:[%s270] sm:$0x1] %vm4857, %v4854
        %s4859 = sand.u32 %s181, 1
        %s4860 = scalar_lea.sflag [#allocation5], %s4859
        %s4861 = sand.u32 %s181, 1
        %s4862 = scalar_lea.vmem [#allocation4], %s4861
        // Predicated region
        $region49: #{custom_model_forward.1} parent=47 // pred_check
          %p4863 = pneg %p191
        $region50: #{custom_model_forward.1} parent=47 // pred_check_branch
          %4865 = sbr.rel (%p4863) target = $region52
        $region51: #{custom_model_forward.1} parent=47 // pred_region
          %s4867 = ssub.s32 16, 16
          %4868 = vsyncadd %s4860, %s4867
          %s4869 = smul.addr %s21, 16
          %s4870 = scalar_lea.hbm %s7, %s4869
          %s4872 = sshll.u32 %s4862, 4
          %s4873 = int_to_ptr.vmem [resolvable:$true] %s4872
          %4875 = dma.vmem_to_hbm [thread:$0]  %s4873, 16, %s4870, %s4860
        $region52: #{custom_model_forward.1} parent=47 // pred_fallthru
          _
      $region48: #{custom_model_forward.1} parent=5 // pred_fallthru
        _
      %p4876 = scmp.le.s32.totalorder 2, %s16
      // Predicated region
      $region53: #{custom_model_forward.1} parent=5 // pred_check
        %p4877 = pneg %p4876
      $region54: #{custom_model_forward.1} parent=5 // pred_check_branch
        %4879 = sbr.rel (%p4877) target = $region56
      $region55: #{custom_model_forward.1} parent=5 // pred_region
        %s4880 = ssub.s32 %s16, 2
        // Predicated region
        $region57: #{custom_model_forward.1} parent=55 // pred_check
          %p4881 = pneg %p197
        $region58: #{custom_model_forward.1} parent=55 // pred_check_branch
          %4883 = sbr.rel (%p4881) target = $region60
        $region59: #{custom_model_forward.1} parent=55 // pred_region
          %s4884 = sand.u32 %s182, 1
          %s4885 = scalar_lea.sflag [#allocation5], %s4884
          %s4886 = sand.u32 %s182, 1
          %s4887 = scalar_lea.vmem [#allocation4], %s4886
          %4888 = dma.done %s4885, 16
        $region60: #{custom_model_forward.1} parent=55 // pred_fallthru
          _
      $region56: #{custom_model_forward.1} parent=5 // pred_fallthru
        _
    $region6: #{custom_model_forward.1} parent=1 // loop_footer
      %s20 = sadd.s32 1, %s16
    $region7: #{custom_model_forward.1} parent=1 // loop_footer_branch
      %15 = sbr.rel target = $region3
    $region8: #{custom_model_forward.1} parent=1 // loop_exit
      _
    %4889 = vsyncpa [#allocation5], 1
    %s4890 = scalar_lea.sflag [#allocation5], 1
    %4891 = vsyncpa %s4890, 1

</llo_original>
